<compile_context>
chip_gen: v5e
topology: v5e:2x2
jax: 0.10.0
libtpu: 0.0.40
codegen_flags: <defaults>
</compile_context>

<pallas_src>
import functools

import jax
import jax.numpy as jnp
from jax.experimental import pallas as pl
from jax.experimental.pallas import tpu as pltpu

_EPS = 1e-5  # PyTorch InstanceNorm2d default eps (affine=False, no running stats)


def _reflect_pad_store(pad_ref, img):
    """Store img (H, W, C) into pad_ref (H+2, W+2, C) with 1px reflection pad.

    All writes are static ref slices in VMEM; corners come out right because
    the left/right column fills read the already-reflected top/bottom rows.
    """
    H, W, _ = img.shape
    pad_ref[1:H + 1, 1:W + 1, :] = img                       # interior
    pad_ref[0:1, 1:W + 1, :] = img[1:2]                      # top    <- row 1
    pad_ref[H + 1:H + 2, 1:W + 1, :] = img[H - 2:H - 1]      # bottom <- row H-2
    pad_ref[:, 0:1, :] = pad_ref[:, 2:3, :]                  # left   <- col 1
    pad_ref[:, W + 1:W + 2, :] = pad_ref[:, W - 1:W, :]      # right  <- col W-2


def _conv3x3_acc(pad_ref, w_ref, H, W, C):
    """3x3 VALID conv of the padded image in pad_ref with HWIO weights.

    Returns the f32 accumulator, shape (H*W, C).  The kw shift is one offset
    load per kw from the VMEM scratch (3 loads total); the kh shift is a
    sublane-aligned slice of the loaded value whenever W % 8 == 0, so there
    are no per-tap relayout copies.  Matmuls accumulate in f32 on the MXU.
    """
    Hp = H + 2
    acc = None
    for kw in range(3):
        # (Hp, W, C) window at column offset kw, flattened to (Hp*W, C).
        cols = pad_ref[:, kw:kw + W, :].reshape(Hp * W, C)
        for kh in range(3):
            patch = cols[kh * W:(kh + H) * W]                # (H*W, C)
            d = jnp.dot(patch, w_ref[kh, kw],
                        preferred_element_type=jnp.float32)
            acc = d if acc is None else acc + d
    return acc


def _instance_norm(y, hw):
    """InstanceNorm2d (affine=False, biased var) over axis 0 of (H*W, C) f32.

    One-pass statistics: var = E[y^2] - mean^2 (halves the reduction work vs
    the two-pass mean/var formulation)."""
    inv_hw = 1.0 / hw
    mean = jnp.sum(y, axis=0, keepdims=True) * inv_hw
    var = jnp.sum(y * y, axis=0, keepdims=True) * inv_hw - mean * mean
    return (y - mean) * jax.lax.rsqrt(var + _EPS)


def _residual_block_kernel(x_ref, w1_ref, w2_ref, o_ref, xpad_ref, ypad_ref):
    # x_ref/o_ref: (1, H, W, C).  w*_ref: (3, 3, C, C) HWIO in compute dtype.
    # xpad_ref/ypad_ref: (H+2, W+2, C) VMEM scratch in compute dtype.
    _, H, W, C = x_ref.shape
    hw = H * W
    cdt = xpad_ref.dtype                      # matmul / scratch dtype

    x = x_ref[0]                              # (H, W, C), input dtype

    # ---- stage 1: ReLU(IN(conv3x3(reflect_pad(x)))) -------------------------
    # Conv bias omitted: cancelled exactly by the mean subtraction in IN.
    _reflect_pad_store(xpad_ref, x.astype(cdt))
    a1 = _conv3x3_acc(xpad_ref, w1_ref, H, W, C)             # (H*W, C) f32
    y1 = jnp.maximum(_instance_norm(a1, hw), 0.0)            # f32

    # ---- stage 2: IN(conv3x3(reflect_pad(y1))) ------------------------------
    _reflect_pad_store(ypad_ref, y1.reshape(H, W, C).astype(cdt))
    a2 = _conv3x3_acc(ypad_ref, w2_ref, H, W, C)
    z = _instance_norm(a2, hw)                               # (H*W, C) f32

    # ---- residual add (x kept at full input precision) ----------------------
    o_ref[0] = (x.astype(jnp.float32) + z.reshape(H, W, C)).astype(o_ref.dtype)


def residual_block_nhwc(x_nhwc, w1, w2, *, compute_dtype=jnp.bfloat16):
    """x_nhwc: (N, H, W, C); w1/w2: (3, 3, C, C) HWIO.  Returns (N, H, W, C).

    Conv biases are intentionally omitted: with affine=False InstanceNorm2d
    directly after each conv they are cancelled by the mean subtraction.
    """
    N, H, W, C = x_nhwc.shape
    Hp, Wp = H + 2, W + 2

    # Cast weights once for the MXU (activations are cast in-kernel when they
    # are written into the padded VMEM scratch).
    w1c = w1.astype(compute_dtype)
    w2c = w2.astype(compute_dtype)

    img_spec = pl.BlockSpec((1, H, W, C), lambda n: (n, 0, 0, 0))
    w_spec = pl.BlockSpec((3, 3, C, C), lambda n: (0, 0, 0, 0))

    # Explicit VMEM budget: in/out blocks (double-buffered), two weight blocks,
    # the two padded scratches, f32 intermediates, plus headroom.
    itm_x = jnp.dtype(x_nhwc.dtype).itemsize
    itm_c = jnp.dtype(compute_dtype).itemsize
    est = (4 * H * W * C * itm_x                 # x / out blocks, 2x buffered
           + 4 * 9 * C * C * itm_c               # w1 / w2 blocks, 2x buffered
           + 2 * Hp * Wp * C * itm_c             # padded VMEM scratches
           + 8 * H * W * C * 4                   # f32 acc / norm temporaries
           + (4 << 20))                          # headroom
    vmem_limit = int(min(max(est, 32 << 20), 100 << 20))

    return pl.pallas_call(
        _residual_block_kernel,
        out_shape=jax.ShapeDtypeStruct((N, H, W, C), x_nhwc.dtype),
        grid=(N,),
        in_specs=[img_spec, w_spec, w_spec],
        out_specs=img_spec,
        scratch_shapes=[pltpu.VMEM((Hp, Wp, C), compute_dtype),
                        pltpu.VMEM((Hp, Wp, C), compute_dtype)],
        compiler_params=pltpu.CompilerParams(
            dimension_semantics=("parallel",),
            vmem_limit_bytes=vmem_limit),
    )(x_nhwc, w1c, w2c)


@functools.partial(jax.jit, static_argnames=("compute_dtype",))
def residual_block(x_nchw, w1, b1, w2, b2, *, compute_dtype=jnp.bfloat16):
    """PyTorch-parity entry point: (N, C, H, W) -> (N, C, H, W).

    NOTE: in a full CycleGAN trunk keep activations NHWC and call
    residual_block_nhwc directly so the two transposes below are paid once at
    network entry/exit instead of once per residual block.  b1/b2 are accepted
    for parameter parity with nn.Conv2d but are unused (exactly cancelled by
    the affine=False InstanceNorm that follows each conv).
    """
    del b1, b2
    x_nhwc = jnp.transpose(x_nchw, (0, 2, 3, 1))
    out = residual_block_nhwc(x_nhwc, w1, w2, compute_dtype=compute_dtype)
    return jnp.transpose(out, (0, 3, 1, 2))


def _reference(x_nchw, w1, b1, w2, b2):
    """Pure-JAX reference mirroring the PyTorch module exactly (incl. bias)."""
    def conv(x, w_hwio, b):
        xp = jnp.pad(x, ((0, 0), (0, 0), (1, 1), (1, 1)), mode="reflect")
        y = jax.lax.conv_general_dilated(
            xp, w_hwio, (1, 1), "VALID",
            dimension_numbers=("NCHW", "HWIO", "NCHW"))
        return y + b.reshape(1, -1, 1, 1)

    def inorm(y):
        m = y.mean(axis=(2, 3), keepdims=True)
        v = ((y - m) ** 2).mean(axis=(2, 3), keepdims=True)
        return (y - m) / jnp.sqrt(v + _EPS)

    y = jax.nn.relu(inorm(conv(x_nchw, w1, b1)))
    z = inorm(conv(y, w2, b2))
    return x_nchw + z


if __name__ == "__main__":
    N, C, H, W = 2, 4, 16, 16
    key = jax.random.PRNGKey(0)
    kx, k1, kb1, k2, kb2 = jax.random.split(key, 5)

    x = jax.random.normal(kx, (N, C, H, W), dtype=jnp.float32)
    # Conv weights in HWIO layout (kh, kw, Cin, Cout); biases as (1, C).
    w1 = jax.random.normal(k1, (3, 3, C, C), dtype=jnp.float32) * 0.2
    b1 = jax.random.normal(kb1, (1, C), dtype=jnp.float32) * 0.1
    w2 = jax.random.normal(k2, (3, 3, C, C), dtype=jnp.float32) * 0.2
    b2 = jax.random.normal(kb2, (1, C), dtype=jnp.float32) * 0.1

    ref = _reference(x, w1, b1, w2, b2)

    # f32 matmul path: must match the PyTorch-equivalent reference tightly
    # (bias omission is a mathematical no-op under InstanceNorm).
    out_f32 = jax.block_until_ready(
        residual_block(x, w1, b1, w2, b2, compute_dtype=jnp.float32))
    assert out_f32.shape == (N, C, H, W)
    assert jnp.allclose(out_f32, ref, atol=1e-4, rtol=1e-4), "f32 path mismatch"

    # Default bf16 MXU path (f32 accumulation + f32 norm math): tolerance
    # reflects bf16 rounding through two convs and two InstanceNorms.
    out_bf16 = jax.block_until_ready(residual_block(x, w1, b1, w2, b2))
    assert out_bf16.shape == (N, C, H, W)
    assert jnp.allclose(out_bf16, ref, atol=1e-1, rtol=1e-1), "bf16 path mismatch"

    print("KERNEL_OK")
</pallas_src>

<mosaic_0001>
module attributes {stable_mosaic.version = 11 : i64} {
  func.func @_residual_block_kernel(%arg0: i32, %arg1: memref<1x16x16x4xf32, #tpu.memory_space<vmem>>, %arg2: memref<3x3x4x4xf32, #tpu.memory_space<vmem>>, %arg3: memref<3x3x4x4xf32, #tpu.memory_space<vmem>>, %arg4: memref<1x16x16x4xf32, #tpu.memory_space<vmem>>, %arg5: memref<18x18x4xf32, #tpu.memory_space<vmem>>, %arg6: memref<18x18x4xf32, #tpu.memory_space<vmem>>) attributes {dimension_semantics = [#tpu.dimension_semantics<parallel>], iteration_bounds = array<i64: 2>, scalar_prefetch = 0 : i64, scratch_operands = 2 : i64, tpu.core_type = #tpu.core_type<tc>, window_params = [{transform_indices = @transform_0, window_bounds = array<i64: 1, 16, 16, 4>}, {pipeline_mode = #tpu.pipeline_mode<synchronous>, transform_indices = @transform_1, window_bounds = array<i64: 3, 3, 4, 4>}, {pipeline_mode = #tpu.pipeline_mode<synchronous>, transform_indices = @transform_2, window_bounds = array<i64: 3, 3, 4, 4>}, {transform_indices = @transform_3, window_bounds = array<i64: 1, 16, 16, 4>}]} {
    %c0 = arith.constant 0 : index
    %c0_0 = arith.constant 0 : index
    %c0_1 = arith.constant 0 : index
    %c0_2 = arith.constant 0 : index
    %0 = vector.load %arg1[%c0, %c0_0, %c0_1, %c0_2] : memref<1x16x16x4xf32, #tpu.memory_space<vmem>>, vector<1x16x16x4xf32>
    %1 = vector.shape_cast %0 : vector<1x16x16x4xf32> to vector<16x16x4xf32>
    %c1 = arith.constant 1 : index
    %c1_3 = arith.constant 1 : index
    %c0_4 = arith.constant 0 : index
    %2 = vector.load %arg5[%c1, %c1_3, %c0_4] : memref<18x18x4xf32, #tpu.memory_space<vmem>>, vector<16x16x4xf32>
    tpu.vector_store %arg5[%c1, %c1_3, %c0_4], %1 {strides = array<i32>} : memref<18x18x4xf32, #tpu.memory_space<vmem>>, vector<16x16x4xf32>,
    %3 = vector.extract_strided_slice %1 {offsets = [1, 0, 0], sizes = [1, 16, 4], strides = [1, 1, 1]} : vector<16x16x4xf32> to vector<1x16x4xf32>
    %c0_5 = arith.constant 0 : index
    %c1_6 = arith.constant 1 : index
    %c0_7 = arith.constant 0 : index
    %4 = vector.load %arg5[%c0_5, %c1_6, %c0_7] : memref<18x18x4xf32, #tpu.memory_space<vmem>>, vector<1x16x4xf32>
    tpu.vector_store %arg5[%c0_5, %c1_6, %c0_7], %3 {strides = array<i32>} : memref<18x18x4xf32, #tpu.memory_space<vmem>>, vector<1x16x4xf32>,
    %5 = vector.extract_strided_slice %1 {offsets = [14, 0, 0], sizes = [1, 16, 4], strides = [1, 1, 1]} : vector<16x16x4xf32> to vector<1x16x4xf32>
    %c17 = arith.constant 17 : index
    %c1_8 = arith.constant 1 : index
    %c0_9 = arith.constant 0 : index
    %6 = vector.load %arg5[%c17, %c1_8, %c0_9] : memref<18x18x4xf32, #tpu.memory_space<vmem>>, vector<1x16x4xf32>
    tpu.vector_store %arg5[%c17, %c1_8, %c0_9], %5 {strides = array<i32>} : memref<18x18x4xf32, #tpu.memory_space<vmem>>, vector<1x16x4xf32>,
    %c0_10 = arith.constant 0 : index
    %c2 = arith.constant 2 : index
    %c0_11 = arith.constant 0 : index
    %7 = vector.load %arg5[%c0_10, %c2, %c0_11] : memref<18x18x4xf32, #tpu.memory_space<vmem>>, vector<18x1x4xf32>
    %c0_12 = arith.constant 0 : index
    %c0_13 = arith.constant 0 : index
    %c0_14 = arith.constant 0 : index
    %8 = vector.load %arg5[%c0_12, %c0_13, %c0_14] : memref<18x18x4xf32, #tpu.memory_space<vmem>>, vector<18x1x4xf32>
    tpu.vector_store %arg5[%c0_12, %c0_13, %c0_14], %7 {strides = array<i32>} : memref<18x18x4xf32, #tpu.memory_space<vmem>>, vector<18x1x4xf32>,
    %c0_15 = arith.constant 0 : index
    %c15 = arith.constant 15 : index
    %c0_16 = arith.constant 0 : index
    %9 = vector.load %arg5[%c0_15, %c15, %c0_16] : memref<18x18x4xf32, #tpu.memory_space<vmem>>, vector<18x1x4xf32>
    %c0_17 = arith.constant 0 : index
    %c17_18 = arith.constant 17 : index
    %c0_19 = arith.constant 0 : index
    %10 = vector.load %arg5[%c0_17, %c17_18, %c0_19] : memref<18x18x4xf32, #tpu.memory_space<vmem>>, vector<18x1x4xf32>
    tpu.vector_store %arg5[%c0_17, %c17_18, %c0_19], %9 {strides = array<i32>} : memref<18x18x4xf32, #tpu.memory_space<vmem>>, vector<18x1x4xf32>,
    %c0_20 = arith.constant 0 : index
    %c0_21 = arith.constant 0 : index
    %c0_22 = arith.constant 0 : index
    %11 = vector.load %arg5[%c0_20, %c0_21, %c0_22] : memref<18x18x4xf32, #tpu.memory_space<vmem>>, vector<18x16x4xf32>
    %12 = vector.shape_cast %11 : vector<18x16x4xf32> to vector<288x4xf32>
    %13 = vector.extract_strided_slice %12 {offsets = [0, 0], sizes = [256, 4], strides = [1, 1]} : vector<288x4xf32> to vector<256x4xf32>
    %c0_23 = arith.constant 0 : index
    %c0_24 = arith.constant 0 : index
    %c0_25 = arith.constant 0 : index
    %c0_26 = arith.constant 0 : index
    %14 = vector.load %arg2[%c0_23, %c0_24, %c0_25, %c0_26] : memref<3x3x4x4xf32, #tpu.memory_space<vmem>>, vector<1x1x4x4xf32>
    %15 = vector.shape_cast %14 : vector<1x1x4x4xf32> to vector<4x4xf32>
    %cst = arith.constant dense<0.000000e+00> : vector<256x4xf32>
    %16 = tpu.matmul %13, %15, %cst {dimension_numbers = #tpu.dot_dimension_numbers<[1], [0], [0], [1], [0, 0, 1, 1], [], []>} : vector<256x4xf32>, vector<4x4xf32>, vector<256x4xf32> -> vector<256x4xf32>
    %17 = vector.extract_strided_slice %12 {offsets = [16, 0], sizes = [256, 4], strides = [1, 1]} : vector<288x4xf32> to vector<256x4xf32>
    %c1_27 = arith.constant 1 : index
    %c0_28 = arith.constant 0 : index
    %c0_29 = arith.constant 0 : index
    %c0_30 = arith.constant 0 : index
    %18 = vector.load %arg2[%c1_27, %c0_28, %c0_29, %c0_30] : memref<3x3x4x4xf32, #tpu.memory_space<vmem>>, vector<1x1x4x4xf32>
    %19 = vector.shape_cast %18 : vector<1x1x4x4xf32> to vector<4x4xf32>
    %cst_31 = arith.constant dense<0.000000e+00> : vector<256x4xf32>
    %20 = tpu.matmul %17, %19, %cst_31 {dimension_numbers = #tpu.dot_dimension_numbers<[1], [0], [0], [1], [0, 0, 1, 1], [], []>} : vector<256x4xf32>, vector<4x4xf32>, vector<256x4xf32> -> vector<256x4xf32>
    %21 = arith.addf %16, %20 : vector<256x4xf32>
    %22 = vector.extract_strided_slice %12 {offsets = [32, 0], sizes = [256, 4], strides = [1, 1]} : vector<288x4xf32> to vector<256x4xf32>
    %c2_32 = arith.constant 2 : index
    %c0_33 = arith.constant 0 : index
    %c0_34 = arith.constant 0 : index
    %c0_35 = arith.constant 0 : index
    %23 = vector.load %arg2[%c2_32, %c0_33, %c0_34, %c0_35] : memref<3x3x4x4xf32, #tpu.memory_space<vmem>>, vector<1x1x4x4xf32>
    %24 = vector.shape_cast %23 : vector<1x1x4x4xf32> to vector<4x4xf32>
    %cst_36 = arith.constant dense<0.000000e+00> : vector<256x4xf32>
    %25 = tpu.matmul %22, %24, %cst_36 {dimension_numbers = #tpu.dot_dimension_numbers<[1], [0], [0], [1], [0, 0, 1, 1], [], []>} : vector<256x4xf32>, vector<4x4xf32>, vector<256x4xf32> -> vector<256x4xf32>
    %26 = arith.addf %21, %25 : vector<256x4xf32>
    %c0_37 = arith.constant 0 : index
    %c1_38 = arith.constant 1 : index
    %c0_39 = arith.constant 0 : index
    %27 = vector.load %arg5[%c0_37, %c1_38, %c0_39] : memref<18x18x4xf32, #tpu.memory_space<vmem>>, vector<18x16x4xf32>
    %28 = vector.shape_cast %27 : vector<18x16x4xf32> to vector<288x4xf32>
    %29 = vector.extract_strided_slice %28 {offsets = [0, 0], sizes = [256, 4], strides = [1, 1]} : vector<288x4xf32> to vector<256x4xf32>
    %c0_40 = arith.constant 0 : index
    %c1_41 = arith.constant 1 : index
    %c0_42 = arith.constant 0 : index
    %c0_43 = arith.constant 0 : index
    %30 = vector.load %arg2[%c0_40, %c1_41, %c0_42, %c0_43] : memref<3x3x4x4xf32, #tpu.memory_space<vmem>>, vector<1x1x4x4xf32>
    %31 = vector.shape_cast %30 : vector<1x1x4x4xf32> to vector<4x4xf32>
    %cst_44 = arith.constant dense<0.000000e+00> : vector<256x4xf32>
    %32 = tpu.matmul %29, %31, %cst_44 {dimension_numbers = #tpu.dot_dimension_numbers<[1], [0], [0], [1], [0, 0, 1, 1], [], []>} : vector<256x4xf32>, vector<4x4xf32>, vector<256x4xf32> -> vector<256x4xf32>
    %33 = arith.addf %26, %32 : vector<256x4xf32>
    %34 = vector.extract_strided_slice %28 {offsets = [16, 0], sizes = [256, 4], strides = [1, 1]} : vector<288x4xf32> to vector<256x4xf32>
    %c1_45 = arith.constant 1 : index
    %c1_46 = arith.constant 1 : index
    %c0_47 = arith.constant 0 : index
    %c0_48 = arith.constant 0 : index
    %35 = vector.load %arg2[%c1_45, %c1_46, %c0_47, %c0_48] : memref<3x3x4x4xf32, #tpu.memory_space<vmem>>, vector<1x1x4x4xf32>
    %36 = vector.shape_cast %35 : vector<1x1x4x4xf32> to vector<4x4xf32>
    %cst_49 = arith.constant dense<0.000000e+00> : vector<256x4xf32>
    %37 = tpu.matmul %34, %36, %cst_49 {dimension_numbers = #tpu.dot_dimension_numbers<[1], [0], [0], [1], [0, 0, 1, 1], [], []>} : vector<256x4xf32>, vector<4x4xf32>, vector<256x4xf32> -> vector<256x4xf32>
    %38 = arith.addf %33, %37 : vector<256x4xf32>
    %39 = vector.extract_strided_slice %28 {offsets = [32, 0], sizes = [256, 4], strides = [1, 1]} : vector<288x4xf32> to vector<256x4xf32>
    %c2_50 = arith.constant 2 : index
    %c1_51 = arith.constant 1 : index
    %c0_52 = arith.constant 0 : index
    %c0_53 = arith.constant 0 : index
    %40 = vector.load %arg2[%c2_50, %c1_51, %c0_52, %c0_53] : memref<3x3x4x4xf32, #tpu.memory_space<vmem>>, vector<1x1x4x4xf32>
    %41 = vector.shape_cast %40 : vector<1x1x4x4xf32> to vector<4x4xf32>
    %cst_54 = arith.constant dense<0.000000e+00> : vector<256x4xf32>
    %42 = tpu.matmul %39, %41, %cst_54 {dimension_numbers = #tpu.dot_dimension_numbers<[1], [0], [0], [1], [0, 0, 1, 1], [], []>} : vector<256x4xf32>, vector<4x4xf32>, vector<256x4xf32> -> vector<256x4xf32>
    %43 = arith.addf %38, %42 : vector<256x4xf32>
    %c0_55 = arith.constant 0 : index
    %c2_56 = arith.constant 2 : index
    %c0_57 = arith.constant 0 : index
    %44 = vector.load %arg5[%c0_55, %c2_56, %c0_57] : memref<18x18x4xf32, #tpu.memory_space<vmem>>, vector<18x16x4xf32>
    %45 = vector.shape_cast %44 : vector<18x16x4xf32> to vector<288x4xf32>
    %46 = vector.extract_strided_slice %45 {offsets = [0, 0], sizes = [256, 4], strides = [1, 1]} : vector<288x4xf32> to vector<256x4xf32>
    %c0_58 = arith.constant 0 : index
    %c2_59 = arith.constant 2 : index
    %c0_60 = arith.constant 0 : index
    %c0_61 = arith.constant 0 : index
    %47 = vector.load %arg2[%c0_58, %c2_59, %c0_60, %c0_61] : memref<3x3x4x4xf32, #tpu.memory_space<vmem>>, vector<1x1x4x4xf32>
    %48 = vector.shape_cast %47 : vector<1x1x4x4xf32> to vector<4x4xf32>
    %cst_62 = arith.constant dense<0.000000e+00> : vector<256x4xf32>
    %49 = tpu.matmul %46, %48, %cst_62 {dimension_numbers = #tpu.dot_dimension_numbers<[1], [0], [0], [1], [0, 0, 1, 1], [], []>} : vector<256x4xf32>, vector<4x4xf32>, vector<256x4xf32> -> vector<256x4xf32>
    %50 = arith.addf %43, %49 : vector<256x4xf32>
    %51 = vector.extract_strided_slice %45 {offsets = [16, 0], sizes = [256, 4], strides = [1, 1]} : vector<288x4xf32> to vector<256x4xf32>
    %c1_63 = arith.constant 1 : index
    %c2_64 = arith.constant 2 : index
    %c0_65 = arith.constant 0 : index
    %c0_66 = arith.constant 0 : index
    %52 = vector.load %arg2[%c1_63, %c2_64, %c0_65, %c0_66] : memref<3x3x4x4xf32, #tpu.memory_space<vmem>>, vector<1x1x4x4xf32>
    %53 = vector.shape_cast %52 : vector<1x1x4x4xf32> to vector<4x4xf32>
    %cst_67 = arith.constant dense<0.000000e+00> : vector<256x4xf32>
    %54 = tpu.matmul %51, %53, %cst_67 {dimension_numbers = #tpu.dot_dimension_numbers<[1], [0], [0], [1], [0, 0, 1, 1], [], []>} : vector<256x4xf32>, vector<4x4xf32>, vector<256x4xf32> -> vector<256x4xf32>
    %55 = arith.addf %50, %54 : vector<256x4xf32>
    %56 = vector.extract_strided_slice %45 {offsets = [32, 0], sizes = [256, 4], strides = [1, 1]} : vector<288x4xf32> to vector<256x4xf32>
    %c2_68 = arith.constant 2 : index
    %c2_69 = arith.constant 2 : index
    %c0_70 = arith.constant 0 : index
    %c0_71 = arith.constant 0 : index
    %57 = vector.load %arg2[%c2_68, %c2_69, %c0_70, %c0_71] : memref<3x3x4x4xf32, #tpu.memory_space<vmem>>, vector<1x1x4x4xf32>
    %58 = vector.shape_cast %57 : vector<1x1x4x4xf32> to vector<4x4xf32>
    %cst_72 = arith.constant dense<0.000000e+00> : vector<256x4xf32>
    %59 = tpu.matmul %56, %58, %cst_72 {dimension_numbers = #tpu.dot_dimension_numbers<[1], [0], [0], [1], [0, 0, 1, 1], [], []>} : vector<256x4xf32>, vector<4x4xf32>, vector<256x4xf32> -> vector<256x4xf32>
    %60 = arith.addf %55, %59 : vector<256x4xf32>
    %cst_73 = arith.constant dense<0.000000e+00> : vector<4xf32>
    %61 = vector.multi_reduction <add>, %60, %cst_73 [0] : vector<256x4xf32> to vector<4xf32>
    %62 = vector.shape_cast %61 : vector<4xf32> to vector<1x4xf32>
    %cst_74 = arith.constant 3.906250e-03 : f32
    %63 = vector.broadcast %cst_74 : f32 to vector<1x4xf32>
    %64 = arith.mulf %62, %63 : vector<1x4xf32>
    %65 = arith.mulf %60, %60 : vector<256x4xf32>
    %cst_75 = arith.constant dense<0.000000e+00> : vector<4xf32>
    %66 = vector.multi_reduction <add>, %65, %cst_75 [0] : vector<256x4xf32> to vector<4xf32>
    %67 = vector.shape_cast %66 : vector<4xf32> to vector<1x4xf32>
    %cst_76 = arith.constant 3.906250e-03 : f32
    %68 = vector.broadcast %cst_76 : f32 to vector<1x4xf32>
    %69 = arith.mulf %67, %68 : vector<1x4xf32>
    %70 = arith.mulf %64, %64 : vector<1x4xf32>
    %71 = arith.subf %69, %70 : vector<1x4xf32>
    %72 = vector.broadcast %64 : vector<1x4xf32> to vector<256x4xf32>
    %73 = arith.subf %60, %72 : vector<256x4xf32>
    %cst_77 = arith.constant 9.99999974E-6 : f32
    %74 = vector.broadcast %cst_77 : f32 to vector<1x4xf32>
    %75 = arith.addf %71, %74 : vector<1x4xf32>
    %76 = math.rsqrt %75 : vector<1x4xf32>
    %77 = vector.broadcast %76 : vector<1x4xf32> to vector<256x4xf32>
    %78 = arith.mulf %73, %77 : vector<256x4xf32>
    %cst_78 = arith.constant 0.000000e+00 : f32
    %79 = vector.broadcast %cst_78 : f32 to vector<256x4xf32>
    %80 = arith.maximumf %78, %79 : vector<256x4xf32>
    %81 = vector.shape_cast %80 : vector<256x4xf32> to vector<16x16x4xf32>
    %c1_79 = arith.constant 1 : index
    %c1_80 = arith.constant 1 : index
    %c0_81 = arith.constant 0 : index
    %82 = vector.load %arg6[%c1_79, %c1_80, %c0_81] : memref<18x18x4xf32, #tpu.memory_space<vmem>>, vector<16x16x4xf32>
    tpu.vector_store %arg6[%c1_79, %c1_80, %c0_81], %81 {strides = array<i32>} : memref<18x18x4xf32, #tpu.memory_space<vmem>>, vector<16x16x4xf32>,
    %83 = vector.extract_strided_slice %81 {offsets = [1, 0, 0], sizes = [1, 16, 4], strides = [1, 1, 1]} : vector<16x16x4xf32> to vector<1x16x4xf32>
    %c0_82 = arith.constant 0 : index
    %c1_83 = arith.constant 1 : index
    %c0_84 = arith.constant 0 : index
    %84 = vector.load %arg6[%c0_82, %c1_83, %c0_84] : memref<18x18x4xf32, #tpu.memory_space<vmem>>, vector<1x16x4xf32>
    tpu.vector_store %arg6[%c0_82, %c1_83, %c0_84], %83 {strides = array<i32>} : memref<18x18x4xf32, #tpu.memory_space<vmem>>, vector<1x16x4xf32>,
    %85 = vector.extract_strided_slice %81 {offsets = [14, 0, 0], sizes = [1, 16, 4], strides = [1, 1, 1]} : vector<16x16x4xf32> to vector<1x16x4xf32>
    %c17_85 = arith.constant 17 : index
    %c1_86 = arith.constant 1 : index
    %c0_87 = arith.constant 0 : index
    %86 = vector.load %arg6[%c17_85, %c1_86, %c0_87] : memref<18x18x4xf32, #tpu.memory_space<vmem>>, vector<1x16x4xf32>
    tpu.vector_store %arg6[%c17_85, %c1_86, %c0_87], %85 {strides = array<i32>} : memref<18x18x4xf32, #tpu.memory_space<vmem>>, vector<1x16x4xf32>,
    %c0_88 = arith.constant 0 : index
    %c2_89 = arith.constant 2 : index
    %c0_90 = arith.constant 0 : index
    %87 = vector.load %arg6[%c0_88, %c2_89, %c0_90] : memref<18x18x4xf32, #tpu.memory_space<vmem>>, vector<18x1x4xf32>
    %c0_91 = arith.constant 0 : index
    %c0_92 = arith.constant 0 : index
    %c0_93 = arith.constant 0 : index
    %88 = vector.load %arg6[%c0_91, %c0_92, %c0_93] : memref<18x18x4xf32, #tpu.memory_space<vmem>>, vector<18x1x4xf32>
    tpu.vector_store %arg6[%c0_91, %c0_92, %c0_93], %87 {strides = array<i32>} : memref<18x18x4xf32, #tpu.memory_space<vmem>>, vector<18x1x4xf32>,
    %c0_94 = arith.constant 0 : index
    %c15_95 = arith.constant 15 : index
    %c0_96 = arith.constant 0 : index
    %89 = vector.load %arg6[%c0_94, %c15_95, %c0_96] : memref<18x18x4xf32, #tpu.memory_space<vmem>>, vector<18x1x4xf32>
    %c0_97 = arith.constant 0 : index
    %c17_98 = arith.constant 17 : index
    %c0_99 = arith.constant 0 : index
    %90 = vector.load %arg6[%c0_97, %c17_98, %c0_99] : memref<18x18x4xf32, #tpu.memory_space<vmem>>, vector<18x1x4xf32>
    tpu.vector_store %arg6[%c0_97, %c17_98, %c0_99], %89 {strides = array<i32>} : memref<18x18x4xf32, #tpu.memory_space<vmem>>, vector<18x1x4xf32>,
    %c0_100 = arith.constant 0 : index
    %c0_101 = arith.constant 0 : index
    %c0_102 = arith.constant 0 : index
    %91 = vector.load %arg6[%c0_100, %c0_101, %c0_102] : memref<18x18x4xf32, #tpu.memory_space<vmem>>, vector<18x16x4xf32>
    %92 = vector.shape_cast %91 : vector<18x16x4xf32> to vector<288x4xf32>
    %93 = vector.extract_strided_slice %92 {offsets = [0, 0], sizes = [256, 4], strides = [1, 1]} : vector<288x4xf32> to vector<256x4xf32>
    %c0_103 = arith.constant 0 : index
    %c0_104 = arith.constant 0 : index
    %c0_105 = arith.constant 0 : index
    %c0_106 = arith.constant 0 : index
    %94 = vector.load %arg3[%c0_103, %c0_104, %c0_105, %c0_106] : memref<3x3x4x4xf32, #tpu.memory_space<vmem>>, vector<1x1x4x4xf32>
    %95 = vector.shape_cast %94 : vector<1x1x4x4xf32> to vector<4x4xf32>
    %cst_107 = arith.constant dense<0.000000e+00> : vector<256x4xf32>
    %96 = tpu.matmul %93, %95, %cst_107 {dimension_numbers = #tpu.dot_dimension_numbers<[1], [0], [0], [1], [0, 0, 1, 1], [], []>} : vector<256x4xf32>, vector<4x4xf32>, vector<256x4xf32> -> vector<256x4xf32>
    %97 = vector.extract_strided_slice %92 {offsets = [16, 0], sizes = [256, 4], strides = [1, 1]} : vector<288x4xf32> to vector<256x4xf32>
    %c1_108 = arith.constant 1 : index
    %c0_109 = arith.constant 0 : index
    %c0_110 = arith.constant 0 : index
    %c0_111 = arith.constant 0 : index
    %98 = vector.load %arg3[%c1_108, %c0_109, %c0_110, %c0_111] : memref<3x3x4x4xf32, #tpu.memory_space<vmem>>, vector<1x1x4x4xf32>
    %99 = vector.shape_cast %98 : vector<1x1x4x4xf32> to vector<4x4xf32>
    %cst_112 = arith.constant dense<0.000000e+00> : vector<256x4xf32>
    %100 = tpu.matmul %97, %99, %cst_112 {dimension_numbers = #tpu.dot_dimension_numbers<[1], [0], [0], [1], [0, 0, 1, 1], [], []>} : vector<256x4xf32>, vector<4x4xf32>, vector<256x4xf32> -> vector<256x4xf32>
    %101 = arith.addf %96, %100 : vector<256x4xf32>
    %102 = vector.extract_strided_slice %92 {offsets = [32, 0], sizes = [256, 4], strides = [1, 1]} : vector<288x4xf32> to vector<256x4xf32>
    %c2_113 = arith.constant 2 : index
    %c0_114 = arith.constant 0 : index
    %c0_115 = arith.constant 0 : index
    %c0_116 = arith.constant 0 : index
    %103 = vector.load %arg3[%c2_113, %c0_114, %c0_115, %c0_116] : memref<3x3x4x4xf32, #tpu.memory_space<vmem>>, vector<1x1x4x4xf32>
    %104 = vector.shape_cast %103 : vector<1x1x4x4xf32> to vector<4x4xf32>
    %cst_117 = arith.constant dense<0.000000e+00> : vector<256x4xf32>
    %105 = tpu.matmul %102, %104, %cst_117 {dimension_numbers = #tpu.dot_dimension_numbers<[1], [0], [0], [1], [0, 0, 1, 1], [], []>} : vector<256x4xf32>, vector<4x4xf32>, vector<256x4xf32> -> vector<256x4xf32>
    %106 = arith.addf %101, %105 : vector<256x4xf32>
    %c0_118 = arith.constant 0 : index
    %c1_119 = arith.constant 1 : index
    %c0_120 = arith.constant 0 : index
    %107 = vector.load %arg6[%c0_118, %c1_119, %c0_120] : memref<18x18x4xf32, #tpu.memory_space<vmem>>, vector<18x16x4xf32>
    %108 = vector.shape_cast %107 : vector<18x16x4xf32> to vector<288x4xf32>
    %109 = vector.extract_strided_slice %108 {offsets = [0, 0], sizes = [256, 4], strides = [1, 1]} : vector<288x4xf32> to vector<256x4xf32>
    %c0_121 = arith.constant 0 : index
    %c1_122 = arith.constant 1 : index
    %c0_123 = arith.constant 0 : index
    %c0_124 = arith.constant 0 : index
    %110 = vector.load %arg3[%c0_121, %c1_122, %c0_123, %c0_124] : memref<3x3x4x4xf32, #tpu.memory_space<vmem>>, vector<1x1x4x4xf32>
    %111 = vector.shape_cast %110 : vector<1x1x4x4xf32> to vector<4x4xf32>
    %cst_125 = arith.constant dense<0.000000e+00> : vector<256x4xf32>
    %112 = tpu.matmul %109, %111, %cst_125 {dimension_numbers = #tpu.dot_dimension_numbers<[1], [0], [0], [1], [0, 0, 1, 1], [], []>} : vector<256x4xf32>, vector<4x4xf32>, vector<256x4xf32> -> vector<256x4xf32>
    %113 = arith.addf %106, %112 : vector<256x4xf32>
    %114 = vector.extract_strided_slice %108 {offsets = [16, 0], sizes = [256, 4], strides = [1, 1]} : vector<288x4xf32> to vector<256x4xf32>
    %c1_126 = arith.constant 1 : index
    %c1_127 = arith.constant 1 : index
    %c0_128 = arith.constant 0 : index
    %c0_129 = arith.constant 0 : index
    %115 = vector.load %arg3[%c1_126, %c1_127, %c0_128, %c0_129] : memref<3x3x4x4xf32, #tpu.memory_space<vmem>>, vector<1x1x4x4xf32>
    %116 = vector.shape_cast %115 : vector<1x1x4x4xf32> to vector<4x4xf32>
    %cst_130 = arith.constant dense<0.000000e+00> : vector<256x4xf32>
    %117 = tpu.matmul %114, %116, %cst_130 {dimension_numbers = #tpu.dot_dimension_numbers<[1], [0], [0], [1], [0, 0, 1, 1], [], []>} : vector<256x4xf32>, vector<4x4xf32>, vector<256x4xf32> -> vector<256x4xf32>
    %118 = arith.addf %113, %117 : vector<256x4xf32>
    %119 = vector.extract_strided_slice %108 {offsets = [32, 0], sizes = [256, 4], strides = [1, 1]} : vector<288x4xf32> to vector<256x4xf32>
    %c2_131 = arith.constant 2 : index
    %c1_132 = arith.constant 1 : index
    %c0_133 = arith.constant 0 : index
    %c0_134 = arith.constant 0 : index
    %120 = vector.load %arg3[%c2_131, %c1_132, %c0_133, %c0_134] : memref<3x3x4x4xf32, #tpu.memory_space<vmem>>, vector<1x1x4x4xf32>
    %121 = vector.shape_cast %120 : vector<1x1x4x4xf32> to vector<4x4xf32>
    %cst_135 = arith.constant dense<0.000000e+00> : vector<256x4xf32>
    %122 = tpu.matmul %119, %121, %cst_135 {dimension_numbers = #tpu.dot_dimension_numbers<[1], [0], [0], [1], [0, 0, 1, 1], [], []>} : vector<256x4xf32>, vector<4x4xf32>, vector<256x4xf32> -> vector<256x4xf32>
    %123 = arith.addf %118, %122 : vector<256x4xf32>
    %c0_136 = arith.constant 0 : index
    %c2_137 = arith.constant 2 : index
    %c0_138 = arith.constant 0 : index
    %124 = vector.load %arg6[%c0_136, %c2_137, %c0_138] : memref<18x18x4xf32, #tpu.memory_space<vmem>>, vector<18x16x4xf32>
    %125 = vector.shape_cast %124 : vector<18x16x4xf32> to vector<288x4xf32>
    %126 = vector.extract_strided_slice %125 {offsets = [0, 0], sizes = [256, 4], strides = [1, 1]} : vector<288x4xf32> to vector<256x4xf32>
    %c0_139 = arith.constant 0 : index
    %c2_140 = arith.constant 2 : index
    %c0_141 = arith.constant 0 : index
    %c0_142 = arith.constant 0 : index
    %127 = vector.load %arg3[%c0_139, %c2_140, %c0_141, %c0_142] : memref<3x3x4x4xf32, #tpu.memory_space<vmem>>, vector<1x1x4x4xf32>
    %128 = vector.shape_cast %127 : vector<1x1x4x4xf32> to vector<4x4xf32>
    %cst_143 = arith.constant dense<0.000000e+00> : vector<256x4xf32>
    %129 = tpu.matmul %126, %128, %cst_143 {dimension_numbers = #tpu.dot_dimension_numbers<[1], [0], [0], [1], [0, 0, 1, 1], [], []>} : vector<256x4xf32>, vector<4x4xf32>, vector<256x4xf32> -> vector<256x4xf32>
    %130 = arith.addf %123, %129 : vector<256x4xf32>
    %131 = vector.extract_strided_slice %125 {offsets = [16, 0], sizes = [256, 4], strides = [1, 1]} : vector<288x4xf32> to vector<256x4xf32>
    %c1_144 = arith.constant 1 : index
    %c2_145 = arith.constant 2 : index
    %c0_146 = arith.constant 0 : index
    %c0_147 = arith.constant 0 : index
    %132 = vector.load %arg3[%c1_144, %c2_145, %c0_146, %c0_147] : memref<3x3x4x4xf32, #tpu.memory_space<vmem>>, vector<1x1x4x4xf32>
    %133 = vector.shape_cast %132 : vector<1x1x4x4xf32> to vector<4x4xf32>
    %cst_148 = arith.constant dense<0.000000e+00> : vector<256x4xf32>
    %134 = tpu.matmul %131, %133, %cst_148 {dimension_numbers = #tpu.dot_dimension_numbers<[1], [0], [0], [1], [0, 0, 1, 1], [], []>} : vector<256x4xf32>, vector<4x4xf32>, vector<256x4xf32> -> vector<256x4xf32>
    %135 = arith.addf %130, %134 : vector<256x4xf32>
    %136 = vector.extract_strided_slice %125 {offsets = [32, 0], sizes = [256, 4], strides = [1, 1]} : vector<288x4xf32> to vector<256x4xf32>
    %c2_149 = arith.constant 2 : index
    %c2_150 = arith.constant 2 : index
    %c0_151 = arith.constant 0 : index
    %c0_152 = arith.constant 0 : index
    %137 = vector.load %arg3[%c2_149, %c2_150, %c0_151, %c0_152] : memref<3x3x4x4xf32, #tpu.memory_space<vmem>>, vector<1x1x4x4xf32>
    %138 = vector.shape_cast %137 : vector<1x1x4x4xf32> to vector<4x4xf32>
    %cst_153 = arith.constant dense<0.000000e+00> : vector<256x4xf32>
    %139 = tpu.matmul %136, %138, %cst_153 {dimension_numbers = #tpu.dot_dimension_numbers<[1], [0], [0], [1], [0, 0, 1, 1], [], []>} : vector<256x4xf32>, vector<4x4xf32>, vector<256x4xf32> -> vector<256x4xf32>
    %140 = arith.addf %135, %139 : vector<256x4xf32>
    %cst_154 = arith.constant dense<0.000000e+00> : vector<4xf32>
    %141 = vector.multi_reduction <add>, %140, %cst_154 [0] : vector<256x4xf32> to vector<4xf32>
    %142 = vector.shape_cast %141 : vector<4xf32> to vector<1x4xf32>
    %cst_155 = arith.constant 3.906250e-03 : f32
    %143 = vector.broadcast %cst_155 : f32 to vector<1x4xf32>
    %144 = arith.mulf %142, %143 : vector<1x4xf32>
    %145 = arith.mulf %140, %140 : vector<256x4xf32>
    %cst_156 = arith.constant dense<0.000000e+00> : vector<4xf32>
    %146 = vector.multi_reduction <add>, %145, %cst_156 [0] : vector<256x4xf32> to vector<4xf32>
    %147 = vector.shape_cast %146 : vector<4xf32> to vector<1x4xf32>
    %cst_157 = arith.constant 3.906250e-03 : f32
    %148 = vector.broadcast %cst_157 : f32 to vector<1x4xf32>
    %149 = arith.mulf %147, %148 : vector<1x4xf32>
    %150 = arith.mulf %144, %144 : vector<1x4xf32>
    %151 = arith.subf %149, %150 : vector<1x4xf32>
    %152 = vector.broadcast %144 : vector<1x4xf32> to vector<256x4xf32>
    %153 = arith.subf %140, %152 : vector<256x4xf32>
    %cst_158 = arith.constant 9.99999974E-6 : f32
    %154 = vector.broadcast %cst_158 : f32 to vector<1x4xf32>
    %155 = arith.addf %151, %154 : vector<1x4xf32>
    %156 = math.rsqrt %155 : vector<1x4xf32>
    %157 = vector.broadcast %156 : vector<1x4xf32> to vector<256x4xf32>
    %158 = arith.mulf %153, %157 : vector<256x4xf32>
    %159 = vector.shape_cast %158 : vector<256x4xf32> to vector<16x16x4xf32>
    %160 = arith.addf %1, %159 : vector<16x16x4xf32>
    %c0_159 = arith.constant 0 : index
    %c0_160 = arith.constant 0 : index
    %c0_161 = arith.constant 0 : index
    %c0_162 = arith.constant 0 : index
    %161 = vector.load %arg4[%c0_159, %c0_160, %c0_161, %c0_162] : memref<1x16x16x4xf32, #tpu.memory_space<vmem>>, vector<1x16x16x4xf32>
    %162 = vector.shape_cast %161 : vector<1x16x16x4xf32> to vector<16x16x4xf32>
    %163 = vector.shape_cast %160 : vector<16x16x4xf32> to vector<1x16x16x4xf32>
    tpu.vector_store %arg4[%c0_159, %c0_160, %c0_161, %c0_162], %163 {strides = array<i32>} : memref<1x16x16x4xf32, #tpu.memory_space<vmem>>, vector<1x16x16x4xf32>,
    return
  }
  func.func @transform_0(%arg0: i32) -> (i32, i32, i32, i32) {
    %c0_i32 = arith.constant 0 : i32
    %c0_i32_0 = arith.constant 0 : i32
    %c0_i32_1 = arith.constant 0 : i32
    %c0_i32_2 = arith.constant 0 : i32
    return %arg0, %c0_i32, %c0_i32_0, %c0_i32_1 : i32, i32, i32, i32
  }
  func.func @transform_1(%arg0: i32) -> (i32, i32, i32, i32) {
    %c0_i32 = arith.constant 0 : i32
    %c0_i32_0 = arith.constant 0 : i32
    %c0_i32_1 = arith.constant 0 : i32
    %c0_i32_2 = arith.constant 0 : i32
    %c0_i32_3 = arith.constant 0 : i32
    return %c0_i32, %c0_i32_0, %c0_i32_1, %c0_i32_2 : i32, i32, i32, i32
  }
  func.func @transform_2(%arg0: i32) -> (i32, i32, i32, i32) {
    %c0_i32 = arith.constant 0 : i32
    %c0_i32_0 = arith.constant 0 : i32
    %c0_i32_1 = arith.constant 0 : i32
    %c0_i32_2 = arith.constant 0 : i32
    %c0_i32_3 = arith.constant 0 : i32
    return %c0_i32, %c0_i32_0, %c0_i32_1, %c0_i32_2 : i32, i32, i32, i32
  }
  func.func @transform_3(%arg0: i32) -> (i32, i32, i32, i32) {
    %c0_i32 = arith.constant 0 : i32
    %c0_i32_0 = arith.constant 0 : i32
    %c0_i32_1 = arith.constant 0 : i32
    %c0_i32_2 = arith.constant 0 : i32
    return %arg0, %c0_i32, %c0_i32_0, %c0_i32_1 : i32, i32, i32, i32
  }
}

</mosaic_0001>

<llo_original>
// kernel: residual_block.1
$region0: #{residual_block.1}
  #allocation0 [shape = 'u32[]', space=smem, size = 0x4, offset = 0x4, fixed_abs, tag = 'smem constant byte address 0x4 - core index']
  #allocation1 [shape = 'u32[72,128]{1,0:T(1,128)}', space=vmem, size = 0x9000, scoped, tag = 'internal scratch']
  #allocation2 [shape = 'f32[18,18,4]{2,1,0:T(8,128)}', space=vmem, size = 0x36000, scoped, tag = 'scratch operand']
  #allocation3 [shape = 'f32[18,18,4]{2,1,0:T(8,128)}', space=vmem, size = 0x36000, scoped, tag = 'scratch operand']
  %s0 = inlined_call_operand.vmem [shape: f32[2,16,16,4], index: 0, kind: input, shape index: {}]
  %s1 = inlined_call_operand.vmem [shape: f32[3,3,4,4], index: 1, kind: input, shape index: {}]
  %s2 = inlined_call_operand.vmem [shape: f32[3,3,4,4], index: 2, kind: input, shape index: {}]
  %s3 = inlined_call_operand.vmem [shape: f32[2,16,16,4], index: 3, kind: output, shape index: {}]
  %s4 = sld [smem:[#allocation0]]
  $region45: #{residual_block.1} parent=0
    _
  %s6 = ssub.s32 1, %s4
  %s7 = scalar_select 0, %s6, %s4
  loop: start=0, step=1, limit=4
  $region2: #{residual_block.1} parent=0 // loop_pre_header
    _
  $region3: #{residual_block.1} parent=0 // loop_header
    %s9 = sphi 0, %s13
    %p10 = scmp.ge.s32.totalorder %s9, 4
    %s19 = sphi 0, %s21
    %s22 = sphi 0, %s19
    %s23 = sphi 0, %s22
    %s39 = sphi 0, %s23
    %s43 = sphi 0, %s43
    %s45 = sphi 0, %s43
    %s46 = sphi 0, %s45
    %s60 = sphi 0, %s46
    %s64 = sphi 0, %s64
    %s66 = sphi 0, %s64
    %s67 = sphi 0, %s66
    %s81 = sphi 0, %s67
    %s87 = sphi 0, %s89
    %s90 = sphi 0, %s87
    %s91 = sphi 0, %s90
    %s107 = sphi 0, %s91
  $region4: #{residual_block.1} parent=0 // loop_header_branch
    %12 = sbr.rel (%p10) target = $region8
  $region5: #{residual_block.1} parent=0 // loop_body
    %s14 = ssub.s32 %s9, 1
    %s15 = ssub.s32 %s9, 2
    %s16 = sadd.s32 %s9, 1
    %s17 = ssub.s32 %s9, %s16
    %p18 = scmp.eq.s32.totalorder %s17, 0
    %s20 = sadd.s32 %s19, 1
    %s21 = scalar_select %p18, %s19, %s20
    %p24 = pneg %p18
    %p25 = scmp.eq.s32.totalorder %s9, 1
    %p26 = por %p24, %p25
    %p27 = scmp.ne.s32.totalorder %s19, %s22
    %p28 = scmp.eq.s32.totalorder %s9, 0
    %p29 = por %p27, %p28
    %p30 = scmp.ne.s32.totalorder %s19, %s22
    %p31 = scmp.eq.s32.totalorder %s14, 1
    %p32 = por %p30, %p31
    %p33 = scmp.ne.s32.totalorder %s22, %s23
    %p34 = scmp.eq.s32.totalorder %s14, 0
    %p35 = por %p33, %p34
    %p36 = scmp.ne.s32.totalorder %s22, %s23
    %p37 = scmp.eq.s32.totalorder %s15, 1
    %p38 = por %p36, %p37
    %p40 = scmp.ne.s32.totalorder %s23, %s39
    %p41 = scmp.eq.s32.totalorder %s15, 0
    %p42 = por %p40, %p41
    %s44 = sadd.s32 %s43, 1
    %p47 = scmp.eq.s32.totalorder %s9, 1
    %p48 = scmp.ne.s32.totalorder %s43, %s45
    %p49 = scmp.eq.s32.totalorder %s9, 0
    %p50 = por %p48, %p49
    %p51 = scmp.ne.s32.totalorder %s43, %s45
    %p52 = scmp.eq.s32.totalorder %s14, 1
    %p53 = por %p51, %p52
    %p54 = scmp.ne.s32.totalorder %s45, %s46
    %p55 = scmp.eq.s32.totalorder %s14, 0
    %p56 = por %p54, %p55
    %p57 = scmp.ne.s32.totalorder %s45, %s46
    %p58 = scmp.eq.s32.totalorder %s15, 1
    %p59 = por %p57, %p58
    %p61 = scmp.ne.s32.totalorder %s46, %s60
    %p62 = scmp.eq.s32.totalorder %s15, 0
    %p63 = por %p61, %p62
    %s65 = sadd.s32 %s64, 1
    %p68 = scmp.eq.s32.totalorder %s9, 1
    %p69 = scmp.ne.s32.totalorder %s64, %s66
    %p70 = scmp.eq.s32.totalorder %s9, 0
    %p71 = por %p69, %p70
    %p72 = scmp.ne.s32.totalorder %s64, %s66
    %p73 = scmp.eq.s32.totalorder %s14, 1
    %p74 = por %p72, %p73
    %p75 = scmp.ne.s32.totalorder %s66, %s67
    %p76 = scmp.eq.s32.totalorder %s14, 0
    %p77 = por %p75, %p76
    %p78 = scmp.ne.s32.totalorder %s66, %s67
    %p79 = scmp.eq.s32.totalorder %s15, 1
    %p80 = por %p78, %p79
    %p82 = scmp.ne.s32.totalorder %s67, %s81
    %p83 = scmp.eq.s32.totalorder %s15, 0
    %p84 = por %p82, %p83
    %s85 = ssub.s32 %s9, %s16
    %p86 = scmp.eq.s32.totalorder %s85, 0
    %s88 = sadd.s32 %s87, 1
    %s89 = scalar_select %p86, %s87, %s88
    %p92 = pneg %p86
    %p93 = scmp.eq.s32.totalorder %s9, 1
    %p94 = por %p92, %p93
    %p95 = scmp.ne.s32.totalorder %s87, %s90
    %p96 = scmp.eq.s32.totalorder %s9, 0
    %p97 = por %p95, %p96
    %p98 = scmp.ne.s32.totalorder %s87, %s90
    %p99 = scmp.eq.s32.totalorder %s14, 1
    %p100 = por %p98, %p99
    %p101 = scmp.ne.s32.totalorder %s90, %s91
    %p102 = scmp.eq.s32.totalorder %s14, 0
    %p103 = por %p101, %p102
    %p104 = scmp.ne.s32.totalorder %s90, %s91
    %p105 = scmp.eq.s32.totalorder %s15, 1
    %p106 = por %p104, %p105
    %p108 = scmp.ne.s32.totalorder %s91, %s107
    %p109 = scmp.eq.s32.totalorder %s15, 0
    %p110 = por %p108, %p109
    %p111 = scmp.le.s32.totalorder 1, %s9
    %p112 = scmp.lt.s32.totalorder %s9, 3
    %p113 = pnand %p111, %p112
    %p114 = pneg %p113
    // Predicated region
    $region9: #{residual_block.1} parent=5 // pred_check
      _
    $region10: #{residual_block.1} parent=5 // pred_check_branch
      %116 = sbr.rel (%p113) target = $region12
    $region11: #{residual_block.1} parent=5 // pred_region
      %s117 = ssub.s32 %s9, 1
      // Predicated region
      $region13: #{residual_block.1} parent=11 // pred_check
        %p118 = pneg %p56
      $region14: #{residual_block.1} parent=11 // pred_check_branch
        %120 = sbr.rel (%p118) target = $region16
      $region15: #{residual_block.1} parent=11 // pred_region
        _
      $region16: #{residual_block.1} parent=11 // pred_fallthru
        _
      // Predicated region
      $region17: #{residual_block.1} parent=11 // pred_check
        %p121 = pneg %p77
      $region18: #{residual_block.1} parent=11 // pred_check_branch
        %123 = sbr.rel (%p121) target = $region20
      $region19: #{residual_block.1} parent=11 // pred_region
        _
      $region20: #{residual_block.1} parent=11 // pred_fallthru
        _
    $region12: #{residual_block.1} parent=5 // pred_fallthru
      _
    %p124 = scmp.lt.s32.totalorder %s9, 2
    // Predicated region
    $region21: #{residual_block.1} parent=5 // pred_check
      %p125 = pneg %p124
    $region22: #{residual_block.1} parent=5 // pred_check_branch
      %127 = sbr.rel (%p125) target = $region24
    $region23: #{residual_block.1} parent=5 // pred_region
      // Predicated region
      $region25: #{residual_block.1} parent=23 // pred_check
        %p128 = pneg %p29
      $region26: #{residual_block.1} parent=23 // pred_check_branch
        %130 = sbr.rel (%p128) target = $region28
      $region27: #{residual_block.1} parent=23 // pred_region
        %p131 = scmp.lt.s32.totalorder %s9, 1
        %s132 = scalar_select %p131, %s9, 1
        %s133 = smul.addr %s132, 32
        %s134 = smul.addr %s133, 8
        %s135 = scalar_lea.vmem %s0, %s134
      $region28: #{residual_block.1} parent=23 // pred_fallthru
        _
    $region24: #{residual_block.1} parent=5 // pred_fallthru
      _
    %p136 = scmp.le.s32.totalorder 1, %s9
    %p137 = scmp.lt.s32.totalorder %s9, 3
    %p138 = pnand %p136, %p137
    %p139 = pneg %p138
    // Predicated region
    $region29: #{residual_block.1} parent=5 // pred_check
      _
    $region30: #{residual_block.1} parent=5 // pred_check_branch
      %141 = sbr.rel (%p138) target = $region32
    $region31: #{residual_block.1} parent=5 // pred_region
      %s142 = ssub.s32 %s9, 1
      %p143 = scmp.lt.s32.totalorder %s14, 1
      %s144 = scalar_select %p143, %s14, 1
      %s145 = smul.addr %s144, 32
      %s146 = smul.addr %s145, 8
      %s147 = scalar_lea.vmem %s0, %s146
      %p148 = pneg %p35
      %p149 = pneg %p32
      %p150 = pneg %p56
      %p151 = pneg %p53
      %p152 = pneg %p77
      %p153 = pneg %p74
      %p154 = pneg %p103
      %p155 = pneg %p100
      %p156 = scmp.lt.s32.totalorder %s14, 1
      %s157 = scalar_select %p156, %s14, 1
      %s158 = smul.addr %s157, 32
      %s159 = smul.addr %s158, 8
      %s160 = scalar_lea.vmem %s3, %s159
      %p161 = scmp.lt.s32.totalorder %s14, 1
      %s162 = scalar_select %p161, %s14, 1
      %s163 = smul.addr %s162, 32
      %s164 = smul.addr %s163, 8
      %s165 = scalar_lea.vmem %s0, %s164
      %p166 = scmp.lt.s32.totalorder %s14, 1
      %s167 = scalar_select %p166, %s14, 1
      %s168 = smul.addr %s167, 32
      %s169 = smul.addr %s168, 8
      %s170 = scalar_lea.vmem %s3, %s169
      %v171 = vld [vmem:[%s165] sm:$0xff]
      %v172 = vld [vmem:[%s165 + $0x8] sm:$0xff]
      %v173 = vld [vmem:[%s165 + $0x10] sm:$0xff]
      %v174 = vld [vmem:[%s165 + $0x18] sm:$0xff]
      %v175 = vld [vmem:[%s165 + $0x20] sm:$0xff]
      %v176 = vld [vmem:[%s165 + $0x28] sm:$0xff]
      %v177 = vld [vmem:[%s165 + $0x30] sm:$0xff]
      %v178 = vld [vmem:[%s165 + $0x38] sm:$0xff]
      %v179 = vld [vmem:[%s165 + $0x40] sm:$0xff]
      %v180 = vld [vmem:[%s165 + $0x48] sm:$0xff]
      %v181 = vld [vmem:[%s165 + $0x50] sm:$0xff]
      %v182 = vld [vmem:[%s165 + $0x58] sm:$0xff]
      %v183 = vld [vmem:[%s165 + $0x60] sm:$0xff]
      %v184 = vld [vmem:[%s165 + $0x68] sm:$0xff]
      %v185 = vld [vmem:[%s165 + $0x70] sm:$0xff]
      %v186 = vld [vmem:[%s165 + $0x78] sm:$0xff]
      %v187 = vld [vmem:[%s165 + $0x80] sm:$0xff]
      %v188 = vld [vmem:[%s165 + $0x88] sm:$0xff]
      %v189 = vld [vmem:[%s165 + $0x90] sm:$0xff]
      %v190 = vld [vmem:[%s165 + $0x98] sm:$0xff]
      %v191 = vld [vmem:[%s165 + $0xa0] sm:$0xff]
      %v192 = vld [vmem:[%s165 + $0xa8] sm:$0xff]
      %v193 = vld [vmem:[%s165 + $0xb0] sm:$0xff]
      %v194 = vld [vmem:[%s165 + $0xb8] sm:$0xff]
      %v195 = vld [vmem:[%s165 + $0xc0] sm:$0xff]
      %v196 = vld [vmem:[%s165 + $0xc8] sm:$0xff]
      %v197 = vld [vmem:[%s165 + $0xd0] sm:$0xff]
      %v198 = vld [vmem:[%s165 + $0xd8] sm:$0xff]
      %v199 = vld [vmem:[%s165 + $0xe0] sm:$0xff]
      %v200 = vld [vmem:[%s165 + $0xe8] sm:$0xff]
      %v201 = vld [vmem:[%s165 + $0xf0] sm:$0xff]
      %v202 = vld [vmem:[%s165 + $0xf8] sm:$0xff]
      %s203 = scalar_lea.vmem [#allocation2], 24
      %vm204 = vcmask 31744
      %205 = vst.msk [vmem:[%s203 + $0x1] sm:$0xff] %vm204, %v171
      %206 = vst.msk [vmem:[%s203 + $0x9] sm:$0xff] %vm204, %v172
      %207 = vst.msk [vmem:[%s203 + $0x19] sm:$0xff] %vm204, %v173
      %208 = vst.msk [vmem:[%s203 + $0x21] sm:$0xff] %vm204, %v174
      %209 = vst.msk [vmem:[%s203 + $0x31] sm:$0xff] %vm204, %v175
      %210 = vst.msk [vmem:[%s203 + $0x39] sm:$0xff] %vm204, %v176
      %211 = vst.msk [vmem:[%s203 + $0x49] sm:$0xff] %vm204, %v177
      %212 = vst.msk [vmem:[%s203 + $0x51] sm:$0xff] %vm204, %v178
      %213 = vst.msk [vmem:[%s203 + $0x61] sm:$0xff] %vm204, %v179
      %214 = vst.msk [vmem:[%s203 + $0x69] sm:$0xff] %vm204, %v180
      %215 = vst.msk [vmem:[%s203 + $0x79] sm:$0xff] %vm204, %v181
      %216 = vst.msk [vmem:[%s203 + $0x81] sm:$0xff] %vm204, %v182
      %217 = vst.msk [vmem:[%s203 + $0x91] sm:$0xff] %vm204, %v183
      %218 = vst.msk [vmem:[%s203 + $0x99] sm:$0xff] %vm204, %v184
      %219 = vst.msk [vmem:[%s203 + $0xa9] sm:$0xff] %vm204, %v185
      %220 = vst.msk [vmem:[%s203 + $0xb1] sm:$0xff] %vm204, %v186
      %221 = vst.msk [vmem:[%s203 + $0xc1] sm:$0xff] %vm204, %v187
      %222 = vst.msk [vmem:[%s203 + $0xc9] sm:$0xff] %vm204, %v188
      %223 = vst.msk [vmem:[%s203 + $0xd9] sm:$0xff] %vm204, %v189
      %224 = vst.msk [vmem:[%s203 + $0xe1] sm:$0xff] %vm204, %v190
      %225 = vst.msk [vmem:[%s203 + $0xf1] sm:$0xff] %vm204, %v191
      %226 = vst.msk [vmem:[%s203 + $0xf9] sm:$0xff] %vm204, %v192
      %227 = vst.msk [vmem:[%s203 + $0x109] sm:$0xff] %vm204, %v193
      %228 = vst.msk [vmem:[%s203 + $0x111] sm:$0xff] %vm204, %v194
      %229 = vst.msk [vmem:[%s203 + $0x121] sm:$0xff] %vm204, %v195
      %230 = vst.msk [vmem:[%s203 + $0x129] sm:$0xff] %vm204, %v196
      %231 = vst.msk [vmem:[%s203 + $0x139] sm:$0xff] %vm204, %v197
      %232 = vst.msk [vmem:[%s203 + $0x141] sm:$0xff] %vm204, %v198
      %233 = vst.msk [vmem:[%s203 + $0x151] sm:$0xff] %vm204, %v199
      %234 = vst.msk [vmem:[%s203 + $0x159] sm:$0xff] %vm204, %v200
      %235 = vst.msk [vmem:[%s203 + $0x169] sm:$0xff] %vm204, %v201
      %236 = vst.msk [vmem:[%s203 + $0x171] sm:$0xff] %vm204, %v202
      %237 = vst.msk [vmem:[#allocation2 + $0x1] sm:$0xff] %vm204, %v173
      %238 = vst.msk [vmem:[#allocation2 + $0x9] sm:$0xff] %vm204, %v174
      %s239 = scalar_lea.vmem [#allocation2], 408
      %240 = vst.msk [vmem:[%s239 + $0x1] sm:$0xff] %vm204, %v199
      %241 = vst.msk [vmem:[%s239 + $0x9] sm:$0xff] %vm204, %v200
      %v242 = vld [vmem:[#allocation2 + $0x2] sm:$0x1]
      %v243 = vld [vmem:[#allocation2 + $0x1a] sm:$0x1]
      %v244 = vld [vmem:[#allocation2 + $0x32] sm:$0x1]
      %v245 = vld [vmem:[#allocation2 + $0x4a] sm:$0x1]
      %v246 = vld [vmem:[#allocation2 + $0x62] sm:$0x1]
      %v247 = vld [vmem:[#allocation2 + $0x7a] sm:$0x1]
      %v248 = vld [vmem:[#allocation2 + $0x92] sm:$0x1]
      %v249 = vld [vmem:[#allocation2 + $0xaa] sm:$0x1]
      %v250 = vld [vmem:[#allocation2 + $0xc2] sm:$0x1]
      %v251 = vld [vmem:[#allocation2 + $0xda] sm:$0x1]
      %v252 = vld [vmem:[#allocation2 + $0xf2] sm:$0x1]
      %v253 = vld [vmem:[#allocation2 + $0x10a] sm:$0x1]
      %v254 = vld [vmem:[#allocation2 + $0x122] sm:$0x1]
      %v255 = vld [vmem:[#allocation2 + $0x13a] sm:$0x1]
      %v256 = vld [vmem:[#allocation2 + $0x152] sm:$0x1]
      %v257 = vld [vmem:[#allocation2 + $0x16a] sm:$0x1]
      %v258 = vld [vmem:[#allocation2 + $0x182] sm:$0x1]
      %v259 = vld [vmem:[#allocation2 + $0x19a] sm:$0x1]
      %vm260 = vcmask 24576
      %261 = vst.msk [vmem:[#allocation2] sm:$0x1] %vm260, %v242
      %262 = vst.msk [vmem:[#allocation2 + $0x18] sm:$0x1] %vm260, %v243
      %263 = vst.msk [vmem:[#allocation2 + $0x30] sm:$0x1] %vm260, %v244
      %264 = vst.msk [vmem:[#allocation2 + $0x48] sm:$0x1] %vm260, %v245
      %265 = vst.msk [vmem:[#allocation2 + $0x60] sm:$0x1] %vm260, %v246
      %266 = vst.msk [vmem:[#allocation2 + $0x78] sm:$0x1] %vm260, %v247
      %267 = vst.msk [vmem:[#allocation2 + $0x90] sm:$0x1] %vm260, %v248
      %268 = vst.msk [vmem:[#allocation2 + $0xa8] sm:$0x1] %vm260, %v249
      %269 = vst.msk [vmem:[#allocation2 + $0xc0] sm:$0x1] %vm260, %v250
      %270 = vst.msk [vmem:[#allocation2 + $0xd8] sm:$0x1] %vm260, %v251
      %271 = vst.msk [vmem:[#allocation2 + $0xf0] sm:$0x1] %vm260, %v252
      %272 = vst.msk [vmem:[#allocation2 + $0x108] sm:$0x1] %vm260, %v253
      %273 = vst.msk [vmem:[#allocation2 + $0x120] sm:$0x1] %vm260, %v254
      %274 = vst.msk [vmem:[#allocation2 + $0x138] sm:$0x1] %vm260, %v255
      %275 = vst.msk [vmem:[#allocation2 + $0x150] sm:$0x1] %vm260, %v256
      %276 = vst.msk [vmem:[#allocation2 + $0x168] sm:$0x1] %vm260, %v257
      %277 = vst.msk [vmem:[#allocation2 + $0x180] sm:$0x1] %vm260, %v258
      %278 = vst.msk [vmem:[#allocation2 + $0x198] sm:$0x1] %vm260, %v259
      %v279 = vld [vmem:[#allocation2 + $0xf] sm:$0x1]
      %v280 = vld [vmem:[#allocation2 + $0x27] sm:$0x1]
      %v281 = vld [vmem:[#allocation2 + $0x3f] sm:$0x1]
      %v282 = vld [vmem:[#allocation2 + $0x57] sm:$0x1]
      %v283 = vld [vmem:[#allocation2 + $0x6f] sm:$0x1]
      %v284 = vld [vmem:[#allocation2 + $0x87] sm:$0x1]
      %v285 = vld [vmem:[#allocation2 + $0x9f] sm:$0x1]
      %v286 = vld [vmem:[#allocation2 + $0xb7] sm:$0x1]
      %v287 = vld [vmem:[#allocation2 + $0xcf] sm:$0x1]
      %v288 = vld [vmem:[#allocation2 + $0xe7] sm:$0x1]
      %v289 = vld [vmem:[#allocation2 + $0xff] sm:$0x1]
      %v290 = vld [vmem:[#allocation2 + $0x117] sm:$0x1]
      %v291 = vld [vmem:[#allocation2 + $0x12f] sm:$0x1]
      %v292 = vld [vmem:[#allocation2 + $0x147] sm:$0x1]
      %v293 = vld [vmem:[#allocation2 + $0x15f] sm:$0x1]
      %v294 = vld [vmem:[#allocation2 + $0x177] sm:$0x1]
      %v295 = vld [vmem:[#allocation2 + $0x18f] sm:$0x1]
      %v296 = vld [vmem:[#allocation2 + $0x1a7] sm:$0x1]
      %297 = vst.msk [vmem:[#allocation2 + $0x11] sm:$0x1] %vm260, %v279
      %298 = vst.msk [vmem:[#allocation2 + $0x29] sm:$0x1] %vm260, %v280
      %299 = vst.msk [vmem:[#allocation2 + $0x41] sm:$0x1] %vm260, %v281
      %300 = vst.msk [vmem:[#allocation2 + $0x59] sm:$0x1] %vm260, %v282
      %301 = vst.msk [vmem:[#allocation2 + $0x71] sm:$0x1] %vm260, %v283
      %302 = vst.msk [vmem:[#allocation2 + $0x89] sm:$0x1] %vm260, %v284
      %303 = vst.msk [vmem:[#allocation2 + $0xa1] sm:$0x1] %vm260, %v285
      %304 = vst.msk [vmem:[#allocation2 + $0xb9] sm:$0x1] %vm260, %v286
      %305 = vst.msk [vmem:[#allocation2 + $0xd1] sm:$0x1] %vm260, %v287
      %306 = vst.msk [vmem:[#allocation2 + $0xe9] sm:$0x1] %vm260, %v288
      %307 = vst.msk [vmem:[#allocation2 + $0x101] sm:$0x1] %vm260, %v289
      %308 = vst.msk [vmem:[#allocation2 + $0x119] sm:$0x1] %vm260, %v290
      %309 = vst.msk [vmem:[#allocation2 + $0x131] sm:$0x1] %vm260, %v291
      %310 = vst.msk [vmem:[#allocation2 + $0x149] sm:$0x1] %vm260, %v292
      %311 = vst.msk [vmem:[#allocation2 + $0x161] sm:$0x1] %vm260, %v293
      %312 = vst.msk [vmem:[#allocation2 + $0x179] sm:$0x1] %vm260, %v294
      %313 = vst.msk [vmem:[#allocation2 + $0x191] sm:$0x1] %vm260, %v295
      %314 = vst.msk [vmem:[#allocation2 + $0x1a9] sm:$0x1] %vm260, %v296
      %v315 = vld [vmem:[#allocation2] sm:$0xff]
      %v316 = vld [vmem:[#allocation2 + $0x8] sm:$0xff]
      %v317 = vld [vmem:[#allocation2 + $0x18] sm:$0xff]
      %v318 = vld [vmem:[#allocation2 + $0x20] sm:$0xff]
      %v319 = vld [vmem:[#allocation2 + $0x30] sm:$0xff]
      %v320 = vld [vmem:[#allocation2 + $0x38] sm:$0xff]
      %v321 = vld [vmem:[#allocation2 + $0x48] sm:$0xff]
      %v322 = vld [vmem:[#allocation2 + $0x50] sm:$0xff]
      %v323 = vld [vmem:[#allocation2 + $0x60] sm:$0xff]
      %v324 = vld [vmem:[#allocation2 + $0x68] sm:$0xff]
      %v325 = vld [vmem:[#allocation2 + $0x78] sm:$0xff]
      %v326 = vld [vmem:[#allocation2 + $0x80] sm:$0xff]
      %v327 = vld [vmem:[#allocation2 + $0x90] sm:$0xff]
      %v328 = vld [vmem:[#allocation2 + $0x98] sm:$0xff]
      %v329 = vld [vmem:[#allocation2 + $0xa8] sm:$0xff]
      %v330 = vld [vmem:[#allocation2 + $0xb0] sm:$0xff]
      %v331 = vld [vmem:[#allocation2 + $0xc0] sm:$0xff]
      %v332 = vld [vmem:[#allocation2 + $0xc8] sm:$0xff]
      %v333 = vld [vmem:[#allocation2 + $0xd8] sm:$0xff]
      %v334 = vld [vmem:[#allocation2 + $0xe0] sm:$0xff]
      %v335 = vld [vmem:[#allocation2 + $0xf0] sm:$0xff]
      %v336 = vld [vmem:[#allocation2 + $0xf8] sm:$0xff]
      %v337 = vld [vmem:[#allocation2 + $0x108] sm:$0xff]
      %v338 = vld [vmem:[#allocation2 + $0x110] sm:$0xff]
      %v339 = vld [vmem:[#allocation2 + $0x120] sm:$0xff]
      %v340 = vld [vmem:[#allocation2 + $0x128] sm:$0xff]
      %v341 = vld [vmem:[#allocation2 + $0x138] sm:$0xff]
      %v342 = vld [vmem:[#allocation2 + $0x140] sm:$0xff]
      %v343 = vld [vmem:[#allocation2 + $0x150] sm:$0xff]
      %v344 = vld [vmem:[#allocation2 + $0x158] sm:$0xff]
      %v345 = vld [vmem:[#allocation2 + $0x168] sm:$0xff]
      %v346 = vld [vmem:[#allocation2 + $0x170] sm:$0xff]
      %v347 = vld [vmem:[#allocation2 + $0x180] sm:$0xff]
      %v348 = vld [vmem:[#allocation2 + $0x188] sm:$0xff]
      %v349 = vld [vmem:[#allocation2 + $0x198] sm:$0xff]
      %v350 = vld [vmem:[#allocation2 + $0x1a0] sm:$0xff]
      %v351 = vld [vmem:[%s1] sm:$0xf]
      %s352 = scalar_lea.vmem %s1, 12
      %v353 = vld [vmem:[%s352] sm:$0xf]
      %v355 = vsel %vm204, %v317, 0
      %v358 = vsel %vm204, %v318, 0
      %v361 = vsel %vm204, %v319, 0
      %v364 = vsel %vm204, %v320, 0
      %v367 = vsel %vm204, %v321, 0
      %v370 = vsel %vm204, %v322, 0
      %v373 = vsel %vm204, %v323, 0
      %v376 = vsel %vm204, %v324, 0
      %v379 = vsel %vm204, %v325, 0
      %v382 = vsel %vm204, %v326, 0
      %v385 = vsel %vm204, %v327, 0
      %v388 = vsel %vm204, %v328, 0
      %v391 = vsel %vm204, %v329, 0
      %v394 = vsel %vm204, %v330, 0
      %v397 = vsel %vm204, %v331, 0
      %v400 = vsel %vm204, %v332, 0
      %v403 = vsel %vm204, %v333, 0
      %v406 = vsel %vm204, %v334, 0
      %v409 = vsel %vm204, %v335, 0
      %v412 = vsel %vm204, %v336, 0
      %v415 = vsel %vm204, %v337, 0
      %v418 = vsel %vm204, %v338, 0
      %v421 = vsel %vm204, %v339, 0
      %v424 = vsel %vm204, %v340, 0
      %v427 = vsel %vm204, %v341, 0
      %v430 = vsel %vm204, %v342, 0
      %v433 = vsel %vm204, %v343, 0
      %v436 = vsel %vm204, %v344, 0
      %v439 = vsel %vm204, %v345, 0
      %v442 = vsel %vm204, %v346, 0
      %v445 = vsel %vm204, %v347, 0
      %v448 = vsel %vm204, %v348, 0
      %vm450 = vcmask 1043456
      %v452 = vsel %vm450, %v353, 0
      %454 = vmatpush.msra.mxu0 0.0
      %455 = vmatpush.msra.mxu0 0.0
      %456 = vmatpush.msra.mxu0 0.0
      %457 = vmatpush.msra.mxu0 0.0
      %458 = vmatpush.msra.mxu0 0.0
      %459 = vmatpush.msra.mxu0 0.0
      %460 = vmatpush.msra.mxu0 0.0
      %461 = vmatpush.msra.mxu0 0.0
      %462 = vmatpush.msra.mxu0 0.0
      %463 = vmatpush.msra.mxu0 0.0
      %464 = vmatpush.msra.mxu0 0.0
      %465 = vmatpush.msra.mxu0 0.0
      %466 = vmatpush.msra.mxu0 0.0
      %467 = vmatpush.msra.mxu0 0.0
      %468 = vmatpush.msra.mxu0 0.0
      %469 = vmatpush.msra.mxu0 %v452
      %470 = vmatmul.f32.gmra.mxu0 %v355
      %v471 = vpop.f32.mrf.mxu0
      %v472 = vadd.f32 0.0, %v471
      %473 = vmatmul.f32.gmra.mxu0 %v358
      %v474 = vpop.f32.mrf.mxu0
      %v475 = vadd.f32 0.0, %v474
      %476 = vmatmul.f32.gmra.mxu0 %v361
      %v477 = vpop.f32.mrf.mxu0
      %v478 = vadd.f32 0.0, %v477
      %479 = vmatmul.f32.gmra.mxu0 %v364
      %v480 = vpop.f32.mrf.mxu0
      %v481 = vadd.f32 0.0, %v480
      %482 = vmatmul.f32.gmra.mxu0 %v367
      %v483 = vpop.f32.mrf.mxu0
      %v484 = vadd.f32 0.0, %v483
      %485 = vmatmul.f32.gmra.mxu0 %v370
      %v486 = vpop.f32.mrf.mxu0
      %v487 = vadd.f32 0.0, %v486
      %488 = vmatmul.f32.gmra.mxu0 %v373
      %v489 = vpop.f32.mrf.mxu0
      %v490 = vadd.f32 0.0, %v489
      %491 = vmatmul.f32.gmra.mxu0 %v376
      %v492 = vpop.f32.mrf.mxu0
      %v493 = vadd.f32 0.0, %v492
      %494 = vmatmul.f32.gmra.mxu0 %v379
      %v495 = vpop.f32.mrf.mxu0
      %v496 = vadd.f32 0.0, %v495
      %497 = vmatmul.f32.gmra.mxu0 %v382
      %v498 = vpop.f32.mrf.mxu0
      %v499 = vadd.f32 0.0, %v498
      %500 = vmatmul.f32.gmra.mxu0 %v385
      %v501 = vpop.f32.mrf.mxu0
      %v502 = vadd.f32 0.0, %v501
      %503 = vmatmul.f32.gmra.mxu0 %v388
      %v504 = vpop.f32.mrf.mxu0
      %v505 = vadd.f32 0.0, %v504
      %506 = vmatmul.f32.gmra.mxu0 %v391
      %v507 = vpop.f32.mrf.mxu0
      %v508 = vadd.f32 0.0, %v507
      %509 = vmatmul.f32.gmra.mxu0 %v394
      %v510 = vpop.f32.mrf.mxu0
      %v511 = vadd.f32 0.0, %v510
      %512 = vmatmul.f32.gmra.mxu0 %v397
      %v513 = vpop.f32.mrf.mxu0
      %v514 = vadd.f32 0.0, %v513
      %515 = vmatmul.f32.gmra.mxu0 %v400
      %v516 = vpop.f32.mrf.mxu0
      %v517 = vadd.f32 0.0, %v516
      %518 = vmatmul.f32.gmra.mxu0 %v403
      %v519 = vpop.f32.mrf.mxu0
      %v520 = vadd.f32 0.0, %v519
      %521 = vmatmul.f32.gmra.mxu0 %v406
      %v522 = vpop.f32.mrf.mxu0
      %v523 = vadd.f32 0.0, %v522
      %524 = vmatmul.f32.gmra.mxu0 %v409
      %v525 = vpop.f32.mrf.mxu0
      %v526 = vadd.f32 0.0, %v525
      %527 = vmatmul.f32.gmra.mxu0 %v412
      %v528 = vpop.f32.mrf.mxu0
      %v529 = vadd.f32 0.0, %v528
      %530 = vmatmul.f32.gmra.mxu0 %v415
      %v531 = vpop.f32.mrf.mxu0
      %v532 = vadd.f32 0.0, %v531
      %533 = vmatmul.f32.gmra.mxu0 %v418
      %v534 = vpop.f32.mrf.mxu0
      %v535 = vadd.f32 0.0, %v534
      %536 = vmatmul.f32.gmra.mxu0 %v421
      %v537 = vpop.f32.mrf.mxu0
      %v538 = vadd.f32 0.0, %v537
      %539 = vmatmul.f32.gmra.mxu0 %v424
      %v540 = vpop.f32.mrf.mxu0
      %v541 = vadd.f32 0.0, %v540
      %542 = vmatmul.f32.gmra.mxu0 %v427
      %v543 = vpop.f32.mrf.mxu0
      %v544 = vadd.f32 0.0, %v543
      %545 = vmatmul.f32.gmra.mxu0 %v430
      %v546 = vpop.f32.mrf.mxu0
      %v547 = vadd.f32 0.0, %v546
      %548 = vmatmul.f32.gmra.mxu0 %v433
      %v549 = vpop.f32.mrf.mxu0
      %v550 = vadd.f32 0.0, %v549
      %551 = vmatmul.f32.gmra.mxu0 %v436
      %v552 = vpop.f32.mrf.mxu0
      %v553 = vadd.f32 0.0, %v552
      %554 = vmatmul.f32.gmra.mxu0 %v439
      %v555 = vpop.f32.mrf.mxu0
      %v556 = vadd.f32 0.0, %v555
      %557 = vmatmul.f32.gmra.mxu0 %v442
      %v558 = vpop.f32.mrf.mxu0
      %v559 = vadd.f32 0.0, %v558
      %560 = vmatmul.f32.gmra.mxu0 %v445
      %v561 = vpop.f32.mrf.mxu0
      %v562 = vadd.f32 0.0, %v561
      %563 = vmatmul.f32.gmra.mxu0 %v448
      %v564 = vpop.f32.mrf.mxu0
      %v565 = vadd.f32 0.0, %v564
      %566 = vdwg.mxu0
      %v568 = vsel %vm204, %v315, 0
      %v571 = vsel %vm204, %v316, 0
      %v574 = vsel %vm450, %v351, 0
      %576 = vmatpush.msra.mxu0 0.0
      %577 = vmatpush.msra.mxu0 0.0
      %578 = vmatpush.msra.mxu0 0.0
      %579 = vmatpush.msra.mxu0 0.0
      %580 = vmatpush.msra.mxu0 0.0
      %581 = vmatpush.msra.mxu0 0.0
      %582 = vmatpush.msra.mxu0 0.0
      %583 = vmatpush.msra.mxu0 0.0
      %584 = vmatpush.msra.mxu0 0.0
      %585 = vmatpush.msra.mxu0 0.0
      %586 = vmatpush.msra.mxu0 0.0
      %587 = vmatpush.msra.mxu0 0.0
      %588 = vmatpush.msra.mxu0 0.0
      %589 = vmatpush.msra.mxu0 0.0
      %590 = vmatpush.msra.mxu0 0.0
      %591 = vmatpush.msra.mxu0 %v574
      %592 = vmatmul.f32.gmra.mxu0 %v568
      %v593 = vpop.f32.mrf.mxu0
      %v594 = vadd.f32 %v472, %v593
      %595 = vmatmul.f32.gmra.mxu0 %v571
      %v596 = vpop.f32.mrf.mxu0
      %v597 = vadd.f32 %v475, %v596
      %598 = vmatmul.f32.gmra.mxu0 %v355
      %v599 = vpop.f32.mrf.mxu0
      %v600 = vadd.f32 %v478, %v599
      %601 = vmatmul.f32.gmra.mxu0 %v358
      %v602 = vpop.f32.mrf.mxu0
      %v603 = vadd.f32 %v481, %v602
      %604 = vmatmul.f32.gmra.mxu0 %v361
      %v605 = vpop.f32.mrf.mxu0
      %v606 = vadd.f32 %v484, %v605
      %607 = vmatmul.f32.gmra.mxu0 %v364
      %v608 = vpop.f32.mrf.mxu0
      %v609 = vadd.f32 %v487, %v608
      %610 = vmatmul.f32.gmra.mxu0 %v367
      %v611 = vpop.f32.mrf.mxu0
      %v612 = vadd.f32 %v490, %v611
      %613 = vmatmul.f32.gmra.mxu0 %v370
      %v614 = vpop.f32.mrf.mxu0
      %v615 = vadd.f32 %v493, %v614
      %616 = vmatmul.f32.gmra.mxu0 %v373
      %v617 = vpop.f32.mrf.mxu0
      %v618 = vadd.f32 %v496, %v617
      %619 = vmatmul.f32.gmra.mxu0 %v376
      %v620 = vpop.f32.mrf.mxu0
      %v621 = vadd.f32 %v499, %v620
      %622 = vmatmul.f32.gmra.mxu0 %v379
      %v623 = vpop.f32.mrf.mxu0
      %v624 = vadd.f32 %v502, %v623
      %625 = vmatmul.f32.gmra.mxu0 %v382
      %v626 = vpop.f32.mrf.mxu0
      %v627 = vadd.f32 %v505, %v626
      %628 = vmatmul.f32.gmra.mxu0 %v385
      %v629 = vpop.f32.mrf.mxu0
      %v630 = vadd.f32 %v508, %v629
      %631 = vmatmul.f32.gmra.mxu0 %v388
      %v632 = vpop.f32.mrf.mxu0
      %v633 = vadd.f32 %v511, %v632
      %634 = vmatmul.f32.gmra.mxu0 %v391
      %v635 = vpop.f32.mrf.mxu0
      %v636 = vadd.f32 %v514, %v635
      %637 = vmatmul.f32.gmra.mxu0 %v394
      %v638 = vpop.f32.mrf.mxu0
      %v639 = vadd.f32 %v517, %v638
      %640 = vmatmul.f32.gmra.mxu0 %v397
      %v641 = vpop.f32.mrf.mxu0
      %v642 = vadd.f32 %v520, %v641
      %643 = vmatmul.f32.gmra.mxu0 %v400
      %v644 = vpop.f32.mrf.mxu0
      %v645 = vadd.f32 %v523, %v644
      %646 = vmatmul.f32.gmra.mxu0 %v403
      %v647 = vpop.f32.mrf.mxu0
      %v648 = vadd.f32 %v526, %v647
      %649 = vmatmul.f32.gmra.mxu0 %v406
      %v650 = vpop.f32.mrf.mxu0
      %v651 = vadd.f32 %v529, %v650
      %652 = vmatmul.f32.gmra.mxu0 %v409
      %v653 = vpop.f32.mrf.mxu0
      %v654 = vadd.f32 %v532, %v653
      %655 = vmatmul.f32.gmra.mxu0 %v412
      %v656 = vpop.f32.mrf.mxu0
      %v657 = vadd.f32 %v535, %v656
      %658 = vmatmul.f32.gmra.mxu0 %v415
      %v659 = vpop.f32.mrf.mxu0
      %v660 = vadd.f32 %v538, %v659
      %661 = vmatmul.f32.gmra.mxu0 %v418
      %v662 = vpop.f32.mrf.mxu0
      %v663 = vadd.f32 %v541, %v662
      %664 = vmatmul.f32.gmra.mxu0 %v421
      %v665 = vpop.f32.mrf.mxu0
      %v666 = vadd.f32 %v544, %v665
      %667 = vmatmul.f32.gmra.mxu0 %v424
      %v668 = vpop.f32.mrf.mxu0
      %v669 = vadd.f32 %v547, %v668
      %670 = vmatmul.f32.gmra.mxu0 %v427
      %v671 = vpop.f32.mrf.mxu0
      %v672 = vadd.f32 %v550, %v671
      %673 = vmatmul.f32.gmra.mxu0 %v430
      %v674 = vpop.f32.mrf.mxu0
      %v675 = vadd.f32 %v553, %v674
      %676 = vmatmul.f32.gmra.mxu0 %v433
      %v677 = vpop.f32.mrf.mxu0
      %v678 = vadd.f32 %v556, %v677
      %679 = vmatmul.f32.gmra.mxu0 %v436
      %v680 = vpop.f32.mrf.mxu0
      %v681 = vadd.f32 %v559, %v680
      %682 = vmatmul.f32.gmra.mxu0 %v439
      %v683 = vpop.f32.mrf.mxu0
      %v684 = vadd.f32 %v562, %v683
      %685 = vmatmul.f32.gmra.mxu0 %v442
      %v686 = vpop.f32.mrf.mxu0
      %v687 = vadd.f32 %v565, %v686
      %688 = vdwg.mxu0
      %s689 = scalar_lea.vmem %s1, 24
      %v690 = vld [vmem:[%s689] sm:$0xf]
      %v692 = vsel %vm204, %v349, 0
      %v695 = vsel %vm204, %v350, 0
      %v698 = vsel %vm450, %v690, 0
      %700 = vmatpush.msra.mxu0 0.0
      %701 = vmatpush.msra.mxu0 0.0
      %702 = vmatpush.msra.mxu0 0.0
      %703 = vmatpush.msra.mxu0 0.0
      %704 = vmatpush.msra.mxu0 0.0
      %705 = vmatpush.msra.mxu0 0.0
      %706 = vmatpush.msra.mxu0 0.0
      %707 = vmatpush.msra.mxu0 0.0
      %708 = vmatpush.msra.mxu0 0.0
      %709 = vmatpush.msra.mxu0 0.0
      %710 = vmatpush.msra.mxu0 0.0
      %711 = vmatpush.msra.mxu0 0.0
      %712 = vmatpush.msra.mxu0 0.0
      %713 = vmatpush.msra.mxu0 0.0
      %714 = vmatpush.msra.mxu0 0.0
      %715 = vmatpush.msra.mxu0 %v698
      %716 = vmatmul.f32.gmra.mxu0 %v361
      %v717 = vpop.f32.mrf.mxu0
      %v718 = vadd.f32 0.0, %v717
      %719 = vmatmul.f32.gmra.mxu0 %v364
      %v720 = vpop.f32.mrf.mxu0
      %v721 = vadd.f32 0.0, %v720
      %722 = vmatmul.f32.gmra.mxu0 %v367
      %v723 = vpop.f32.mrf.mxu0
      %v724 = vadd.f32 0.0, %v723
      %725 = vmatmul.f32.gmra.mxu0 %v370
      %v726 = vpop.f32.mrf.mxu0
      %v727 = vadd.f32 0.0, %v726
      %728 = vmatmul.f32.gmra.mxu0 %v373
      %v729 = vpop.f32.mrf.mxu0
      %v730 = vadd.f32 0.0, %v729
      %731 = vmatmul.f32.gmra.mxu0 %v376
      %v732 = vpop.f32.mrf.mxu0
      %v733 = vadd.f32 0.0, %v732
      %734 = vmatmul.f32.gmra.mxu0 %v379
      %v735 = vpop.f32.mrf.mxu0
      %v736 = vadd.f32 0.0, %v735
      %737 = vmatmul.f32.gmra.mxu0 %v382
      %v738 = vpop.f32.mrf.mxu0
      %v739 = vadd.f32 0.0, %v738
      %740 = vmatmul.f32.gmra.mxu0 %v385
      %v741 = vpop.f32.mrf.mxu0
      %v742 = vadd.f32 0.0, %v741
      %743 = vmatmul.f32.gmra.mxu0 %v388
      %v744 = vpop.f32.mrf.mxu0
      %v745 = vadd.f32 0.0, %v744
      %746 = vmatmul.f32.gmra.mxu0 %v391
      %v747 = vpop.f32.mrf.mxu0
      %v748 = vadd.f32 0.0, %v747
      %749 = vmatmul.f32.gmra.mxu0 %v394
      %v750 = vpop.f32.mrf.mxu0
      %v751 = vadd.f32 0.0, %v750
      %752 = vmatmul.f32.gmra.mxu0 %v397
      %v753 = vpop.f32.mrf.mxu0
      %v754 = vadd.f32 0.0, %v753
      %755 = vmatmul.f32.gmra.mxu0 %v400
      %v756 = vpop.f32.mrf.mxu0
      %v757 = vadd.f32 0.0, %v756
      %758 = vmatmul.f32.gmra.mxu0 %v403
      %v759 = vpop.f32.mrf.mxu0
      %v760 = vadd.f32 0.0, %v759
      %761 = vmatmul.f32.gmra.mxu0 %v406
      %v762 = vpop.f32.mrf.mxu0
      %v763 = vadd.f32 0.0, %v762
      %764 = vmatmul.f32.gmra.mxu0 %v409
      %v765 = vpop.f32.mrf.mxu0
      %v766 = vadd.f32 0.0, %v765
      %767 = vmatmul.f32.gmra.mxu0 %v412
      %v768 = vpop.f32.mrf.mxu0
      %v769 = vadd.f32 0.0, %v768
      %770 = vmatmul.f32.gmra.mxu0 %v415
      %v771 = vpop.f32.mrf.mxu0
      %v772 = vadd.f32 0.0, %v771
      %773 = vmatmul.f32.gmra.mxu0 %v418
      %v774 = vpop.f32.mrf.mxu0
      %v775 = vadd.f32 0.0, %v774
      %776 = vmatmul.f32.gmra.mxu0 %v421
      %v777 = vpop.f32.mrf.mxu0
      %v778 = vadd.f32 0.0, %v777
      %779 = vmatmul.f32.gmra.mxu0 %v424
      %v780 = vpop.f32.mrf.mxu0
      %v781 = vadd.f32 0.0, %v780
      %782 = vmatmul.f32.gmra.mxu0 %v427
      %v783 = vpop.f32.mrf.mxu0
      %v784 = vadd.f32 0.0, %v783
      %785 = vmatmul.f32.gmra.mxu0 %v430
      %v786 = vpop.f32.mrf.mxu0
      %v787 = vadd.f32 0.0, %v786
      %788 = vmatmul.f32.gmra.mxu0 %v433
      %v789 = vpop.f32.mrf.mxu0
      %v790 = vadd.f32 0.0, %v789
      %791 = vmatmul.f32.gmra.mxu0 %v436
      %v792 = vpop.f32.mrf.mxu0
      %v793 = vadd.f32 0.0, %v792
      %794 = vmatmul.f32.gmra.mxu0 %v439
      %v795 = vpop.f32.mrf.mxu0
      %v796 = vadd.f32 0.0, %v795
      %797 = vmatmul.f32.gmra.mxu0 %v442
      %v798 = vpop.f32.mrf.mxu0
      %v799 = vadd.f32 0.0, %v798
      %800 = vmatmul.f32.gmra.mxu0 %v445
      %v801 = vpop.f32.mrf.mxu0
      %v802 = vadd.f32 0.0, %v801
      %803 = vmatmul.f32.gmra.mxu0 %v448
      %v804 = vpop.f32.mrf.mxu0
      %v805 = vadd.f32 0.0, %v804
      %806 = vmatmul.f32.gmra.mxu0 %v692
      %v807 = vpop.f32.mrf.mxu0
      %v808 = vadd.f32 0.0, %v807
      %809 = vmatmul.f32.gmra.mxu0 %v695
      %v810 = vpop.f32.mrf.mxu0
      %v811 = vadd.f32 0.0, %v810
      %812 = vdwg.mxu0
      %v813 = vadd.f32 %v594, %v718
      %v814 = vadd.f32 %v597, %v721
      %v815 = vadd.f32 %v600, %v724
      %v816 = vadd.f32 %v603, %v727
      %v817 = vadd.f32 %v606, %v730
      %v818 = vadd.f32 %v609, %v733
      %v819 = vadd.f32 %v612, %v736
      %v820 = vadd.f32 %v615, %v739
      %v821 = vadd.f32 %v618, %v742
      %v822 = vadd.f32 %v621, %v745
      %v823 = vadd.f32 %v624, %v748
      %v824 = vadd.f32 %v627, %v751
      %v825 = vadd.f32 %v630, %v754
      %v826 = vadd.f32 %v633, %v757
      %v827 = vadd.f32 %v636, %v760
      %v828 = vadd.f32 %v639, %v763
      %v829 = vadd.f32 %v642, %v766
      %v830 = vadd.f32 %v645, %v769
      %v831 = vadd.f32 %v648, %v772
      %v832 = vadd.f32 %v651, %v775
      %v833 = vadd.f32 %v654, %v778
      %v834 = vadd.f32 %v657, %v781
      %v835 = vadd.f32 %v660, %v784
      %v836 = vadd.f32 %v663, %v787
      %v837 = vadd.f32 %v666, %v790
      %v838 = vadd.f32 %v669, %v793
      %v839 = vadd.f32 %v672, %v796
      %v840 = vadd.f32 %v675, %v799
      %v841 = vadd.f32 %v678, %v802
      %v842 = vadd.f32 %v681, %v805
      %v843 = vadd.f32 %v684, %v808
      %v844 = vadd.f32 %v687, %v811
      %v845 = vld [vmem:[#allocation2 + $0x1] sm:$0xff]
      %v846 = vld [vmem:[#allocation2 + $0x9] sm:$0xff]
      %v847 = vld [vmem:[#allocation2 + $0x19] sm:$0xff]
      %v848 = vld [vmem:[#allocation2 + $0x21] sm:$0xff]
      %v849 = vld [vmem:[#allocation2 + $0x31] sm:$0xff]
      %v850 = vld [vmem:[#allocation2 + $0x39] sm:$0xff]
      %v851 = vld [vmem:[#allocation2 + $0x49] sm:$0xff]
      %v852 = vld [vmem:[#allocation2 + $0x51] sm:$0xff]
      %v853 = vld [vmem:[#allocation2 + $0x61] sm:$0xff]
      %v854 = vld [vmem:[#allocation2 + $0x69] sm:$0xff]
      %v855 = vld [vmem:[#allocation2 + $0x79] sm:$0xff]
      %v856 = vld [vmem:[#allocation2 + $0x81] sm:$0xff]
      %v857 = vld [vmem:[#allocation2 + $0x91] sm:$0xff]
      %v858 = vld [vmem:[#allocation2 + $0x99] sm:$0xff]
      %v859 = vld [vmem:[#allocation2 + $0xa9] sm:$0xff]
      %v860 = vld [vmem:[#allocation2 + $0xb1] sm:$0xff]
      %v861 = vld [vmem:[#allocation2 + $0xc1] sm:$0xff]
      %v862 = vld [vmem:[#allocation2 + $0xc9] sm:$0xff]
      %v863 = vld [vmem:[#allocation2 + $0xd9] sm:$0xff]
      %v864 = vld [vmem:[#allocation2 + $0xe1] sm:$0xff]
      %v865 = vld [vmem:[#allocation2 + $0xf1] sm:$0xff]
      %v866 = vld [vmem:[#allocation2 + $0xf9] sm:$0xff]
      %v867 = vld [vmem:[#allocation2 + $0x109] sm:$0xff]
      %v868 = vld [vmem:[#allocation2 + $0x111] sm:$0xff]
      %v869 = vld [vmem:[#allocation2 + $0x121] sm:$0xff]
      %v870 = vld [vmem:[#allocation2 + $0x129] sm:$0xff]
      %v871 = vld [vmem:[#allocation2 + $0x139] sm:$0xff]
      %v872 = vld [vmem:[#allocation2 + $0x141] sm:$0xff]
      %v873 = vld [vmem:[#allocation2 + $0x151] sm:$0xff]
      %v874 = vld [vmem:[#allocation2 + $0x159] sm:$0xff]
      %v875 = vld [vmem:[#allocation2 + $0x169] sm:$0xff]
      %v876 = vld [vmem:[#allocation2 + $0x171] sm:$0xff]
      %v877 = vld [vmem:[#allocation2 + $0x181] sm:$0xff]
      %v878 = vld [vmem:[#allocation2 + $0x189] sm:$0xff]
      %v879 = vld [vmem:[#allocation2 + $0x199] sm:$0xff]
      %v880 = vld [vmem:[#allocation2 + $0x1a1] sm:$0xff]
      %s881 = scalar_lea.vmem %s1, 4
      %v882 = vld [vmem:[%s881] sm:$0xf]
      %v884 = vsel %vm204, %v845, 0
      %v887 = vsel %vm204, %v846, 0
      %v890 = vsel %vm204, %v847, 0
      %v893 = vsel %vm204, %v848, 0
      %v896 = vsel %vm204, %v849, 0
      %v899 = vsel %vm204, %v850, 0
      %v902 = vsel %vm204, %v851, 0
      %v905 = vsel %vm204, %v852, 0
      %v908 = vsel %vm204, %v853, 0
      %v911 = vsel %vm204, %v854, 0
      %v914 = vsel %vm204, %v855, 0
      %v917 = vsel %vm204, %v856, 0
      %v920 = vsel %vm204, %v857, 0
      %v923 = vsel %vm204, %v858, 0
      %v926 = vsel %vm204, %v859, 0
      %v929 = vsel %vm204, %v860, 0
      %v932 = vsel %vm204, %v861, 0
      %v935 = vsel %vm204, %v862, 0
      %v938 = vsel %vm204, %v863, 0
      %v941 = vsel %vm204, %v864, 0
      %v944 = vsel %vm204, %v865, 0
      %v947 = vsel %vm204, %v866, 0
      %v950 = vsel %vm204, %v867, 0
      %v953 = vsel %vm204, %v868, 0
      %v956 = vsel %vm204, %v869, 0
      %v959 = vsel %vm204, %v870, 0
      %v962 = vsel %vm204, %v871, 0
      %v965 = vsel %vm204, %v872, 0
      %v968 = vsel %vm204, %v873, 0
      %v971 = vsel %vm204, %v874, 0
      %v974 = vsel %vm204, %v875, 0
      %v977 = vsel %vm204, %v876, 0
      %v980 = vsel %vm450, %v882, 0
      %982 = vmatpush.msra.mxu0 0.0
      %983 = vmatpush.msra.mxu0 0.0
      %984 = vmatpush.msra.mxu0 0.0
      %985 = vmatpush.msra.mxu0 0.0
      %986 = vmatpush.msra.mxu0 0.0
      %987 = vmatpush.msra.mxu0 0.0
      %988 = vmatpush.msra.mxu0 0.0
      %989 = vmatpush.msra.mxu0 0.0
      %990 = vmatpush.msra.mxu0 0.0
      %991 = vmatpush.msra.mxu0 0.0
      %992 = vmatpush.msra.mxu0 0.0
      %993 = vmatpush.msra.mxu0 0.0
      %994 = vmatpush.msra.mxu0 0.0
      %995 = vmatpush.msra.mxu0 0.0
      %996 = vmatpush.msra.mxu0 0.0
      %997 = vmatpush.msra.mxu0 %v980
      %998 = vmatmul.f32.gmra.mxu0 %v884
      %v999 = vpop.f32.mrf.mxu0
      %v1000 = vadd.f32 0.0, %v999
      %1001 = vmatmul.f32.gmra.mxu0 %v887
      %v1002 = vpop.f32.mrf.mxu0
      %v1003 = vadd.f32 0.0, %v1002
      %1004 = vmatmul.f32.gmra.mxu0 %v890
      %v1005 = vpop.f32.mrf.mxu0
      %v1006 = vadd.f32 0.0, %v1005
      %1007 = vmatmul.f32.gmra.mxu0 %v893
      %v1008 = vpop.f32.mrf.mxu0
      %v1009 = vadd.f32 0.0, %v1008
      %1010 = vmatmul.f32.gmra.mxu0 %v896
      %v1011 = vpop.f32.mrf.mxu0
      %v1012 = vadd.f32 0.0, %v1011
      %1013 = vmatmul.f32.gmra.mxu0 %v899
      %v1014 = vpop.f32.mrf.mxu0
      %v1015 = vadd.f32 0.0, %v1014
      %1016 = vmatmul.f32.gmra.mxu0 %v902
      %v1017 = vpop.f32.mrf.mxu0
      %v1018 = vadd.f32 0.0, %v1017
      %1019 = vmatmul.f32.gmra.mxu0 %v905
      %v1020 = vpop.f32.mrf.mxu0
      %v1021 = vadd.f32 0.0, %v1020
      %1022 = vmatmul.f32.gmra.mxu0 %v908
      %v1023 = vpop.f32.mrf.mxu0
      %v1024 = vadd.f32 0.0, %v1023
      %1025 = vmatmul.f32.gmra.mxu0 %v911
      %v1026 = vpop.f32.mrf.mxu0
      %v1027 = vadd.f32 0.0, %v1026
      %1028 = vmatmul.f32.gmra.mxu0 %v914
      %v1029 = vpop.f32.mrf.mxu0
      %v1030 = vadd.f32 0.0, %v1029
      %1031 = vmatmul.f32.gmra.mxu0 %v917
      %v1032 = vpop.f32.mrf.mxu0
      %v1033 = vadd.f32 0.0, %v1032
      %1034 = vmatmul.f32.gmra.mxu0 %v920
      %v1035 = vpop.f32.mrf.mxu0
      %v1036 = vadd.f32 0.0, %v1035
      %1037 = vmatmul.f32.gmra.mxu0 %v923
      %v1038 = vpop.f32.mrf.mxu0
      %v1039 = vadd.f32 0.0, %v1038
      %1040 = vmatmul.f32.gmra.mxu0 %v926
      %v1041 = vpop.f32.mrf.mxu0
      %v1042 = vadd.f32 0.0, %v1041
      %1043 = vmatmul.f32.gmra.mxu0 %v929
      %v1044 = vpop.f32.mrf.mxu0
      %v1045 = vadd.f32 0.0, %v1044
      %1046 = vmatmul.f32.gmra.mxu0 %v932
      %v1047 = vpop.f32.mrf.mxu0
      %v1048 = vadd.f32 0.0, %v1047
      %1049 = vmatmul.f32.gmra.mxu0 %v935
      %v1050 = vpop.f32.mrf.mxu0
      %v1051 = vadd.f32 0.0, %v1050
      %1052 = vmatmul.f32.gmra.mxu0 %v938
      %v1053 = vpop.f32.mrf.mxu0
      %v1054 = vadd.f32 0.0, %v1053
      %1055 = vmatmul.f32.gmra.mxu0 %v941
      %v1056 = vpop.f32.mrf.mxu0
      %v1057 = vadd.f32 0.0, %v1056
      %1058 = vmatmul.f32.gmra.mxu0 %v944
      %v1059 = vpop.f32.mrf.mxu0
      %v1060 = vadd.f32 0.0, %v1059
      %1061 = vmatmul.f32.gmra.mxu0 %v947
      %v1062 = vpop.f32.mrf.mxu0
      %v1063 = vadd.f32 0.0, %v1062
      %1064 = vmatmul.f32.gmra.mxu0 %v950
      %v1065 = vpop.f32.mrf.mxu0
      %v1066 = vadd.f32 0.0, %v1065
      %1067 = vmatmul.f32.gmra.mxu0 %v953
      %v1068 = vpop.f32.mrf.mxu0
      %v1069 = vadd.f32 0.0, %v1068
      %1070 = vmatmul.f32.gmra.mxu0 %v956
      %v1071 = vpop.f32.mrf.mxu0
      %v1072 = vadd.f32 0.0, %v1071
      %1073 = vmatmul.f32.gmra.mxu0 %v959
      %v1074 = vpop.f32.mrf.mxu0
      %v1075 = vadd.f32 0.0, %v1074
      %1076 = vmatmul.f32.gmra.mxu0 %v962
      %v1077 = vpop.f32.mrf.mxu0
      %v1078 = vadd.f32 0.0, %v1077
      %1079 = vmatmul.f32.gmra.mxu0 %v965
      %v1080 = vpop.f32.mrf.mxu0
      %v1081 = vadd.f32 0.0, %v1080
      %1082 = vmatmul.f32.gmra.mxu0 %v968
      %v1083 = vpop.f32.mrf.mxu0
      %v1084 = vadd.f32 0.0, %v1083
      %1085 = vmatmul.f32.gmra.mxu0 %v971
      %v1086 = vpop.f32.mrf.mxu0
      %v1087 = vadd.f32 0.0, %v1086
      %1088 = vmatmul.f32.gmra.mxu0 %v974
      %v1089 = vpop.f32.mrf.mxu0
      %v1090 = vadd.f32 0.0, %v1089
      %1091 = vmatmul.f32.gmra.mxu0 %v977
      %v1092 = vpop.f32.mrf.mxu0
      %v1093 = vadd.f32 0.0, %v1092
      %1094 = vdwg.mxu0
      %v1095 = vadd.f32 %v813, %v1000
      %v1096 = vadd.f32 %v814, %v1003
      %v1097 = vadd.f32 %v815, %v1006
      %v1098 = vadd.f32 %v816, %v1009
      %v1099 = vadd.f32 %v817, %v1012
      %v1100 = vadd.f32 %v818, %v1015
      %v1101 = vadd.f32 %v819, %v1018
      %v1102 = vadd.f32 %v820, %v1021
      %v1103 = vadd.f32 %v821, %v1024
      %v1104 = vadd.f32 %v822, %v1027
      %v1105 = vadd.f32 %v823, %v1030
      %v1106 = vadd.f32 %v824, %v1033
      %v1107 = vadd.f32 %v825, %v1036
      %v1108 = vadd.f32 %v826, %v1039
      %v1109 = vadd.f32 %v827, %v1042
      %v1110 = vadd.f32 %v828, %v1045
      %v1111 = vadd.f32 %v829, %v1048
      %v1112 = vadd.f32 %v830, %v1051
      %v1113 = vadd.f32 %v831, %v1054
      %v1114 = vadd.f32 %v832, %v1057
      %v1115 = vadd.f32 %v833, %v1060
      %v1116 = vadd.f32 %v834, %v1063
      %v1117 = vadd.f32 %v835, %v1066
      %v1118 = vadd.f32 %v836, %v1069
      %v1119 = vadd.f32 %v837, %v1072
      %v1120 = vadd.f32 %v838, %v1075
      %v1121 = vadd.f32 %v839, %v1078
      %v1122 = vadd.f32 %v840, %v1081
      %v1123 = vadd.f32 %v841, %v1084
      %v1124 = vadd.f32 %v842, %v1087
      %v1125 = vadd.f32 %v843, %v1090
      %v1126 = vadd.f32 %v844, %v1093
      %s1127 = scalar_lea.vmem %s1, 16
      %v1128 = vld [vmem:[%s1127] sm:$0xf]
      %v1130 = vsel %vm204, %v877, 0
      %v1133 = vsel %vm204, %v878, 0
      %v1136 = vsel %vm450, %v1128, 0
      %1138 = vmatpush.msra.mxu0 0.0
      %1139 = vmatpush.msra.mxu0 0.0
      %1140 = vmatpush.msra.mxu0 0.0
      %1141 = vmatpush.msra.mxu0 0.0
      %1142 = vmatpush.msra.mxu0 0.0
      %1143 = vmatpush.msra.mxu0 0.0
      %1144 = vmatpush.msra.mxu0 0.0
      %1145 = vmatpush.msra.mxu0 0.0
      %1146 = vmatpush.msra.mxu0 0.0
      %1147 = vmatpush.msra.mxu0 0.0
      %1148 = vmatpush.msra.mxu0 0.0
      %1149 = vmatpush.msra.mxu0 0.0
      %1150 = vmatpush.msra.mxu0 0.0
      %1151 = vmatpush.msra.mxu0 0.0
      %1152 = vmatpush.msra.mxu0 0.0
      %1153 = vmatpush.msra.mxu0 %v1136
      %1154 = vmatmul.f32.gmra.mxu0 %v890
      %v1155 = vpop.f32.mrf.mxu0
      %v1156 = vadd.f32 0.0, %v1155
      %1157 = vmatmul.f32.gmra.mxu0 %v893
      %v1158 = vpop.f32.mrf.mxu0
      %v1159 = vadd.f32 0.0, %v1158
      %1160 = vmatmul.f32.gmra.mxu0 %v896
      %v1161 = vpop.f32.mrf.mxu0
      %v1162 = vadd.f32 0.0, %v1161
      %1163 = vmatmul.f32.gmra.mxu0 %v899
      %v1164 = vpop.f32.mrf.mxu0
      %v1165 = vadd.f32 0.0, %v1164
      %1166 = vmatmul.f32.gmra.mxu0 %v902
      %v1167 = vpop.f32.mrf.mxu0
      %v1168 = vadd.f32 0.0, %v1167
      %1169 = vmatmul.f32.gmra.mxu0 %v905
      %v1170 = vpop.f32.mrf.mxu0
      %v1171 = vadd.f32 0.0, %v1170
      %1172 = vmatmul.f32.gmra.mxu0 %v908
      %v1173 = vpop.f32.mrf.mxu0
      %v1174 = vadd.f32 0.0, %v1173
      %1175 = vmatmul.f32.gmra.mxu0 %v911
      %v1176 = vpop.f32.mrf.mxu0
      %v1177 = vadd.f32 0.0, %v1176
      %1178 = vmatmul.f32.gmra.mxu0 %v914
      %v1179 = vpop.f32.mrf.mxu0
      %v1180 = vadd.f32 0.0, %v1179
      %1181 = vmatmul.f32.gmra.mxu0 %v917
      %v1182 = vpop.f32.mrf.mxu0
      %v1183 = vadd.f32 0.0, %v1182
      %1184 = vmatmul.f32.gmra.mxu0 %v920
      %v1185 = vpop.f32.mrf.mxu0
      %v1186 = vadd.f32 0.0, %v1185
      %1187 = vmatmul.f32.gmra.mxu0 %v923
      %v1188 = vpop.f32.mrf.mxu0
      %v1189 = vadd.f32 0.0, %v1188
      %1190 = vmatmul.f32.gmra.mxu0 %v926
      %v1191 = vpop.f32.mrf.mxu0
      %v1192 = vadd.f32 0.0, %v1191
      %1193 = vmatmul.f32.gmra.mxu0 %v929
      %v1194 = vpop.f32.mrf.mxu0
      %v1195 = vadd.f32 0.0, %v1194
      %1196 = vmatmul.f32.gmra.mxu0 %v932
      %v1197 = vpop.f32.mrf.mxu0
      %v1198 = vadd.f32 0.0, %v1197
      %1199 = vmatmul.f32.gmra.mxu0 %v935
      %v1200 = vpop.f32.mrf.mxu0
      %v1201 = vadd.f32 0.0, %v1200
      %1202 = vmatmul.f32.gmra.mxu0 %v938
      %v1203 = vpop.f32.mrf.mxu0
      %v1204 = vadd.f32 0.0, %v1203
      %1205 = vmatmul.f32.gmra.mxu0 %v941
      %v1206 = vpop.f32.mrf.mxu0
      %v1207 = vadd.f32 0.0, %v1206
      %1208 = vmatmul.f32.gmra.mxu0 %v944
      %v1209 = vpop.f32.mrf.mxu0
      %v1210 = vadd.f32 0.0, %v1209
      %1211 = vmatmul.f32.gmra.mxu0 %v947
      %v1212 = vpop.f32.mrf.mxu0
      %v1213 = vadd.f32 0.0, %v1212
      %1214 = vmatmul.f32.gmra.mxu0 %v950
      %v1215 = vpop.f32.mrf.mxu0
      %v1216 = vadd.f32 0.0, %v1215
      %1217 = vmatmul.f32.gmra.mxu0 %v953
      %v1218 = vpop.f32.mrf.mxu0
      %v1219 = vadd.f32 0.0, %v1218
      %1220 = vmatmul.f32.gmra.mxu0 %v956
      %v1221 = vpop.f32.mrf.mxu0
      %v1222 = vadd.f32 0.0, %v1221
      %1223 = vmatmul.f32.gmra.mxu0 %v959
      %v1224 = vpop.f32.mrf.mxu0
      %v1225 = vadd.f32 0.0, %v1224
      %1226 = vmatmul.f32.gmra.mxu0 %v962
      %v1227 = vpop.f32.mrf.mxu0
      %v1228 = vadd.f32 0.0, %v1227
      %1229 = vmatmul.f32.gmra.mxu0 %v965
      %v1230 = vpop.f32.mrf.mxu0
      %v1231 = vadd.f32 0.0, %v1230
      %1232 = vmatmul.f32.gmra.mxu0 %v968
      %v1233 = vpop.f32.mrf.mxu0
      %v1234 = vadd.f32 0.0, %v1233
      %1235 = vmatmul.f32.gmra.mxu0 %v971
      %v1236 = vpop.f32.mrf.mxu0
      %v1237 = vadd.f32 0.0, %v1236
      %1238 = vmatmul.f32.gmra.mxu0 %v974
      %v1239 = vpop.f32.mrf.mxu0
      %v1240 = vadd.f32 0.0, %v1239
      %1241 = vmatmul.f32.gmra.mxu0 %v977
      %v1242 = vpop.f32.mrf.mxu0
      %v1243 = vadd.f32 0.0, %v1242
      %1244 = vmatmul.f32.gmra.mxu0 %v1130
      %v1245 = vpop.f32.mrf.mxu0
      %v1246 = vadd.f32 0.0, %v1245
      %1247 = vmatmul.f32.gmra.mxu0 %v1133
      %v1248 = vpop.f32.mrf.mxu0
      %v1249 = vadd.f32 0.0, %v1248
      %1250 = vdwg.mxu0
      %v1251 = vadd.f32 %v1095, %v1156
      %v1252 = vadd.f32 %v1096, %v1159
      %v1253 = vadd.f32 %v1097, %v1162
      %v1254 = vadd.f32 %v1098, %v1165
      %v1255 = vadd.f32 %v1099, %v1168
      %v1256 = vadd.f32 %v1100, %v1171
      %v1257 = vadd.f32 %v1101, %v1174
      %v1258 = vadd.f32 %v1102, %v1177
      %v1259 = vadd.f32 %v1103, %v1180
      %v1260 = vadd.f32 %v1104, %v1183
      %v1261 = vadd.f32 %v1105, %v1186
      %v1262 = vadd.f32 %v1106, %v1189
      %v1263 = vadd.f32 %v1107, %v1192
      %v1264 = vadd.f32 %v1108, %v1195
      %v1265 = vadd.f32 %v1109, %v1198
      %v1266 = vadd.f32 %v1110, %v1201
      %v1267 = vadd.f32 %v1111, %v1204
      %v1268 = vadd.f32 %v1112, %v1207
      %v1269 = vadd.f32 %v1113, %v1210
      %v1270 = vadd.f32 %v1114, %v1213
      %v1271 = vadd.f32 %v1115, %v1216
      %v1272 = vadd.f32 %v1116, %v1219
      %v1273 = vadd.f32 %v1117, %v1222
      %v1274 = vadd.f32 %v1118, %v1225
      %v1275 = vadd.f32 %v1119, %v1228
      %v1276 = vadd.f32 %v1120, %v1231
      %v1277 = vadd.f32 %v1121, %v1234
      %v1278 = vadd.f32 %v1122, %v1237
      %v1279 = vadd.f32 %v1123, %v1240
      %v1280 = vadd.f32 %v1124, %v1243
      %v1281 = vadd.f32 %v1125, %v1246
      %v1282 = vadd.f32 %v1126, %v1249
      %s1283 = scalar_lea.vmem %s1, 28
      %v1284 = vld [vmem:[%s1283] sm:$0xf]
      %v1286 = vsel %vm204, %v879, 0
      %v1289 = vsel %vm204, %v880, 0
      %v1292 = vsel %vm450, %v1284, 0
      %1294 = vmatpush.msra.mxu0 0.0
      %1295 = vmatpush.msra.mxu0 0.0
      %1296 = vmatpush.msra.mxu0 0.0
      %1297 = vmatpush.msra.mxu0 0.0
      %1298 = vmatpush.msra.mxu0 0.0
      %1299 = vmatpush.msra.mxu0 0.0
      %1300 = vmatpush.msra.mxu0 0.0
      %1301 = vmatpush.msra.mxu0 0.0
      %1302 = vmatpush.msra.mxu0 0.0
      %1303 = vmatpush.msra.mxu0 0.0
      %1304 = vmatpush.msra.mxu0 0.0
      %1305 = vmatpush.msra.mxu0 0.0
      %1306 = vmatpush.msra.mxu0 0.0
      %1307 = vmatpush.msra.mxu0 0.0
      %1308 = vmatpush.msra.mxu0 0.0
      %1309 = vmatpush.msra.mxu0 %v1292
      %1310 = vmatmul.f32.gmra.mxu0 %v896
      %v1311 = vpop.f32.mrf.mxu0
      %v1312 = vadd.f32 0.0, %v1311
      %1313 = vmatmul.f32.gmra.mxu0 %v899
      %v1314 = vpop.f32.mrf.mxu0
      %v1315 = vadd.f32 0.0, %v1314
      %1316 = vmatmul.f32.gmra.mxu0 %v902
      %v1317 = vpop.f32.mrf.mxu0
      %v1318 = vadd.f32 0.0, %v1317
      %1319 = vmatmul.f32.gmra.mxu0 %v905
      %v1320 = vpop.f32.mrf.mxu0
      %v1321 = vadd.f32 0.0, %v1320
      %1322 = vmatmul.f32.gmra.mxu0 %v908
      %v1323 = vpop.f32.mrf.mxu0
      %v1324 = vadd.f32 0.0, %v1323
      %1325 = vmatmul.f32.gmra.mxu0 %v911
      %v1326 = vpop.f32.mrf.mxu0
      %v1327 = vadd.f32 0.0, %v1326
      %1328 = vmatmul.f32.gmra.mxu0 %v914
      %v1329 = vpop.f32.mrf.mxu0
      %v1330 = vadd.f32 0.0, %v1329
      %1331 = vmatmul.f32.gmra.mxu0 %v917
      %v1332 = vpop.f32.mrf.mxu0
      %v1333 = vadd.f32 0.0, %v1332
      %1334 = vmatmul.f32.gmra.mxu0 %v920
      %v1335 = vpop.f32.mrf.mxu0
      %v1336 = vadd.f32 0.0, %v1335
      %1337 = vmatmul.f32.gmra.mxu0 %v923
      %v1338 = vpop.f32.mrf.mxu0
      %v1339 = vadd.f32 0.0, %v1338
      %1340 = vmatmul.f32.gmra.mxu0 %v926
      %v1341 = vpop.f32.mrf.mxu0
      %v1342 = vadd.f32 0.0, %v1341
      %1343 = vmatmul.f32.gmra.mxu0 %v929
      %v1344 = vpop.f32.mrf.mxu0
      %v1345 = vadd.f32 0.0, %v1344
      %1346 = vmatmul.f32.gmra.mxu0 %v932
      %v1347 = vpop.f32.mrf.mxu0
      %v1348 = vadd.f32 0.0, %v1347
      %1349 = vmatmul.f32.gmra.mxu0 %v935
      %v1350 = vpop.f32.mrf.mxu0
      %v1351 = vadd.f32 0.0, %v1350
      %1352 = vmatmul.f32.gmra.mxu0 %v938
      %v1353 = vpop.f32.mrf.mxu0
      %v1354 = vadd.f32 0.0, %v1353
      %1355 = vmatmul.f32.gmra.mxu0 %v941
      %v1356 = vpop.f32.mrf.mxu0
      %v1357 = vadd.f32 0.0, %v1356
      %1358 = vmatmul.f32.gmra.mxu0 %v944
      %v1359 = vpop.f32.mrf.mxu0
      %v1360 = vadd.f32 0.0, %v1359
      %1361 = vmatmul.f32.gmra.mxu0 %v947
      %v1362 = vpop.f32.mrf.mxu0
      %v1363 = vadd.f32 0.0, %v1362
      %1364 = vmatmul.f32.gmra.mxu0 %v950
      %v1365 = vpop.f32.mrf.mxu0
      %v1366 = vadd.f32 0.0, %v1365
      %1367 = vmatmul.f32.gmra.mxu0 %v953
      %v1368 = vpop.f32.mrf.mxu0
      %v1369 = vadd.f32 0.0, %v1368
      %1370 = vmatmul.f32.gmra.mxu0 %v956
      %v1371 = vpop.f32.mrf.mxu0
      %v1372 = vadd.f32 0.0, %v1371
      %1373 = vmatmul.f32.gmra.mxu0 %v959
      %v1374 = vpop.f32.mrf.mxu0
      %v1375 = vadd.f32 0.0, %v1374
      %1376 = vmatmul.f32.gmra.mxu0 %v962
      %v1377 = vpop.f32.mrf.mxu0
      %v1378 = vadd.f32 0.0, %v1377
      %1379 = vmatmul.f32.gmra.mxu0 %v965
      %v1380 = vpop.f32.mrf.mxu0
      %v1381 = vadd.f32 0.0, %v1380
      %1382 = vmatmul.f32.gmra.mxu0 %v968
      %v1383 = vpop.f32.mrf.mxu0
      %v1384 = vadd.f32 0.0, %v1383
      %1385 = vmatmul.f32.gmra.mxu0 %v971
      %v1386 = vpop.f32.mrf.mxu0
      %v1387 = vadd.f32 0.0, %v1386
      %1388 = vmatmul.f32.gmra.mxu0 %v974
      %v1389 = vpop.f32.mrf.mxu0
      %v1390 = vadd.f32 0.0, %v1389
      %1391 = vmatmul.f32.gmra.mxu0 %v977
      %v1392 = vpop.f32.mrf.mxu0
      %v1393 = vadd.f32 0.0, %v1392
      %1394 = vmatmul.f32.gmra.mxu0 %v1130
      %v1395 = vpop.f32.mrf.mxu0
      %v1396 = vadd.f32 0.0, %v1395
      %1397 = vmatmul.f32.gmra.mxu0 %v1133
      %v1398 = vpop.f32.mrf.mxu0
      %v1399 = vadd.f32 0.0, %v1398
      %1400 = vmatmul.f32.gmra.mxu0 %v1286
      %v1401 = vpop.f32.mrf.mxu0
      %v1402 = vadd.f32 0.0, %v1401
      %1403 = vmatmul.f32.gmra.mxu0 %v1289
      %v1404 = vpop.f32.mrf.mxu0
      %v1405 = vadd.f32 0.0, %v1404
      %1406 = vdwg.mxu0
      %v1407 = vadd.f32 %v1251, %v1312
      %v1408 = vadd.f32 %v1252, %v1315
      %v1409 = vadd.f32 %v1253, %v1318
      %v1410 = vadd.f32 %v1254, %v1321
      %v1411 = vadd.f32 %v1255, %v1324
      %v1412 = vadd.f32 %v1256, %v1327
      %v1413 = vadd.f32 %v1257, %v1330
      %v1414 = vadd.f32 %v1258, %v1333
      %v1415 = vadd.f32 %v1259, %v1336
      %v1416 = vadd.f32 %v1260, %v1339
      %v1417 = vadd.f32 %v1261, %v1342
      %v1418 = vadd.f32 %v1262, %v1345
      %v1419 = vadd.f32 %v1263, %v1348
      %v1420 = vadd.f32 %v1264, %v1351
      %v1421 = vadd.f32 %v1265, %v1354
      %v1422 = vadd.f32 %v1266, %v1357
      %v1423 = vadd.f32 %v1267, %v1360
      %v1424 = vadd.f32 %v1268, %v1363
      %v1425 = vadd.f32 %v1269, %v1366
      %v1426 = vadd.f32 %v1270, %v1369
      %v1427 = vadd.f32 %v1271, %v1372
      %v1428 = vadd.f32 %v1272, %v1375
      %v1429 = vadd.f32 %v1273, %v1378
      %v1430 = vadd.f32 %v1274, %v1381
      %v1431 = vadd.f32 %v1275, %v1384
      %v1432 = vadd.f32 %v1276, %v1387
      %v1433 = vadd.f32 %v1277, %v1390
      %v1434 = vadd.f32 %v1278, %v1393
      %v1435 = vadd.f32 %v1279, %v1396
      %v1436 = vadd.f32 %v1280, %v1399
      %v1437 = vadd.f32 %v1281, %v1402
      %v1438 = vadd.f32 %v1282, %v1405
      %v1439 = vld [vmem:[#allocation2 + $0x2] sm:$0xff]
      %v1440 = vld [vmem:[#allocation2 + $0xa] sm:$0xff]
      %v1441 = vld [vmem:[#allocation2 + $0x1a] sm:$0xff]
      %v1442 = vld [vmem:[#allocation2 + $0x22] sm:$0xff]
      %v1443 = vld [vmem:[#allocation2 + $0x32] sm:$0xff]
      %v1444 = vld [vmem:[#allocation2 + $0x3a] sm:$0xff]
      %v1445 = vld [vmem:[#allocation2 + $0x4a] sm:$0xff]
      %v1446 = vld [vmem:[#allocation2 + $0x52] sm:$0xff]
      %v1447 = vld [vmem:[#allocation2 + $0x62] sm:$0xff]
      %v1448 = vld [vmem:[#allocation2 + $0x6a] sm:$0xff]
      %v1449 = vld [vmem:[#allocation2 + $0x7a] sm:$0xff]
      %v1450 = vld [vmem:[#allocation2 + $0x82] sm:$0xff]
      %v1451 = vld [vmem:[#allocation2 + $0x92] sm:$0xff]
      %v1452 = vld [vmem:[#allocation2 + $0x9a] sm:$0xff]
      %v1453 = vld [vmem:[#allocation2 + $0xaa] sm:$0xff]
      %v1454 = vld [vmem:[#allocation2 + $0xb2] sm:$0xff]
      %v1455 = vld [vmem:[#allocation2 + $0xc2] sm:$0xff]
      %v1456 = vld [vmem:[#allocation2 + $0xca] sm:$0xff]
      %v1457 = vld [vmem:[#allocation2 + $0xda] sm:$0xff]
      %v1458 = vld [vmem:[#allocation2 + $0xe2] sm:$0xff]
      %v1459 = vld [vmem:[#allocation2 + $0xf2] sm:$0xff]
      %v1460 = vld [vmem:[#allocation2 + $0xfa] sm:$0xff]
      %v1461 = vld [vmem:[#allocation2 + $0x10a] sm:$0xff]
      %v1462 = vld [vmem:[#allocation2 + $0x112] sm:$0xff]
      %v1463 = vld [vmem:[#allocation2 + $0x122] sm:$0xff]
      %v1464 = vld [vmem:[#allocation2 + $0x12a] sm:$0xff]
      %v1465 = vld [vmem:[#allocation2 + $0x13a] sm:$0xff]
      %v1466 = vld [vmem:[#allocation2 + $0x142] sm:$0xff]
      %v1467 = vld [vmem:[#allocation2 + $0x152] sm:$0xff]
      %v1468 = vld [vmem:[#allocation2 + $0x15a] sm:$0xff]
      %v1469 = vld [vmem:[#allocation2 + $0x16a] sm:$0xff]
      %v1470 = vld [vmem:[#allocation2 + $0x172] sm:$0xff]
      %v1471 = vld [vmem:[#allocation2 + $0x182] sm:$0xff]
      %v1472 = vld [vmem:[#allocation2 + $0x18a] sm:$0xff]
      %v1473 = vld [vmem:[#allocation2 + $0x19a] sm:$0xff]
      %v1474 = vld [vmem:[#allocation2 + $0x1a2] sm:$0xff]
      %s1475 = scalar_lea.vmem %s1, 8
      %v1476 = vld [vmem:[%s1475] sm:$0xf]
      %v1478 = vsel %vm204, %v1439, 0
      %v1481 = vsel %vm204, %v1440, 0
      %v1484 = vsel %vm204, %v1441, 0
      %v1487 = vsel %vm204, %v1442, 0
      %v1490 = vsel %vm204, %v1443, 0
      %v1493 = vsel %vm204, %v1444, 0
      %v1496 = vsel %vm204, %v1445, 0
      %v1499 = vsel %vm204, %v1446, 0
      %v1502 = vsel %vm204, %v1447, 0
      %v1505 = vsel %vm204, %v1448, 0
      %v1508 = vsel %vm204, %v1449, 0
      %v1511 = vsel %vm204, %v1450, 0
      %v1514 = vsel %vm204, %v1451, 0
      %v1517 = vsel %vm204, %v1452, 0
      %v1520 = vsel %vm204, %v1453, 0
      %v1523 = vsel %vm204, %v1454, 0
      %v1526 = vsel %vm204, %v1455, 0
      %v1529 = vsel %vm204, %v1456, 0
      %v1532 = vsel %vm204, %v1457, 0
      %v1535 = vsel %vm204, %v1458, 0
      %v1538 = vsel %vm204, %v1459, 0
      %v1541 = vsel %vm204, %v1460, 0
      %v1544 = vsel %vm204, %v1461, 0
      %v1547 = vsel %vm204, %v1462, 0
      %v1550 = vsel %vm204, %v1463, 0
      %v1553 = vsel %vm204, %v1464, 0
      %v1556 = vsel %vm204, %v1465, 0
      %v1559 = vsel %vm204, %v1466, 0
      %v1562 = vsel %vm204, %v1467, 0
      %v1565 = vsel %vm204, %v1468, 0
      %v1568 = vsel %vm204, %v1469, 0
      %v1571 = vsel %vm204, %v1470, 0
      %v1574 = vsel %vm450, %v1476, 0
      %1576 = vmatpush.msra.mxu0 0.0
      %1577 = vmatpush.msra.mxu0 0.0
      %1578 = vmatpush.msra.mxu0 0.0
      %1579 = vmatpush.msra.mxu0 0.0
      %1580 = vmatpush.msra.mxu0 0.0
      %1581 = vmatpush.msra.mxu0 0.0
      %1582 = vmatpush.msra.mxu0 0.0
      %1583 = vmatpush.msra.mxu0 0.0
      %1584 = vmatpush.msra.mxu0 0.0
      %1585 = vmatpush.msra.mxu0 0.0
      %1586 = vmatpush.msra.mxu0 0.0
      %1587 = vmatpush.msra.mxu0 0.0
      %1588 = vmatpush.msra.mxu0 0.0
      %1589 = vmatpush.msra.mxu0 0.0
      %1590 = vmatpush.msra.mxu0 0.0
      %1591 = vmatpush.msra.mxu0 %v1574
      %1592 = vmatmul.f32.gmra.mxu0 %v1478
      %v1593 = vpop.f32.mrf.mxu0
      %v1594 = vadd.f32 0.0, %v1593
      %1595 = vmatmul.f32.gmra.mxu0 %v1481
      %v1596 = vpop.f32.mrf.mxu0
      %v1597 = vadd.f32 0.0, %v1596
      %1598 = vmatmul.f32.gmra.mxu0 %v1484
      %v1599 = vpop.f32.mrf.mxu0
      %v1600 = vadd.f32 0.0, %v1599
      %1601 = vmatmul.f32.gmra.mxu0 %v1487
      %v1602 = vpop.f32.mrf.mxu0
      %v1603 = vadd.f32 0.0, %v1602
      %1604 = vmatmul.f32.gmra.mxu0 %v1490
      %v1605 = vpop.f32.mrf.mxu0
      %v1606 = vadd.f32 0.0, %v1605
      %1607 = vmatmul.f32.gmra.mxu0 %v1493
      %v1608 = vpop.f32.mrf.mxu0
      %v1609 = vadd.f32 0.0, %v1608
      %1610 = vmatmul.f32.gmra.mxu0 %v1496
      %v1611 = vpop.f32.mrf.mxu0
      %v1612 = vadd.f32 0.0, %v1611
      %1613 = vmatmul.f32.gmra.mxu0 %v1499
      %v1614 = vpop.f32.mrf.mxu0
      %v1615 = vadd.f32 0.0, %v1614
      %1616 = vmatmul.f32.gmra.mxu0 %v1502
      %v1617 = vpop.f32.mrf.mxu0
      %v1618 = vadd.f32 0.0, %v1617
      %1619 = vmatmul.f32.gmra.mxu0 %v1505
      %v1620 = vpop.f32.mrf.mxu0
      %v1621 = vadd.f32 0.0, %v1620
      %1622 = vmatmul.f32.gmra.mxu0 %v1508
      %v1623 = vpop.f32.mrf.mxu0
      %v1624 = vadd.f32 0.0, %v1623
      %1625 = vmatmul.f32.gmra.mxu0 %v1511
      %v1626 = vpop.f32.mrf.mxu0
      %v1627 = vadd.f32 0.0, %v1626
      %1628 = vmatmul.f32.gmra.mxu0 %v1514
      %v1629 = vpop.f32.mrf.mxu0
      %v1630 = vadd.f32 0.0, %v1629
      %1631 = vmatmul.f32.gmra.mxu0 %v1517
      %v1632 = vpop.f32.mrf.mxu0
      %v1633 = vadd.f32 0.0, %v1632
      %1634 = vmatmul.f32.gmra.mxu0 %v1520
      %v1635 = vpop.f32.mrf.mxu0
      %v1636 = vadd.f32 0.0, %v1635
      %1637 = vmatmul.f32.gmra.mxu0 %v1523
      %v1638 = vpop.f32.mrf.mxu0
      %v1639 = vadd.f32 0.0, %v1638
      %1640 = vmatmul.f32.gmra.mxu0 %v1526
      %v1641 = vpop.f32.mrf.mxu0
      %v1642 = vadd.f32 0.0, %v1641
      %1643 = vmatmul.f32.gmra.mxu0 %v1529
      %v1644 = vpop.f32.mrf.mxu0
      %v1645 = vadd.f32 0.0, %v1644
      %1646 = vmatmul.f32.gmra.mxu0 %v1532
      %v1647 = vpop.f32.mrf.mxu0
      %v1648 = vadd.f32 0.0, %v1647
      %1649 = vmatmul.f32.gmra.mxu0 %v1535
      %v1650 = vpop.f32.mrf.mxu0
      %v1651 = vadd.f32 0.0, %v1650
      %1652 = vmatmul.f32.gmra.mxu0 %v1538
      %v1653 = vpop.f32.mrf.mxu0
      %v1654 = vadd.f32 0.0, %v1653
      %1655 = vmatmul.f32.gmra.mxu0 %v1541
      %v1656 = vpop.f32.mrf.mxu0
      %v1657 = vadd.f32 0.0, %v1656
      %1658 = vmatmul.f32.gmra.mxu0 %v1544
      %v1659 = vpop.f32.mrf.mxu0
      %v1660 = vadd.f32 0.0, %v1659
      %1661 = vmatmul.f32.gmra.mxu0 %v1547
      %v1662 = vpop.f32.mrf.mxu0
      %v1663 = vadd.f32 0.0, %v1662
      %1664 = vmatmul.f32.gmra.mxu0 %v1550
      %v1665 = vpop.f32.mrf.mxu0
      %v1666 = vadd.f32 0.0, %v1665
      %1667 = vmatmul.f32.gmra.mxu0 %v1553
      %v1668 = vpop.f32.mrf.mxu0
      %v1669 = vadd.f32 0.0, %v1668
      %1670 = vmatmul.f32.gmra.mxu0 %v1556
      %v1671 = vpop.f32.mrf.mxu0
      %v1672 = vadd.f32 0.0, %v1671
      %1673 = vmatmul.f32.gmra.mxu0 %v1559
      %v1674 = vpop.f32.mrf.mxu0
      %v1675 = vadd.f32 0.0, %v1674
      %1676 = vmatmul.f32.gmra.mxu0 %v1562
      %v1677 = vpop.f32.mrf.mxu0
      %v1678 = vadd.f32 0.0, %v1677
      %1679 = vmatmul.f32.gmra.mxu0 %v1565
      %v1680 = vpop.f32.mrf.mxu0
      %v1681 = vadd.f32 0.0, %v1680
      %1682 = vmatmul.f32.gmra.mxu0 %v1568
      %v1683 = vpop.f32.mrf.mxu0
      %v1684 = vadd.f32 0.0, %v1683
      %1685 = vmatmul.f32.gmra.mxu0 %v1571
      %v1686 = vpop.f32.mrf.mxu0
      %v1687 = vadd.f32 0.0, %v1686
      %1688 = vdwg.mxu0
      %v1689 = vadd.f32 %v1407, %v1594
      %v1690 = vadd.f32 %v1408, %v1597
      %v1691 = vadd.f32 %v1409, %v1600
      %v1692 = vadd.f32 %v1410, %v1603
      %v1693 = vadd.f32 %v1411, %v1606
      %v1694 = vadd.f32 %v1412, %v1609
      %v1695 = vadd.f32 %v1413, %v1612
      %v1696 = vadd.f32 %v1414, %v1615
      %v1697 = vadd.f32 %v1415, %v1618
      %v1698 = vadd.f32 %v1416, %v1621
      %v1699 = vadd.f32 %v1417, %v1624
      %v1700 = vadd.f32 %v1418, %v1627
      %v1701 = vadd.f32 %v1419, %v1630
      %v1702 = vadd.f32 %v1420, %v1633
      %v1703 = vadd.f32 %v1421, %v1636
      %v1704 = vadd.f32 %v1422, %v1639
      %v1705 = vadd.f32 %v1423, %v1642
      %v1706 = vadd.f32 %v1424, %v1645
      %v1707 = vadd.f32 %v1425, %v1648
      %v1708 = vadd.f32 %v1426, %v1651
      %v1709 = vadd.f32 %v1427, %v1654
      %v1710 = vadd.f32 %v1428, %v1657
      %v1711 = vadd.f32 %v1429, %v1660
      %v1712 = vadd.f32 %v1430, %v1663
      %v1713 = vadd.f32 %v1431, %v1666
      %v1714 = vadd.f32 %v1432, %v1669
      %v1715 = vadd.f32 %v1433, %v1672
      %v1716 = vadd.f32 %v1434, %v1675
      %v1717 = vadd.f32 %v1435, %v1678
      %v1718 = vadd.f32 %v1436, %v1681
      %v1719 = vadd.f32 %v1437, %v1684
      %v1720 = vadd.f32 %v1438, %v1687
      %s1721 = scalar_lea.vmem %s1, 20
      %v1722 = vld [vmem:[%s1721] sm:$0xf]
      %v1724 = vsel %vm204, %v1471, 0
      %v1727 = vsel %vm204, %v1472, 0
      %v1730 = vsel %vm450, %v1722, 0
      %1732 = vmatpush.msra.mxu0 0.0
      %1733 = vmatpush.msra.mxu0 0.0
      %1734 = vmatpush.msra.mxu0 0.0
      %1735 = vmatpush.msra.mxu0 0.0
      %1736 = vmatpush.msra.mxu0 0.0
      %1737 = vmatpush.msra.mxu0 0.0
      %1738 = vmatpush.msra.mxu0 0.0
      %1739 = vmatpush.msra.mxu0 0.0
      %1740 = vmatpush.msra.mxu0 0.0
      %1741 = vmatpush.msra.mxu0 0.0
      %1742 = vmatpush.msra.mxu0 0.0
      %1743 = vmatpush.msra.mxu0 0.0
      %1744 = vmatpush.msra.mxu0 0.0
      %1745 = vmatpush.msra.mxu0 0.0
      %1746 = vmatpush.msra.mxu0 0.0
      %1747 = vmatpush.msra.mxu0 %v1730
      %1748 = vmatmul.f32.gmra.mxu0 %v1484
      %v1749 = vpop.f32.mrf.mxu0
      %v1750 = vadd.f32 0.0, %v1749
      %1751 = vmatmul.f32.gmra.mxu0 %v1487
      %v1752 = vpop.f32.mrf.mxu0
      %v1753 = vadd.f32 0.0, %v1752
      %1754 = vmatmul.f32.gmra.mxu0 %v1490
      %v1755 = vpop.f32.mrf.mxu0
      %v1756 = vadd.f32 0.0, %v1755
      %1757 = vmatmul.f32.gmra.mxu0 %v1493
      %v1758 = vpop.f32.mrf.mxu0
      %v1759 = vadd.f32 0.0, %v1758
      %1760 = vmatmul.f32.gmra.mxu0 %v1496
      %v1761 = vpop.f32.mrf.mxu0
      %v1762 = vadd.f32 0.0, %v1761
      %1763 = vmatmul.f32.gmra.mxu0 %v1499
      %v1764 = vpop.f32.mrf.mxu0
      %v1765 = vadd.f32 0.0, %v1764
      %1766 = vmatmul.f32.gmra.mxu0 %v1502
      %v1767 = vpop.f32.mrf.mxu0
      %v1768 = vadd.f32 0.0, %v1767
      %1769 = vmatmul.f32.gmra.mxu0 %v1505
      %v1770 = vpop.f32.mrf.mxu0
      %v1771 = vadd.f32 0.0, %v1770
      %1772 = vmatmul.f32.gmra.mxu0 %v1508
      %v1773 = vpop.f32.mrf.mxu0
      %v1774 = vadd.f32 0.0, %v1773
      %1775 = vmatmul.f32.gmra.mxu0 %v1511
      %v1776 = vpop.f32.mrf.mxu0
      %v1777 = vadd.f32 0.0, %v1776
      %1778 = vmatmul.f32.gmra.mxu0 %v1514
      %v1779 = vpop.f32.mrf.mxu0
      %v1780 = vadd.f32 0.0, %v1779
      %1781 = vmatmul.f32.gmra.mxu0 %v1517
      %v1782 = vpop.f32.mrf.mxu0
      %v1783 = vadd.f32 0.0, %v1782
      %1784 = vmatmul.f32.gmra.mxu0 %v1520
      %v1785 = vpop.f32.mrf.mxu0
      %v1786 = vadd.f32 0.0, %v1785
      %1787 = vmatmul.f32.gmra.mxu0 %v1523
      %v1788 = vpop.f32.mrf.mxu0
      %v1789 = vadd.f32 0.0, %v1788
      %1790 = vmatmul.f32.gmra.mxu0 %v1526
      %v1791 = vpop.f32.mrf.mxu0
      %v1792 = vadd.f32 0.0, %v1791
      %1793 = vmatmul.f32.gmra.mxu0 %v1529
      %v1794 = vpop.f32.mrf.mxu0
      %v1795 = vadd.f32 0.0, %v1794
      %1796 = vmatmul.f32.gmra.mxu0 %v1532
      %v1797 = vpop.f32.mrf.mxu0
      %v1798 = vadd.f32 0.0, %v1797
      %1799 = vmatmul.f32.gmra.mxu0 %v1535
      %v1800 = vpop.f32.mrf.mxu0
      %v1801 = vadd.f32 0.0, %v1800
      %1802 = vmatmul.f32.gmra.mxu0 %v1538
      %v1803 = vpop.f32.mrf.mxu0
      %v1804 = vadd.f32 0.0, %v1803
      %1805 = vmatmul.f32.gmra.mxu0 %v1541
      %v1806 = vpop.f32.mrf.mxu0
      %v1807 = vadd.f32 0.0, %v1806
      %1808 = vmatmul.f32.gmra.mxu0 %v1544
      %v1809 = vpop.f32.mrf.mxu0
      %v1810 = vadd.f32 0.0, %v1809
      %1811 = vmatmul.f32.gmra.mxu0 %v1547
      %v1812 = vpop.f32.mrf.mxu0
      %v1813 = vadd.f32 0.0, %v1812
      %1814 = vmatmul.f32.gmra.mxu0 %v1550
      %v1815 = vpop.f32.mrf.mxu0
      %v1816 = vadd.f32 0.0, %v1815
      %1817 = vmatmul.f32.gmra.mxu0 %v1553
      %v1818 = vpop.f32.mrf.mxu0
      %v1819 = vadd.f32 0.0, %v1818
      %1820 = vmatmul.f32.gmra.mxu0 %v1556
      %v1821 = vpop.f32.mrf.mxu0
      %v1822 = vadd.f32 0.0, %v1821
      %1823 = vmatmul.f32.gmra.mxu0 %v1559
      %v1824 = vpop.f32.mrf.mxu0
      %v1825 = vadd.f32 0.0, %v1824
      %1826 = vmatmul.f32.gmra.mxu0 %v1562
      %v1827 = vpop.f32.mrf.mxu0
      %v1828 = vadd.f32 0.0, %v1827
      %1829 = vmatmul.f32.gmra.mxu0 %v1565
      %v1830 = vpop.f32.mrf.mxu0
      %v1831 = vadd.f32 0.0, %v1830
      %1832 = vmatmul.f32.gmra.mxu0 %v1568
      %v1833 = vpop.f32.mrf.mxu0
      %v1834 = vadd.f32 0.0, %v1833
      %1835 = vmatmul.f32.gmra.mxu0 %v1571
      %v1836 = vpop.f32.mrf.mxu0
      %v1837 = vadd.f32 0.0, %v1836
      %1838 = vmatmul.f32.gmra.mxu0 %v1724
      %v1839 = vpop.f32.mrf.mxu0
      %v1840 = vadd.f32 0.0, %v1839
      %1841 = vmatmul.f32.gmra.mxu0 %v1727
      %v1842 = vpop.f32.mrf.mxu0
      %v1843 = vadd.f32 0.0, %v1842
      %1844 = vdwg.mxu0
      %v1845 = vadd.f32 %v1689, %v1750
      %v1846 = vadd.f32 %v1690, %v1753
      %v1847 = vadd.f32 %v1691, %v1756
      %v1848 = vadd.f32 %v1692, %v1759
      %v1849 = vadd.f32 %v1693, %v1762
      %v1850 = vadd.f32 %v1694, %v1765
      %v1851 = vadd.f32 %v1695, %v1768
      %v1852 = vadd.f32 %v1696, %v1771
      %v1853 = vadd.f32 %v1697, %v1774
      %v1854 = vadd.f32 %v1698, %v1777
      %v1855 = vadd.f32 %v1699, %v1780
      %v1856 = vadd.f32 %v1700, %v1783
      %v1857 = vadd.f32 %v1701, %v1786
      %v1858 = vadd.f32 %v1702, %v1789
      %v1859 = vadd.f32 %v1703, %v1792
      %v1860 = vadd.f32 %v1704, %v1795
      %v1861 = vadd.f32 %v1705, %v1798
      %v1862 = vadd.f32 %v1706, %v1801
      %v1863 = vadd.f32 %v1707, %v1804
      %v1864 = vadd.f32 %v1708, %v1807
      %v1865 = vadd.f32 %v1709, %v1810
      %v1866 = vadd.f32 %v1710, %v1813
      %v1867 = vadd.f32 %v1711, %v1816
      %v1868 = vadd.f32 %v1712, %v1819
      %v1869 = vadd.f32 %v1713, %v1822
      %v1870 = vadd.f32 %v1714, %v1825
      %v1871 = vadd.f32 %v1715, %v1828
      %v1872 = vadd.f32 %v1716, %v1831
      %v1873 = vadd.f32 %v1717, %v1834
      %v1874 = vadd.f32 %v1718, %v1837
      %v1875 = vadd.f32 %v1719, %v1840
      %v1876 = vadd.f32 %v1720, %v1843
      %s1877 = scalar_lea.vmem %s1, 32
      %v1878 = vld [vmem:[%s1877] sm:$0xf]
      %v1880 = vsel %vm204, %v1473, 0
      %v1883 = vsel %vm204, %v1474, 0
      %v1886 = vsel %vm450, %v1878, 0
      %1888 = vmatpush.msra.mxu0 0.0
      %1889 = vmatpush.msra.mxu0 0.0
      %1890 = vmatpush.msra.mxu0 0.0
      %1891 = vmatpush.msra.mxu0 0.0
      %1892 = vmatpush.msra.mxu0 0.0
      %1893 = vmatpush.msra.mxu0 0.0
      %1894 = vmatpush.msra.mxu0 0.0
      %1895 = vmatpush.msra.mxu0 0.0
      %1896 = vmatpush.msra.mxu0 0.0
      %1897 = vmatpush.msra.mxu0 0.0
      %1898 = vmatpush.msra.mxu0 0.0
      %1899 = vmatpush.msra.mxu0 0.0
      %1900 = vmatpush.msra.mxu0 0.0
      %1901 = vmatpush.msra.mxu0 0.0
      %1902 = vmatpush.msra.mxu0 0.0
      %1903 = vmatpush.msra.mxu0 %v1886
      %1904 = vmatmul.f32.gmra.mxu0 %v1490
      %v1905 = vpop.f32.mrf.mxu0
      %v1906 = vadd.f32 0.0, %v1905
      %1907 = vmatmul.f32.gmra.mxu0 %v1493
      %v1908 = vpop.f32.mrf.mxu0
      %v1909 = vadd.f32 0.0, %v1908
      %1910 = vmatmul.f32.gmra.mxu0 %v1496
      %v1911 = vpop.f32.mrf.mxu0
      %v1912 = vadd.f32 0.0, %v1911
      %1913 = vmatmul.f32.gmra.mxu0 %v1499
      %v1914 = vpop.f32.mrf.mxu0
      %v1915 = vadd.f32 0.0, %v1914
      %1916 = vmatmul.f32.gmra.mxu0 %v1502
      %v1917 = vpop.f32.mrf.mxu0
      %v1918 = vadd.f32 0.0, %v1917
      %1919 = vmatmul.f32.gmra.mxu0 %v1505
      %v1920 = vpop.f32.mrf.mxu0
      %v1921 = vadd.f32 0.0, %v1920
      %1922 = vmatmul.f32.gmra.mxu0 %v1508
      %v1923 = vpop.f32.mrf.mxu0
      %v1924 = vadd.f32 0.0, %v1923
      %1925 = vmatmul.f32.gmra.mxu0 %v1511
      %v1926 = vpop.f32.mrf.mxu0
      %v1927 = vadd.f32 0.0, %v1926
      %1928 = vmatmul.f32.gmra.mxu0 %v1514
      %v1929 = vpop.f32.mrf.mxu0
      %v1930 = vadd.f32 0.0, %v1929
      %1931 = vmatmul.f32.gmra.mxu0 %v1517
      %v1932 = vpop.f32.mrf.mxu0
      %v1933 = vadd.f32 0.0, %v1932
      %1934 = vmatmul.f32.gmra.mxu0 %v1520
      %v1935 = vpop.f32.mrf.mxu0
      %v1936 = vadd.f32 0.0, %v1935
      %1937 = vmatmul.f32.gmra.mxu0 %v1523
      %v1938 = vpop.f32.mrf.mxu0
      %v1939 = vadd.f32 0.0, %v1938
      %1940 = vmatmul.f32.gmra.mxu0 %v1526
      %v1941 = vpop.f32.mrf.mxu0
      %v1942 = vadd.f32 0.0, %v1941
      %1943 = vmatmul.f32.gmra.mxu0 %v1529
      %v1944 = vpop.f32.mrf.mxu0
      %v1945 = vadd.f32 0.0, %v1944
      %1946 = vmatmul.f32.gmra.mxu0 %v1532
      %v1947 = vpop.f32.mrf.mxu0
      %v1948 = vadd.f32 0.0, %v1947
      %1949 = vmatmul.f32.gmra.mxu0 %v1535
      %v1950 = vpop.f32.mrf.mxu0
      %v1951 = vadd.f32 0.0, %v1950
      %1952 = vmatmul.f32.gmra.mxu0 %v1538
      %v1953 = vpop.f32.mrf.mxu0
      %v1954 = vadd.f32 0.0, %v1953
      %1955 = vmatmul.f32.gmra.mxu0 %v1541
      %v1956 = vpop.f32.mrf.mxu0
      %v1957 = vadd.f32 0.0, %v1956
      %1958 = vmatmul.f32.gmra.mxu0 %v1544
      %v1959 = vpop.f32.mrf.mxu0
      %v1960 = vadd.f32 0.0, %v1959
      %1961 = vmatmul.f32.gmra.mxu0 %v1547
      %v1962 = vpop.f32.mrf.mxu0
      %v1963 = vadd.f32 0.0, %v1962
      %1964 = vmatmul.f32.gmra.mxu0 %v1550
      %v1965 = vpop.f32.mrf.mxu0
      %v1966 = vadd.f32 0.0, %v1965
      %1967 = vmatmul.f32.gmra.mxu0 %v1553
      %v1968 = vpop.f32.mrf.mxu0
      %v1969 = vadd.f32 0.0, %v1968
      %1970 = vmatmul.f32.gmra.mxu0 %v1556
      %v1971 = vpop.f32.mrf.mxu0
      %v1972 = vadd.f32 0.0, %v1971
      %1973 = vmatmul.f32.gmra.mxu0 %v1559
      %v1974 = vpop.f32.mrf.mxu0
      %v1975 = vadd.f32 0.0, %v1974
      %1976 = vmatmul.f32.gmra.mxu0 %v1562
      %v1977 = vpop.f32.mrf.mxu0
      %v1978 = vadd.f32 0.0, %v1977
      %1979 = vmatmul.f32.gmra.mxu0 %v1565
      %v1980 = vpop.f32.mrf.mxu0
      %v1981 = vadd.f32 0.0, %v1980
      %1982 = vmatmul.f32.gmra.mxu0 %v1568
      %v1983 = vpop.f32.mrf.mxu0
      %v1984 = vadd.f32 0.0, %v1983
      %1985 = vmatmul.f32.gmra.mxu0 %v1571
      %v1986 = vpop.f32.mrf.mxu0
      %v1987 = vadd.f32 0.0, %v1986
      %1988 = vmatmul.f32.gmra.mxu0 %v1724
      %v1989 = vpop.f32.mrf.mxu0
      %v1990 = vadd.f32 0.0, %v1989
      %1991 = vmatmul.f32.gmra.mxu0 %v1727
      %v1992 = vpop.f32.mrf.mxu0
      %v1993 = vadd.f32 0.0, %v1992
      %1994 = vmatmul.f32.gmra.mxu0 %v1880
      %v1995 = vpop.f32.mrf.mxu0
      %v1996 = vadd.f32 0.0, %v1995
      %1997 = vmatmul.f32.gmra.mxu0 %v1883
      %v1998 = vpop.f32.mrf.mxu0
      %v1999 = vadd.f32 0.0, %v1998
      %2000 = vdwg.mxu0
      %v2001 = vadd.f32 %v1845, %v1906
      %v2002 = vadd.f32 %v1846, %v1909
      %v2003 = vadd.f32 %v1847, %v1912
      %v2004 = vadd.f32 %v1848, %v1915
      %v2005 = vadd.f32 %v1849, %v1918
      %v2006 = vadd.f32 %v1850, %v1921
      %v2007 = vadd.f32 %v1851, %v1924
      %v2008 = vadd.f32 %v1852, %v1927
      %v2009 = vadd.f32 %v1853, %v1930
      %v2010 = vadd.f32 %v1854, %v1933
      %v2011 = vadd.f32 %v1855, %v1936
      %v2012 = vadd.f32 %v1856, %v1939
      %v2013 = vadd.f32 %v1857, %v1942
      %v2014 = vadd.f32 %v1858, %v1945
      %v2015 = vadd.f32 %v1859, %v1948
      %v2016 = vadd.f32 %v1860, %v1951
      %v2017 = vadd.f32 %v1861, %v1954
      %v2018 = vadd.f32 %v1862, %v1957
      %v2019 = vadd.f32 %v1863, %v1960
      %v2020 = vadd.f32 %v1864, %v1963
      %v2021 = vadd.f32 %v1865, %v1966
      %v2022 = vadd.f32 %v1866, %v1969
      %v2023 = vadd.f32 %v1867, %v1972
      %v2024 = vadd.f32 %v1868, %v1975
      %v2025 = vadd.f32 %v1869, %v1978
      %v2026 = vadd.f32 %v1870, %v1981
      %v2027 = vadd.f32 %v1871, %v1984
      %v2028 = vadd.f32 %v1872, %v1987
      %v2029 = vadd.f32 %v1873, %v1990
      %v2030 = vadd.f32 %v1874, %v1993
      %v2031 = vadd.f32 %v1875, %v1996
      %v2032 = vadd.f32 %v1876, %v1999
      %v2033 = vsel %vm204, %v2001, 0.0
      %v2034 = vsel %vm204, %v2002, 0.0
      %v2035 = vadd.f32 %v2033, %v2034
      %v2036 = vsel %vm204, %v2003, 0.0
      %v2037 = vadd.f32 %v2035, %v2036
      %v2038 = vsel %vm204, %v2004, 0.0
      %v2039 = vadd.f32 %v2037, %v2038
      %v2040 = vsel %vm204, %v2005, 0.0
      %v2041 = vadd.f32 %v2039, %v2040
      %v2042 = vsel %vm204, %v2006, 0.0
      %v2043 = vadd.f32 %v2041, %v2042
      %v2044 = vsel %vm204, %v2007, 0.0
      %v2045 = vadd.f32 %v2043, %v2044
      %v2046 = vsel %vm204, %v2008, 0.0
      %v2047 = vadd.f32 %v2045, %v2046
      %v2048 = vsel %vm204, %v2009, 0.0
      %v2049 = vadd.f32 %v2047, %v2048
      %v2050 = vsel %vm204, %v2010, 0.0
      %v2051 = vadd.f32 %v2049, %v2050
      %v2052 = vsel %vm204, %v2011, 0.0
      %v2053 = vadd.f32 %v2051, %v2052
      %v2054 = vsel %vm204, %v2012, 0.0
      %v2055 = vadd.f32 %v2053, %v2054
      %v2056 = vsel %vm204, %v2013, 0.0
      %v2057 = vadd.f32 %v2055, %v2056
      %v2058 = vsel %vm204, %v2014, 0.0
      %v2059 = vadd.f32 %v2057, %v2058
      %v2060 = vsel %vm204, %v2015, 0.0
      %v2061 = vadd.f32 %v2059, %v2060
      %v2062 = vsel %vm204, %v2016, 0.0
      %v2063 = vadd.f32 %v2061, %v2062
      %v2064 = vsel %vm204, %v2017, 0.0
      %v2065 = vadd.f32 %v2063, %v2064
      %v2066 = vsel %vm204, %v2018, 0.0
      %v2067 = vadd.f32 %v2065, %v2066
      %v2068 = vsel %vm204, %v2019, 0.0
      %v2069 = vadd.f32 %v2067, %v2068
      %v2070 = vsel %vm204, %v2020, 0.0
      %v2071 = vadd.f32 %v2069, %v2070
      %v2072 = vsel %vm204, %v2021, 0.0
      %v2073 = vadd.f32 %v2071, %v2072
      %v2074 = vsel %vm204, %v2022, 0.0
      %v2075 = vadd.f32 %v2073, %v2074
      %v2076 = vsel %vm204, %v2023, 0.0
      %v2077 = vadd.f32 %v2075, %v2076
      %v2078 = vsel %vm204, %v2024, 0.0
      %v2079 = vadd.f32 %v2077, %v2078
      %v2080 = vsel %vm204, %v2025, 0.0
      %v2081 = vadd.f32 %v2079, %v2080
      %v2082 = vsel %vm204, %v2026, 0.0
      %v2083 = vadd.f32 %v2081, %v2082
      %v2084 = vsel %vm204, %v2027, 0.0
      %v2085 = vadd.f32 %v2083, %v2084
      %v2086 = vsel %vm204, %v2028, 0.0
      %v2087 = vadd.f32 %v2085, %v2086
      %v2088 = vsel %vm204, %v2029, 0.0
      %v2089 = vadd.f32 %v2087, %v2088
      %v2090 = vsel %vm204, %v2030, 0.0
      %v2091 = vadd.f32 %v2089, %v2090
      %v2092 = vsel %vm204, %v2031, 0.0
      %v2093 = vadd.f32 %v2091, %v2092
      %v2094 = vsel %vm204, %v2032, 0.0
      %v2095 = vadd.f32 %v2093, %v2094
      %v2096 = vrot.slane %v2095, 4
      %v2097 = vadd.f32 %v2095, %v2096
      %v2098 = vrot.slane %v2097, 2
      %v2099 = vadd.f32 %v2097, %v2098
      %v2100 = vrot.slane %v2099, 1
      %v2101 = vadd.f32 %v2099, %v2100
      %v2102 = vmul.f32 %v2101, 0.00390625
      %v2103 = vmul.f32 %v2001, %v2001
      %v2104 = vmul.f32 %v2002, %v2002
      %v2105 = vmul.f32 %v2003, %v2003
      %v2106 = vmul.f32 %v2004, %v2004
      %v2107 = vmul.f32 %v2005, %v2005
      %v2108 = vmul.f32 %v2006, %v2006
      %v2109 = vmul.f32 %v2007, %v2007
      %v2110 = vmul.f32 %v2008, %v2008
      %v2111 = vmul.f32 %v2009, %v2009
      %v2112 = vmul.f32 %v2010, %v2010
      %v2113 = vmul.f32 %v2011, %v2011
      %v2114 = vmul.f32 %v2012, %v2012
      %v2115 = vmul.f32 %v2013, %v2013
      %v2116 = vmul.f32 %v2014, %v2014
      %v2117 = vmul.f32 %v2015, %v2015
      %v2118 = vmul.f32 %v2016, %v2016
      %v2119 = vmul.f32 %v2017, %v2017
      %v2120 = vmul.f32 %v2018, %v2018
      %v2121 = vmul.f32 %v2019, %v2019
      %v2122 = vmul.f32 %v2020, %v2020
      %v2123 = vmul.f32 %v2021, %v2021
      %v2124 = vmul.f32 %v2022, %v2022
      %v2125 = vmul.f32 %v2023, %v2023
      %v2126 = vmul.f32 %v2024, %v2024
      %v2127 = vmul.f32 %v2025, %v2025
      %v2128 = vmul.f32 %v2026, %v2026
      %v2129 = vmul.f32 %v2027, %v2027
      %v2130 = vmul.f32 %v2028, %v2028
      %v2131 = vmul.f32 %v2029, %v2029
      %v2132 = vmul.f32 %v2030, %v2030
      %v2133 = vmul.f32 %v2031, %v2031
      %v2134 = vmul.f32 %v2032, %v2032
      %v2135 = vsel %vm204, %v2103, 0.0
      %v2136 = vsel %vm204, %v2104, 0.0
      %v2137 = vadd.f32 %v2135, %v2136
      %v2138 = vsel %vm204, %v2105, 0.0
      %v2139 = vadd.f32 %v2137, %v2138
      %v2140 = vsel %vm204, %v2106, 0.0
      %v2141 = vadd.f32 %v2139, %v2140
      %v2142 = vsel %vm204, %v2107, 0.0
      %v2143 = vadd.f32 %v2141, %v2142
      %v2144 = vsel %vm204, %v2108, 0.0
      %v2145 = vadd.f32 %v2143, %v2144
      %v2146 = vsel %vm204, %v2109, 0.0
      %v2147 = vadd.f32 %v2145, %v2146
      %v2148 = vsel %vm204, %v2110, 0.0
      %v2149 = vadd.f32 %v2147, %v2148
      %v2150 = vsel %vm204, %v2111, 0.0
      %v2151 = vadd.f32 %v2149, %v2150
      %v2152 = vsel %vm204, %v2112, 0.0
      %v2153 = vadd.f32 %v2151, %v2152
      %v2154 = vsel %vm204, %v2113, 0.0
      %v2155 = vadd.f32 %v2153, %v2154
      %v2156 = vsel %vm204, %v2114, 0.0
      %v2157 = vadd.f32 %v2155, %v2156
      %v2158 = vsel %vm204, %v2115, 0.0
      %v2159 = vadd.f32 %v2157, %v2158
      %v2160 = vsel %vm204, %v2116, 0.0
      %v2161 = vadd.f32 %v2159, %v2160
      %v2162 = vsel %vm204, %v2117, 0.0
      %v2163 = vadd.f32 %v2161, %v2162
      %v2164 = vsel %vm204, %v2118, 0.0
      %v2165 = vadd.f32 %v2163, %v2164
      %v2166 = vsel %vm204, %v2119, 0.0
      %v2167 = vadd.f32 %v2165, %v2166
      %v2168 = vsel %vm204, %v2120, 0.0
      %v2169 = vadd.f32 %v2167, %v2168
      %v2170 = vsel %vm204, %v2121, 0.0
      %v2171 = vadd.f32 %v2169, %v2170
      %v2172 = vsel %vm204, %v2122, 0.0
      %v2173 = vadd.f32 %v2171, %v2172
      %v2174 = vsel %vm204, %v2123, 0.0
      %v2175 = vadd.f32 %v2173, %v2174
      %v2176 = vsel %vm204, %v2124, 0.0
      %v2177 = vadd.f32 %v2175, %v2176
      %v2178 = vsel %vm204, %v2125, 0.0
      %v2179 = vadd.f32 %v2177, %v2178
      %v2180 = vsel %vm204, %v2126, 0.0
      %v2181 = vadd.f32 %v2179, %v2180
      %v2182 = vsel %vm204, %v2127, 0.0
      %v2183 = vadd.f32 %v2181, %v2182
      %v2184 = vsel %vm204, %v2128, 0.0
      %v2185 = vadd.f32 %v2183, %v2184
      %v2186 = vsel %vm204, %v2129, 0.0
      %v2187 = vadd.f32 %v2185, %v2186
      %v2188 = vsel %vm204, %v2130, 0.0
      %v2189 = vadd.f32 %v2187, %v2188
      %v2190 = vsel %vm204, %v2131, 0.0
      %v2191 = vadd.f32 %v2189, %v2190
      %v2192 = vsel %vm204, %v2132, 0.0
      %v2193 = vadd.f32 %v2191, %v2192
      %v2194 = vsel %vm204, %v2133, 0.0
      %v2195 = vadd.f32 %v2193, %v2194
      %v2196 = vsel %vm204, %v2134, 0.0
      %v2197 = vadd.f32 %v2195, %v2196
      %v2198 = vrot.slane %v2197, 4
      %v2199 = vadd.f32 %v2197, %v2198
      %v2200 = vrot.slane %v2199, 2
      %v2201 = vadd.f32 %v2199, %v2200
      %v2202 = vrot.slane %v2201, 1
      %v2203 = vadd.f32 %v2201, %v2202
      %v2204 = vmul.f32 %v2203, 0.00390625
      %v2205 = vmul.f32 %v2102, %v2102
      %v2206 = vsub.f32 %v2204, %v2205
      %v2207 = vsub.f32 %v2001, %v2102
      %v2208 = vsub.f32 %v2002, %v2102
      %v2209 = vsub.f32 %v2003, %v2102
      %v2210 = vsub.f32 %v2004, %v2102
      %v2211 = vsub.f32 %v2005, %v2102
      %v2212 = vsub.f32 %v2006, %v2102
      %v2213 = vsub.f32 %v2007, %v2102
      %v2214 = vsub.f32 %v2008, %v2102
      %v2215 = vsub.f32 %v2009, %v2102
      %v2216 = vsub.f32 %v2010, %v2102
      %v2217 = vsub.f32 %v2011, %v2102
      %v2218 = vsub.f32 %v2012, %v2102
      %v2219 = vsub.f32 %v2013, %v2102
      %v2220 = vsub.f32 %v2014, %v2102
      %v2221 = vsub.f32 %v2015, %v2102
      %v2222 = vsub.f32 %v2016, %v2102
      %v2223 = vsub.f32 %v2017, %v2102
      %v2224 = vsub.f32 %v2018, %v2102
      %v2225 = vsub.f32 %v2019, %v2102
      %v2226 = vsub.f32 %v2020, %v2102
      %v2227 = vsub.f32 %v2021, %v2102
      %v2228 = vsub.f32 %v2022, %v2102
      %v2229 = vsub.f32 %v2023, %v2102
      %v2230 = vsub.f32 %v2024, %v2102
      %v2231 = vsub.f32 %v2025, %v2102
      %v2232 = vsub.f32 %v2026, %v2102
      %v2233 = vsub.f32 %v2027, %v2102
      %v2234 = vsub.f32 %v2028, %v2102
      %v2235 = vsub.f32 %v2029, %v2102
      %v2236 = vsub.f32 %v2030, %v2102
      %v2237 = vsub.f32 %v2031, %v2102
      %v2238 = vsub.f32 %v2032, %v2102
      %v2239 = vadd.f32 %v2206, 1e-05
      %v2240 = vrsqrt.pop %v2239
      %v2241 = vmul.f32 %v2240, %v2239
      %v2242 = vmul.f32 %v2241, %v2240
      %v2243 = vmul.f32 0.5, %v2242
      %v2244 = vsub.f32 1.5, %v2243
      %v2245 = vmul.f32 %v2240, %v2244
      %vm2246 = vweird.f32 %v2239
      %vm2247 = vweird.f32 %v2240
      %vm2248 = vmor %vm2246, %vm2247
      %v2249 = vsel %vm2248, %v2240, %v2245
      %v2250 = vmul.f32 %v2207, %v2249
      %v2251 = vmul.f32 %v2208, %v2249
      %v2252 = vmul.f32 %v2209, %v2249
      %v2253 = vmul.f32 %v2210, %v2249
      %v2254 = vmul.f32 %v2211, %v2249
      %v2255 = vmul.f32 %v2212, %v2249
      %v2256 = vmul.f32 %v2213, %v2249
      %v2257 = vmul.f32 %v2214, %v2249
      %v2258 = vmul.f32 %v2215, %v2249
      %v2259 = vmul.f32 %v2216, %v2249
      %v2260 = vmul.f32 %v2217, %v2249
      %v2261 = vmul.f32 %v2218, %v2249
      %v2262 = vmul.f32 %v2219, %v2249
      %v2263 = vmul.f32 %v2220, %v2249
      %v2264 = vmul.f32 %v2221, %v2249
      %v2265 = vmul.f32 %v2222, %v2249
      %v2266 = vmul.f32 %v2223, %v2249
      %v2267 = vmul.f32 %v2224, %v2249
      %v2268 = vmul.f32 %v2225, %v2249
      %v2269 = vmul.f32 %v2226, %v2249
      %v2270 = vmul.f32 %v2227, %v2249
      %v2271 = vmul.f32 %v2228, %v2249
      %v2272 = vmul.f32 %v2229, %v2249
      %v2273 = vmul.f32 %v2230, %v2249
      %v2274 = vmul.f32 %v2231, %v2249
      %v2275 = vmul.f32 %v2232, %v2249
      %v2276 = vmul.f32 %v2233, %v2249
      %v2277 = vmul.f32 %v2234, %v2249
      %v2278 = vmul.f32 %v2235, %v2249
      %v2279 = vmul.f32 %v2236, %v2249
      %v2280 = vmul.f32 %v2237, %v2249
      %v2281 = vmul.f32 %v2238, %v2249
      %v2282 = vmax.f32 %v2250, 0.0
      %v2283 = vmax.f32 %v2251, 0.0
      %v2284 = vmax.f32 %v2252, 0.0
      %v2285 = vmax.f32 %v2253, 0.0
      %v2286 = vmax.f32 %v2254, 0.0
      %v2287 = vmax.f32 %v2255, 0.0
      %v2288 = vmax.f32 %v2256, 0.0
      %v2289 = vmax.f32 %v2257, 0.0
      %v2290 = vmax.f32 %v2258, 0.0
      %v2291 = vmax.f32 %v2259, 0.0
      %v2292 = vmax.f32 %v2260, 0.0
      %v2293 = vmax.f32 %v2261, 0.0
      %v2294 = vmax.f32 %v2262, 0.0
      %v2295 = vmax.f32 %v2263, 0.0
      %v2296 = vmax.f32 %v2264, 0.0
      %v2297 = vmax.f32 %v2265, 0.0
      %v2298 = vmax.f32 %v2266, 0.0
      %v2299 = vmax.f32 %v2267, 0.0
      %v2300 = vmax.f32 %v2268, 0.0
      %v2301 = vmax.f32 %v2269, 0.0
      %v2302 = vmax.f32 %v2270, 0.0
      %v2303 = vmax.f32 %v2271, 0.0
      %v2304 = vmax.f32 %v2272, 0.0
      %v2305 = vmax.f32 %v2273, 0.0
      %v2306 = vmax.f32 %v2274, 0.0
      %v2307 = vmax.f32 %v2275, 0.0
      %v2308 = vmax.f32 %v2276, 0.0
      %v2309 = vmax.f32 %v2277, 0.0
      %v2310 = vmax.f32 %v2278, 0.0
      %v2311 = vmax.f32 %v2279, 0.0
      %v2312 = vmax.f32 %v2280, 0.0
      %v2313 = vmax.f32 %v2281, 0.0
      %s2314 = scalar_lea.vmem [#allocation3], 24
      %2315 = vst.msk [vmem:[%s2314 + $0x1] sm:$0xff] %vm204, %v2282
      %2316 = vst.msk [vmem:[%s2314 + $0x9] sm:$0xff] %vm204, %v2283
      %2317 = vst.msk [vmem:[%s2314 + $0x19] sm:$0xff] %vm204, %v2284
      %2318 = vst.msk [vmem:[%s2314 + $0x21] sm:$0xff] %vm204, %v2285
      %2319 = vst.msk [vmem:[%s2314 + $0x31] sm:$0xff] %vm204, %v2286
      %2320 = vst.msk [vmem:[%s2314 + $0x39] sm:$0xff] %vm204, %v2287
      %2321 = vst.msk [vmem:[%s2314 + $0x49] sm:$0xff] %vm204, %v2288
      %2322 = vst.msk [vmem:[%s2314 + $0x51] sm:$0xff] %vm204, %v2289
      %2323 = vst.msk [vmem:[%s2314 + $0x61] sm:$0xff] %vm204, %v2290
      %2324 = vst.msk [vmem:[%s2314 + $0x69] sm:$0xff] %vm204, %v2291
      %2325 = vst.msk [vmem:[%s2314 + $0x79] sm:$0xff] %vm204, %v2292
      %2326 = vst.msk [vmem:[%s2314 + $0x81] sm:$0xff] %vm204, %v2293
      %2327 = vst.msk [vmem:[%s2314 + $0x91] sm:$0xff] %vm204, %v2294
      %2328 = vst.msk [vmem:[%s2314 + $0x99] sm:$0xff] %vm204, %v2295
      %2329 = vst.msk [vmem:[%s2314 + $0xa9] sm:$0xff] %vm204, %v2296
      %2330 = vst.msk [vmem:[%s2314 + $0xb1] sm:$0xff] %vm204, %v2297
      %2331 = vst.msk [vmem:[%s2314 + $0xc1] sm:$0xff] %vm204, %v2298
      %2332 = vst.msk [vmem:[%s2314 + $0xc9] sm:$0xff] %vm204, %v2299
      %2333 = vst.msk [vmem:[%s2314 + $0xd9] sm:$0xff] %vm204, %v2300
      %2334 = vst.msk [vmem:[%s2314 + $0xe1] sm:$0xff] %vm204, %v2301
      %2335 = vst.msk [vmem:[%s2314 + $0xf1] sm:$0xff] %vm204, %v2302
      %2336 = vst.msk [vmem:[%s2314 + $0xf9] sm:$0xff] %vm204, %v2303
      %2337 = vst.msk [vmem:[%s2314 + $0x109] sm:$0xff] %vm204, %v2304
      %2338 = vst.msk [vmem:[%s2314 + $0x111] sm:$0xff] %vm204, %v2305
      %2339 = vst.msk [vmem:[%s2314 + $0x121] sm:$0xff] %vm204, %v2306
      %2340 = vst.msk [vmem:[%s2314 + $0x129] sm:$0xff] %vm204, %v2307
      %2341 = vst.msk [vmem:[%s2314 + $0x139] sm:$0xff] %vm204, %v2308
      %2342 = vst.msk [vmem:[%s2314 + $0x141] sm:$0xff] %vm204, %v2309
      %2343 = vst.msk [vmem:[%s2314 + $0x151] sm:$0xff] %vm204, %v2310
      %2344 = vst.msk [vmem:[%s2314 + $0x159] sm:$0xff] %vm204, %v2311
      %2345 = vst.msk [vmem:[%s2314 + $0x169] sm:$0xff] %vm204, %v2312
      %2346 = vst.msk [vmem:[%s2314 + $0x171] sm:$0xff] %vm204, %v2313
      %2347 = vst.msk [vmem:[#allocation3 + $0x1] sm:$0xff] %vm204, %v2284
      %2348 = vst.msk [vmem:[#allocation3 + $0x9] sm:$0xff] %vm204, %v2285
      %s2349 = scalar_lea.vmem [#allocation3], 408
      %2350 = vst.msk [vmem:[%s2349 + $0x1] sm:$0xff] %vm204, %v2310
      %2351 = vst.msk [vmem:[%s2349 + $0x9] sm:$0xff] %vm204, %v2311
      %v2352 = vld [vmem:[#allocation3 + $0x2] sm:$0x1]
      %v2353 = vld [vmem:[#allocation3 + $0x1a] sm:$0x1]
      %v2354 = vld [vmem:[#allocation3 + $0x32] sm:$0x1]
      %v2355 = vld [vmem:[#allocation3 + $0x4a] sm:$0x1]
      %v2356 = vld [vmem:[#allocation3 + $0x62] sm:$0x1]
      %v2357 = vld [vmem:[#allocation3 + $0x7a] sm:$0x1]
      %v2358 = vld [vmem:[#allocation3 + $0x92] sm:$0x1]
      %v2359 = vld [vmem:[#allocation3 + $0xaa] sm:$0x1]
      %v2360 = vld [vmem:[#allocation3 + $0xc2] sm:$0x1]
      %v2361 = vld [vmem:[#allocation3 + $0xda] sm:$0x1]
      %v2362 = vld [vmem:[#allocation3 + $0xf2] sm:$0x1]
      %v2363 = vld [vmem:[#allocation3 + $0x10a] sm:$0x1]
      %v2364 = vld [vmem:[#allocation3 + $0x122] sm:$0x1]
      %v2365 = vld [vmem:[#allocation3 + $0x13a] sm:$0x1]
      %v2366 = vld [vmem:[#allocation3 + $0x152] sm:$0x1]
      %v2367 = vld [vmem:[#allocation3 + $0x16a] sm:$0x1]
      %v2368 = vld [vmem:[#allocation3 + $0x182] sm:$0x1]
      %v2369 = vld [vmem:[#allocation3 + $0x19a] sm:$0x1]
      %2370 = vst.msk [vmem:[#allocation3] sm:$0x1] %vm260, %v2352
      %2371 = vst.msk [vmem:[#allocation3 + $0x18] sm:$0x1] %vm260, %v2353
      %2372 = vst.msk [vmem:[#allocation3 + $0x30] sm:$0x1] %vm260, %v2354
      %2373 = vst.msk [vmem:[#allocation3 + $0x48] sm:$0x1] %vm260, %v2355
      %2374 = vst.msk [vmem:[#allocation3 + $0x60] sm:$0x1] %vm260, %v2356
      %2375 = vst.msk [vmem:[#allocation3 + $0x78] sm:$0x1] %vm260, %v2357
      %2376 = vst.msk [vmem:[#allocation3 + $0x90] sm:$0x1] %vm260, %v2358
      %2377 = vst.msk [vmem:[#allocation3 + $0xa8] sm:$0x1] %vm260, %v2359
      %2378 = vst.msk [vmem:[#allocation3 + $0xc0] sm:$0x1] %vm260, %v2360
      %2379 = vst.msk [vmem:[#allocation3 + $0xd8] sm:$0x1] %vm260, %v2361
      %2380 = vst.msk [vmem:[#allocation3 + $0xf0] sm:$0x1] %vm260, %v2362
      %2381 = vst.msk [vmem:[#allocation3 + $0x108] sm:$0x1] %vm260, %v2363
      %2382 = vst.msk [vmem:[#allocation3 + $0x120] sm:$0x1] %vm260, %v2364
      %2383 = vst.msk [vmem:[#allocation3 + $0x138] sm:$0x1] %vm260, %v2365
      %2384 = vst.msk [vmem:[#allocation3 + $0x150] sm:$0x1] %vm260, %v2366
      %2385 = vst.msk [vmem:[#allocation3 + $0x168] sm:$0x1] %vm260, %v2367
      %2386 = vst.msk [vmem:[#allocation3 + $0x180] sm:$0x1] %vm260, %v2368
      %2387 = vst.msk [vmem:[#allocation3 + $0x198] sm:$0x1] %vm260, %v2369
      %v2388 = vld [vmem:[#allocation3 + $0xf] sm:$0x1]
      %v2389 = vld [vmem:[#allocation3 + $0x27] sm:$0x1]
      %v2390 = vld [vmem:[#allocation3 + $0x3f] sm:$0x1]
      %v2391 = vld [vmem:[#allocation3 + $0x57] sm:$0x1]
      %v2392 = vld [vmem:[#allocation3 + $0x6f] sm:$0x1]
      %v2393 = vld [vmem:[#allocation3 + $0x87] sm:$0x1]
      %v2394 = vld [vmem:[#allocation3 + $0x9f] sm:$0x1]
      %v2395 = vld [vmem:[#allocation3 + $0xb7] sm:$0x1]
      %v2396 = vld [vmem:[#allocation3 + $0xcf] sm:$0x1]
      %v2397 = vld [vmem:[#allocation3 + $0xe7] sm:$0x1]
      %v2398 = vld [vmem:[#allocation3 + $0xff] sm:$0x1]
      %v2399 = vld [vmem:[#allocation3 + $0x117] sm:$0x1]
      %v2400 = vld [vmem:[#allocation3 + $0x12f] sm:$0x1]
      %v2401 = vld [vmem:[#allocation3 + $0x147] sm:$0x1]
      %v2402 = vld [vmem:[#allocation3 + $0x15f] sm:$0x1]
      %v2403 = vld [vmem:[#allocation3 + $0x177] sm:$0x1]
      %v2404 = vld [vmem:[#allocation3 + $0x18f] sm:$0x1]
      %v2405 = vld [vmem:[#allocation3 + $0x1a7] sm:$0x1]
      %2406 = vst.msk [vmem:[#allocation3 + $0x11] sm:$0x1] %vm260, %v2388
      %2407 = vst.msk [vmem:[#allocation3 + $0x29] sm:$0x1] %vm260, %v2389
      %2408 = vst.msk [vmem:[#allocation3 + $0x41] sm:$0x1] %vm260, %v2390
      %2409 = vst.msk [vmem:[#allocation3 + $0x59] sm:$0x1] %vm260, %v2391
      %2410 = vst.msk [vmem:[#allocation3 + $0x71] sm:$0x1] %vm260, %v2392
      %2411 = vst.msk [vmem:[#allocation3 + $0x89] sm:$0x1] %vm260, %v2393
      %2412 = vst.msk [vmem:[#allocation3 + $0xa1] sm:$0x1] %vm260, %v2394
      %2413 = vst.msk [vmem:[#allocation3 + $0xb9] sm:$0x1] %vm260, %v2395
      %2414 = vst.msk [vmem:[#allocation3 + $0xd1] sm:$0x1] %vm260, %v2396
      %2415 = vst.msk [vmem:[#allocation3 + $0xe9] sm:$0x1] %vm260, %v2397
      %2416 = vst.msk [vmem:[#allocation3 + $0x101] sm:$0x1] %vm260, %v2398
      %2417 = vst.msk [vmem:[#allocation3 + $0x119] sm:$0x1] %vm260, %v2399
      %2418 = vst.msk [vmem:[#allocation3 + $0x131] sm:$0x1] %vm260, %v2400
      %2419 = vst.msk [vmem:[#allocation3 + $0x149] sm:$0x1] %vm260, %v2401
      %2420 = vst.msk [vmem:[#allocation3 + $0x161] sm:$0x1] %vm260, %v2402
      %2421 = vst.msk [vmem:[#allocation3 + $0x179] sm:$0x1] %vm260, %v2403
      %2422 = vst.msk [vmem:[#allocation3 + $0x191] sm:$0x1] %vm260, %v2404
      %2423 = vst.msk [vmem:[#allocation3 + $0x1a9] sm:$0x1] %vm260, %v2405
      %v2424 = vld [vmem:[#allocation3] sm:$0xff]
      %v2425 = vld [vmem:[#allocation3 + $0x8] sm:$0xff]
      %v2426 = vld [vmem:[#allocation3 + $0x18] sm:$0xff]
      %v2427 = vld [vmem:[#allocation3 + $0x20] sm:$0xff]
      %v2428 = vld [vmem:[#allocation3 + $0x30] sm:$0xff]
      %v2429 = vld [vmem:[#allocation3 + $0x38] sm:$0xff]
      %v2430 = vld [vmem:[#allocation3 + $0x48] sm:$0xff]
      %v2431 = vld [vmem:[#allocation3 + $0x50] sm:$0xff]
      %v2432 = vld [vmem:[#allocation3 + $0x60] sm:$0xff]
      %v2433 = vld [vmem:[#allocation3 + $0x68] sm:$0xff]
      %v2434 = vld [vmem:[#allocation3 + $0x78] sm:$0xff]
      %v2435 = vld [vmem:[#allocation3 + $0x80] sm:$0xff]
      %v2436 = vld [vmem:[#allocation3 + $0x90] sm:$0xff]
      %v2437 = vld [vmem:[#allocation3 + $0x98] sm:$0xff]
      %v2438 = vld [vmem:[#allocation3 + $0xa8] sm:$0xff]
      %v2439 = vld [vmem:[#allocation3 + $0xb0] sm:$0xff]
      %v2440 = vld [vmem:[#allocation3 + $0xc0] sm:$0xff]
      %v2441 = vld [vmem:[#allocation3 + $0xc8] sm:$0xff]
      %v2442 = vld [vmem:[#allocation3 + $0xd8] sm:$0xff]
      %v2443 = vld [vmem:[#allocation3 + $0xe0] sm:$0xff]
      %v2444 = vld [vmem:[#allocation3 + $0xf0] sm:$0xff]
      %v2445 = vld [vmem:[#allocation3 + $0xf8] sm:$0xff]
      %v2446 = vld [vmem:[#allocation3 + $0x108] sm:$0xff]
      %v2447 = vld [vmem:[#allocation3 + $0x110] sm:$0xff]
      %v2448 = vld [vmem:[#allocation3 + $0x120] sm:$0xff]
      %v2449 = vld [vmem:[#allocation3 + $0x128] sm:$0xff]
      %v2450 = vld [vmem:[#allocation3 + $0x138] sm:$0xff]
      %v2451 = vld [vmem:[#allocation3 + $0x140] sm:$0xff]
      %v2452 = vld [vmem:[#allocation3 + $0x150] sm:$0xff]
      %v2453 = vld [vmem:[#allocation3 + $0x158] sm:$0xff]
      %v2454 = vld [vmem:[#allocation3 + $0x168] sm:$0xff]
      %v2455 = vld [vmem:[#allocation3 + $0x170] sm:$0xff]
      %v2456 = vld [vmem:[#allocation3 + $0x180] sm:$0xff]
      %v2457 = vld [vmem:[#allocation3 + $0x188] sm:$0xff]
      %v2458 = vld [vmem:[#allocation3 + $0x198] sm:$0xff]
      %v2459 = vld [vmem:[#allocation3 + $0x1a0] sm:$0xff]
      %v2460 = vld [vmem:[%s2] sm:$0xf]
      %s2461 = scalar_lea.vmem %s2, 12
      %v2462 = vld [vmem:[%s2461] sm:$0xf]
      %v2464 = vsel %vm204, %v2426, 0
      %v2467 = vsel %vm204, %v2427, 0
      %v2470 = vsel %vm204, %v2428, 0
      %v2473 = vsel %vm204, %v2429, 0
      %v2476 = vsel %vm204, %v2430, 0
      %v2479 = vsel %vm204, %v2431, 0
      %v2482 = vsel %vm204, %v2432, 0
      %v2485 = vsel %vm204, %v2433, 0
      %v2488 = vsel %vm204, %v2434, 0
      %v2491 = vsel %vm204, %v2435, 0
      %v2494 = vsel %vm204, %v2436, 0
      %v2497 = vsel %vm204, %v2437, 0
      %v2500 = vsel %vm204, %v2438, 0
      %v2503 = vsel %vm204, %v2439, 0
      %v2506 = vsel %vm204, %v2440, 0
      %v2509 = vsel %vm204, %v2441, 0
      %v2512 = vsel %vm204, %v2442, 0
      %v2515 = vsel %vm204, %v2443, 0
      %v2518 = vsel %vm204, %v2444, 0
      %v2521 = vsel %vm204, %v2445, 0
      %v2524 = vsel %vm204, %v2446, 0
      %v2527 = vsel %vm204, %v2447, 0
      %v2530 = vsel %vm204, %v2448, 0
      %v2533 = vsel %vm204, %v2449, 0
      %v2536 = vsel %vm204, %v2450, 0
      %v2539 = vsel %vm204, %v2451, 0
      %v2542 = vsel %vm204, %v2452, 0
      %v2545 = vsel %vm204, %v2453, 0
      %v2548 = vsel %vm204, %v2454, 0
      %v2551 = vsel %vm204, %v2455, 0
      %v2554 = vsel %vm204, %v2456, 0
      %v2557 = vsel %vm204, %v2457, 0
      %v2560 = vsel %vm450, %v2462, 0
      %2562 = vmatpush.msra.mxu0 0.0
      %2563 = vmatpush.msra.mxu0 0.0
      %2564 = vmatpush.msra.mxu0 0.0
      %2565 = vmatpush.msra.mxu0 0.0
      %2566 = vmatpush.msra.mxu0 0.0
      %2567 = vmatpush.msra.mxu0 0.0
      %2568 = vmatpush.msra.mxu0 0.0
      %2569 = vmatpush.msra.mxu0 0.0
      %2570 = vmatpush.msra.mxu0 0.0
      %2571 = vmatpush.msra.mxu0 0.0
      %2572 = vmatpush.msra.mxu0 0.0
      %2573 = vmatpush.msra.mxu0 0.0
      %2574 = vmatpush.msra.mxu0 0.0
      %2575 = vmatpush.msra.mxu0 0.0
      %2576 = vmatpush.msra.mxu0 0.0
      %2577 = vmatpush.msra.mxu0 %v2560
      %2578 = vmatmul.f32.gmra.mxu0 %v2464
      %v2579 = vpop.f32.mrf.mxu0
      %v2580 = vadd.f32 0.0, %v2579
      %2581 = vmatmul.f32.gmra.mxu0 %v2467
      %v2582 = vpop.f32.mrf.mxu0
      %v2583 = vadd.f32 0.0, %v2582
      %2584 = vmatmul.f32.gmra.mxu0 %v2470
      %v2585 = vpop.f32.mrf.mxu0
      %v2586 = vadd.f32 0.0, %v2585
      %2587 = vmatmul.f32.gmra.mxu0 %v2473
      %v2588 = vpop.f32.mrf.mxu0
      %v2589 = vadd.f32 0.0, %v2588
      %2590 = vmatmul.f32.gmra.mxu0 %v2476
      %v2591 = vpop.f32.mrf.mxu0
      %v2592 = vadd.f32 0.0, %v2591
      %2593 = vmatmul.f32.gmra.mxu0 %v2479
      %v2594 = vpop.f32.mrf.mxu0
      %v2595 = vadd.f32 0.0, %v2594
      %2596 = vmatmul.f32.gmra.mxu0 %v2482
      %v2597 = vpop.f32.mrf.mxu0
      %v2598 = vadd.f32 0.0, %v2597
      %2599 = vmatmul.f32.gmra.mxu0 %v2485
      %v2600 = vpop.f32.mrf.mxu0
      %v2601 = vadd.f32 0.0, %v2600
      %2602 = vmatmul.f32.gmra.mxu0 %v2488
      %v2603 = vpop.f32.mrf.mxu0
      %v2604 = vadd.f32 0.0, %v2603
      %2605 = vmatmul.f32.gmra.mxu0 %v2491
      %v2606 = vpop.f32.mrf.mxu0
      %v2607 = vadd.f32 0.0, %v2606
      %2608 = vmatmul.f32.gmra.mxu0 %v2494
      %v2609 = vpop.f32.mrf.mxu0
      %v2610 = vadd.f32 0.0, %v2609
      %2611 = vmatmul.f32.gmra.mxu0 %v2497
      %v2612 = vpop.f32.mrf.mxu0
      %v2613 = vadd.f32 0.0, %v2612
      %2614 = vmatmul.f32.gmra.mxu0 %v2500
      %v2615 = vpop.f32.mrf.mxu0
      %v2616 = vadd.f32 0.0, %v2615
      %2617 = vmatmul.f32.gmra.mxu0 %v2503
      %v2618 = vpop.f32.mrf.mxu0
      %v2619 = vadd.f32 0.0, %v2618
      %2620 = vmatmul.f32.gmra.mxu0 %v2506
      %v2621 = vpop.f32.mrf.mxu0
      %v2622 = vadd.f32 0.0, %v2621
      %2623 = vmatmul.f32.gmra.mxu0 %v2509
      %v2624 = vpop.f32.mrf.mxu0
      %v2625 = vadd.f32 0.0, %v2624
      %2626 = vmatmul.f32.gmra.mxu0 %v2512
      %v2627 = vpop.f32.mrf.mxu0
      %v2628 = vadd.f32 0.0, %v2627
      %2629 = vmatmul.f32.gmra.mxu0 %v2515
      %v2630 = vpop.f32.mrf.mxu0
      %v2631 = vadd.f32 0.0, %v2630
      %2632 = vmatmul.f32.gmra.mxu0 %v2518
      %v2633 = vpop.f32.mrf.mxu0
      %v2634 = vadd.f32 0.0, %v2633
      %2635 = vmatmul.f32.gmra.mxu0 %v2521
      %v2636 = vpop.f32.mrf.mxu0
      %v2637 = vadd.f32 0.0, %v2636
      %2638 = vmatmul.f32.gmra.mxu0 %v2524
      %v2639 = vpop.f32.mrf.mxu0
      %v2640 = vadd.f32 0.0, %v2639
      %2641 = vmatmul.f32.gmra.mxu0 %v2527
      %v2642 = vpop.f32.mrf.mxu0
      %v2643 = vadd.f32 0.0, %v2642
      %2644 = vmatmul.f32.gmra.mxu0 %v2530
      %v2645 = vpop.f32.mrf.mxu0
      %v2646 = vadd.f32 0.0, %v2645
      %2647 = vmatmul.f32.gmra.mxu0 %v2533
      %v2648 = vpop.f32.mrf.mxu0
      %v2649 = vadd.f32 0.0, %v2648
      %2650 = vmatmul.f32.gmra.mxu0 %v2536
      %v2651 = vpop.f32.mrf.mxu0
      %v2652 = vadd.f32 0.0, %v2651
      %2653 = vmatmul.f32.gmra.mxu0 %v2539
      %v2654 = vpop.f32.mrf.mxu0
      %v2655 = vadd.f32 0.0, %v2654
      %2656 = vmatmul.f32.gmra.mxu0 %v2542
      %v2657 = vpop.f32.mrf.mxu0
      %v2658 = vadd.f32 0.0, %v2657
      %2659 = vmatmul.f32.gmra.mxu0 %v2545
      %v2660 = vpop.f32.mrf.mxu0
      %v2661 = vadd.f32 0.0, %v2660
      %2662 = vmatmul.f32.gmra.mxu0 %v2548
      %v2663 = vpop.f32.mrf.mxu0
      %v2664 = vadd.f32 0.0, %v2663
      %2665 = vmatmul.f32.gmra.mxu0 %v2551
      %v2666 = vpop.f32.mrf.mxu0
      %v2667 = vadd.f32 0.0, %v2666
      %2668 = vmatmul.f32.gmra.mxu0 %v2554
      %v2669 = vpop.f32.mrf.mxu0
      %v2670 = vadd.f32 0.0, %v2669
      %2671 = vmatmul.f32.gmra.mxu0 %v2557
      %v2672 = vpop.f32.mrf.mxu0
      %v2673 = vadd.f32 0.0, %v2672
      %2674 = vdwg.mxu0
      %v2676 = vsel %vm204, %v2424, 0
      %v2679 = vsel %vm204, %v2425, 0
      %v2682 = vsel %vm450, %v2460, 0
      %2684 = vmatpush.msra.mxu0 0.0
      %2685 = vmatpush.msra.mxu0 0.0
      %2686 = vmatpush.msra.mxu0 0.0
      %2687 = vmatpush.msra.mxu0 0.0
      %2688 = vmatpush.msra.mxu0 0.0
      %2689 = vmatpush.msra.mxu0 0.0
      %2690 = vmatpush.msra.mxu0 0.0
      %2691 = vmatpush.msra.mxu0 0.0
      %2692 = vmatpush.msra.mxu0 0.0
      %2693 = vmatpush.msra.mxu0 0.0
      %2694 = vmatpush.msra.mxu0 0.0
      %2695 = vmatpush.msra.mxu0 0.0
      %2696 = vmatpush.msra.mxu0 0.0
      %2697 = vmatpush.msra.mxu0 0.0
      %2698 = vmatpush.msra.mxu0 0.0
      %2699 = vmatpush.msra.mxu0 %v2682
      %2700 = vmatmul.f32.gmra.mxu0 %v2676
      %v2701 = vpop.f32.mrf.mxu0
      %v2702 = vadd.f32 %v2580, %v2701
      %2703 = vmatmul.f32.gmra.mxu0 %v2679
      %v2704 = vpop.f32.mrf.mxu0
      %v2705 = vadd.f32 %v2583, %v2704
      %2706 = vmatmul.f32.gmra.mxu0 %v2464
      %v2707 = vpop.f32.mrf.mxu0
      %v2708 = vadd.f32 %v2586, %v2707
      %2709 = vmatmul.f32.gmra.mxu0 %v2467
      %v2710 = vpop.f32.mrf.mxu0
      %v2711 = vadd.f32 %v2589, %v2710
      %2712 = vmatmul.f32.gmra.mxu0 %v2470
      %v2713 = vpop.f32.mrf.mxu0
      %v2714 = vadd.f32 %v2592, %v2713
      %2715 = vmatmul.f32.gmra.mxu0 %v2473
      %v2716 = vpop.f32.mrf.mxu0
      %v2717 = vadd.f32 %v2595, %v2716
      %2718 = vmatmul.f32.gmra.mxu0 %v2476
      %v2719 = vpop.f32.mrf.mxu0
      %v2720 = vadd.f32 %v2598, %v2719
      %2721 = vmatmul.f32.gmra.mxu0 %v2479
      %v2722 = vpop.f32.mrf.mxu0
      %v2723 = vadd.f32 %v2601, %v2722
      %2724 = vmatmul.f32.gmra.mxu0 %v2482
      %v2725 = vpop.f32.mrf.mxu0
      %v2726 = vadd.f32 %v2604, %v2725
      %2727 = vmatmul.f32.gmra.mxu0 %v2485
      %v2728 = vpop.f32.mrf.mxu0
      %v2729 = vadd.f32 %v2607, %v2728
      %2730 = vmatmul.f32.gmra.mxu0 %v2488
      %v2731 = vpop.f32.mrf.mxu0
      %v2732 = vadd.f32 %v2610, %v2731
      %2733 = vmatmul.f32.gmra.mxu0 %v2491
      %v2734 = vpop.f32.mrf.mxu0
      %v2735 = vadd.f32 %v2613, %v2734
      %2736 = vmatmul.f32.gmra.mxu0 %v2494
      %v2737 = vpop.f32.mrf.mxu0
      %v2738 = vadd.f32 %v2616, %v2737
      %2739 = vmatmul.f32.gmra.mxu0 %v2497
      %v2740 = vpop.f32.mrf.mxu0
      %v2741 = vadd.f32 %v2619, %v2740
      %2742 = vmatmul.f32.gmra.mxu0 %v2500
      %v2743 = vpop.f32.mrf.mxu0
      %v2744 = vadd.f32 %v2622, %v2743
      %2745 = vmatmul.f32.gmra.mxu0 %v2503
      %v2746 = vpop.f32.mrf.mxu0
      %v2747 = vadd.f32 %v2625, %v2746
      %2748 = vmatmul.f32.gmra.mxu0 %v2506
      %v2749 = vpop.f32.mrf.mxu0
      %v2750 = vadd.f32 %v2628, %v2749
      %2751 = vmatmul.f32.gmra.mxu0 %v2509
      %v2752 = vpop.f32.mrf.mxu0
      %v2753 = vadd.f32 %v2631, %v2752
      %2754 = vmatmul.f32.gmra.mxu0 %v2512
      %v2755 = vpop.f32.mrf.mxu0
      %v2756 = vadd.f32 %v2634, %v2755
      %2757 = vmatmul.f32.gmra.mxu0 %v2515
      %v2758 = vpop.f32.mrf.mxu0
      %v2759 = vadd.f32 %v2637, %v2758
      %2760 = vmatmul.f32.gmra.mxu0 %v2518
      %v2761 = vpop.f32.mrf.mxu0
      %v2762 = vadd.f32 %v2640, %v2761
      %2763 = vmatmul.f32.gmra.mxu0 %v2521
      %v2764 = vpop.f32.mrf.mxu0
      %v2765 = vadd.f32 %v2643, %v2764
      %2766 = vmatmul.f32.gmra.mxu0 %v2524
      %v2767 = vpop.f32.mrf.mxu0
      %v2768 = vadd.f32 %v2646, %v2767
      %2769 = vmatmul.f32.gmra.mxu0 %v2527
      %v2770 = vpop.f32.mrf.mxu0
      %v2771 = vadd.f32 %v2649, %v2770
      %2772 = vmatmul.f32.gmra.mxu0 %v2530
      %v2773 = vpop.f32.mrf.mxu0
      %v2774 = vadd.f32 %v2652, %v2773
      %2775 = vmatmul.f32.gmra.mxu0 %v2533
      %v2776 = vpop.f32.mrf.mxu0
      %v2777 = vadd.f32 %v2655, %v2776
      %2778 = vmatmul.f32.gmra.mxu0 %v2536
      %v2779 = vpop.f32.mrf.mxu0
      %v2780 = vadd.f32 %v2658, %v2779
      %2781 = vmatmul.f32.gmra.mxu0 %v2539
      %v2782 = vpop.f32.mrf.mxu0
      %v2783 = vadd.f32 %v2661, %v2782
      %2784 = vmatmul.f32.gmra.mxu0 %v2542
      %v2785 = vpop.f32.mrf.mxu0
      %v2786 = vadd.f32 %v2664, %v2785
      %2787 = vmatmul.f32.gmra.mxu0 %v2545
      %v2788 = vpop.f32.mrf.mxu0
      %v2789 = vadd.f32 %v2667, %v2788
      %2790 = vmatmul.f32.gmra.mxu0 %v2548
      %v2791 = vpop.f32.mrf.mxu0
      %v2792 = vadd.f32 %v2670, %v2791
      %2793 = vmatmul.f32.gmra.mxu0 %v2551
      %v2794 = vpop.f32.mrf.mxu0
      %v2795 = vadd.f32 %v2673, %v2794
      %2796 = vdwg.mxu0
      %s2797 = scalar_lea.vmem %s2, 24
      %v2798 = vld [vmem:[%s2797] sm:$0xf]
      %v2800 = vsel %vm204, %v2458, 0
      %v2803 = vsel %vm204, %v2459, 0
      %v2806 = vsel %vm450, %v2798, 0
      %2808 = vmatpush.msra.mxu0 0.0
      %2809 = vmatpush.msra.mxu0 0.0
      %2810 = vmatpush.msra.mxu0 0.0
      %2811 = vmatpush.msra.mxu0 0.0
      %2812 = vmatpush.msra.mxu0 0.0
      %2813 = vmatpush.msra.mxu0 0.0
      %2814 = vmatpush.msra.mxu0 0.0
      %2815 = vmatpush.msra.mxu0 0.0
      %2816 = vmatpush.msra.mxu0 0.0
      %2817 = vmatpush.msra.mxu0 0.0
      %2818 = vmatpush.msra.mxu0 0.0
      %2819 = vmatpush.msra.mxu0 0.0
      %2820 = vmatpush.msra.mxu0 0.0
      %2821 = vmatpush.msra.mxu0 0.0
      %2822 = vmatpush.msra.mxu0 0.0
      %2823 = vmatpush.msra.mxu0 %v2806
      %2824 = vmatmul.f32.gmra.mxu0 %v2470
      %v2825 = vpop.f32.mrf.mxu0
      %v2826 = vadd.f32 0.0, %v2825
      %2827 = vmatmul.f32.gmra.mxu0 %v2473
      %v2828 = vpop.f32.mrf.mxu0
      %v2829 = vadd.f32 0.0, %v2828
      %2830 = vmatmul.f32.gmra.mxu0 %v2476
      %v2831 = vpop.f32.mrf.mxu0
      %v2832 = vadd.f32 0.0, %v2831
      %2833 = vmatmul.f32.gmra.mxu0 %v2479
      %v2834 = vpop.f32.mrf.mxu0
      %v2835 = vadd.f32 0.0, %v2834
      %2836 = vmatmul.f32.gmra.mxu0 %v2482
      %v2837 = vpop.f32.mrf.mxu0
      %v2838 = vadd.f32 0.0, %v2837
      %2839 = vmatmul.f32.gmra.mxu0 %v2485
      %v2840 = vpop.f32.mrf.mxu0
      %v2841 = vadd.f32 0.0, %v2840
      %2842 = vmatmul.f32.gmra.mxu0 %v2488
      %v2843 = vpop.f32.mrf.mxu0
      %v2844 = vadd.f32 0.0, %v2843
      %2845 = vmatmul.f32.gmra.mxu0 %v2491
      %v2846 = vpop.f32.mrf.mxu0
      %v2847 = vadd.f32 0.0, %v2846
      %2848 = vmatmul.f32.gmra.mxu0 %v2494
      %v2849 = vpop.f32.mrf.mxu0
      %v2850 = vadd.f32 0.0, %v2849
      %2851 = vmatmul.f32.gmra.mxu0 %v2497
      %v2852 = vpop.f32.mrf.mxu0
      %v2853 = vadd.f32 0.0, %v2852
      %2854 = vmatmul.f32.gmra.mxu0 %v2500
      %v2855 = vpop.f32.mrf.mxu0
      %v2856 = vadd.f32 0.0, %v2855
      %2857 = vmatmul.f32.gmra.mxu0 %v2503
      %v2858 = vpop.f32.mrf.mxu0
      %v2859 = vadd.f32 0.0, %v2858
      %2860 = vmatmul.f32.gmra.mxu0 %v2506
      %v2861 = vpop.f32.mrf.mxu0
      %v2862 = vadd.f32 0.0, %v2861
      %2863 = vmatmul.f32.gmra.mxu0 %v2509
      %v2864 = vpop.f32.mrf.mxu0
      %v2865 = vadd.f32 0.0, %v2864
      %2866 = vmatmul.f32.gmra.mxu0 %v2512
      %v2867 = vpop.f32.mrf.mxu0
      %v2868 = vadd.f32 0.0, %v2867
      %2869 = vmatmul.f32.gmra.mxu0 %v2515
      %v2870 = vpop.f32.mrf.mxu0
      %v2871 = vadd.f32 0.0, %v2870
      %2872 = vmatmul.f32.gmra.mxu0 %v2518
      %v2873 = vpop.f32.mrf.mxu0
      %v2874 = vadd.f32 0.0, %v2873
      %2875 = vmatmul.f32.gmra.mxu0 %v2521
      %v2876 = vpop.f32.mrf.mxu0
      %v2877 = vadd.f32 0.0, %v2876
      %2878 = vmatmul.f32.gmra.mxu0 %v2524
      %v2879 = vpop.f32.mrf.mxu0
      %v2880 = vadd.f32 0.0, %v2879
      %2881 = vmatmul.f32.gmra.mxu0 %v2527
      %v2882 = vpop.f32.mrf.mxu0
      %v2883 = vadd.f32 0.0, %v2882
      %2884 = vmatmul.f32.gmra.mxu0 %v2530
      %v2885 = vpop.f32.mrf.mxu0
      %v2886 = vadd.f32 0.0, %v2885
      %2887 = vmatmul.f32.gmra.mxu0 %v2533
      %v2888 = vpop.f32.mrf.mxu0
      %v2889 = vadd.f32 0.0, %v2888
      %2890 = vmatmul.f32.gmra.mxu0 %v2536
      %v2891 = vpop.f32.mrf.mxu0
      %v2892 = vadd.f32 0.0, %v2891
      %2893 = vmatmul.f32.gmra.mxu0 %v2539
      %v2894 = vpop.f32.mrf.mxu0
      %v2895 = vadd.f32 0.0, %v2894
      %2896 = vmatmul.f32.gmra.mxu0 %v2542
      %v2897 = vpop.f32.mrf.mxu0
      %v2898 = vadd.f32 0.0, %v2897
      %2899 = vmatmul.f32.gmra.mxu0 %v2545
      %v2900 = vpop.f32.mrf.mxu0
      %v2901 = vadd.f32 0.0, %v2900
      %2902 = vmatmul.f32.gmra.mxu0 %v2548
      %v2903 = vpop.f32.mrf.mxu0
      %v2904 = vadd.f32 0.0, %v2903
      %2905 = vmatmul.f32.gmra.mxu0 %v2551
      %v2906 = vpop.f32.mrf.mxu0
      %v2907 = vadd.f32 0.0, %v2906
      %2908 = vmatmul.f32.gmra.mxu0 %v2554
      %v2909 = vpop.f32.mrf.mxu0
      %v2910 = vadd.f32 0.0, %v2909
      %2911 = vmatmul.f32.gmra.mxu0 %v2557
      %v2912 = vpop.f32.mrf.mxu0
      %v2913 = vadd.f32 0.0, %v2912
      %2914 = vmatmul.f32.gmra.mxu0 %v2800
      %v2915 = vpop.f32.mrf.mxu0
      %v2916 = vadd.f32 0.0, %v2915
      %2917 = vmatmul.f32.gmra.mxu0 %v2803
      %v2918 = vpop.f32.mrf.mxu0
      %v2919 = vadd.f32 0.0, %v2918
      %2920 = vdwg.mxu0
      %v2921 = vadd.f32 %v2702, %v2826
      %v2922 = vadd.f32 %v2705, %v2829
      %v2923 = vadd.f32 %v2708, %v2832
      %v2924 = vadd.f32 %v2711, %v2835
      %v2925 = vadd.f32 %v2714, %v2838
      %v2926 = vadd.f32 %v2717, %v2841
      %v2927 = vadd.f32 %v2720, %v2844
      %v2928 = vadd.f32 %v2723, %v2847
      %v2929 = vadd.f32 %v2726, %v2850
      %v2930 = vadd.f32 %v2729, %v2853
      %v2931 = vadd.f32 %v2732, %v2856
      %v2932 = vadd.f32 %v2735, %v2859
      %v2933 = vadd.f32 %v2738, %v2862
      %v2934 = vadd.f32 %v2741, %v2865
      %v2935 = vadd.f32 %v2744, %v2868
      %v2936 = vadd.f32 %v2747, %v2871
      %v2937 = vadd.f32 %v2750, %v2874
      %v2938 = vadd.f32 %v2753, %v2877
      %v2939 = vadd.f32 %v2756, %v2880
      %v2940 = vadd.f32 %v2759, %v2883
      %v2941 = vadd.f32 %v2762, %v2886
      %v2942 = vadd.f32 %v2765, %v2889
      %v2943 = vadd.f32 %v2768, %v2892
      %v2944 = vadd.f32 %v2771, %v2895
      %v2945 = vadd.f32 %v2774, %v2898
      %v2946 = vadd.f32 %v2777, %v2901
      %v2947 = vadd.f32 %v2780, %v2904
      %v2948 = vadd.f32 %v2783, %v2907
      %v2949 = vadd.f32 %v2786, %v2910
      %v2950 = vadd.f32 %v2789, %v2913
      %v2951 = vadd.f32 %v2792, %v2916
      %v2952 = vadd.f32 %v2795, %v2919
      %v2953 = vld [vmem:[#allocation3 + $0x1] sm:$0xff]
      %v2954 = vld [vmem:[#allocation3 + $0x9] sm:$0xff]
      %v2955 = vld [vmem:[#allocation3 + $0x19] sm:$0xff]
      %v2956 = vld [vmem:[#allocation3 + $0x21] sm:$0xff]
      %v2957 = vld [vmem:[#allocation3 + $0x31] sm:$0xff]
      %v2958 = vld [vmem:[#allocation3 + $0x39] sm:$0xff]
      %v2959 = vld [vmem:[#allocation3 + $0x49] sm:$0xff]
      %v2960 = vld [vmem:[#allocation3 + $0x51] sm:$0xff]
      %v2961 = vld [vmem:[#allocation3 + $0x61] sm:$0xff]
      %v2962 = vld [vmem:[#allocation3 + $0x69] sm:$0xff]
      %v2963 = vld [vmem:[#allocation3 + $0x79] sm:$0xff]
      %v2964 = vld [vmem:[#allocation3 + $0x81] sm:$0xff]
      %v2965 = vld [vmem:[#allocation3 + $0x91] sm:$0xff]
      %v2966 = vld [vmem:[#allocation3 + $0x99] sm:$0xff]
      %v2967 = vld [vmem:[#allocation3 + $0xa9] sm:$0xff]
      %v2968 = vld [vmem:[#allocation3 + $0xb1] sm:$0xff]
      %v2969 = vld [vmem:[#allocation3 + $0xc1] sm:$0xff]
      %v2970 = vld [vmem:[#allocation3 + $0xc9] sm:$0xff]
      %v2971 = vld [vmem:[#allocation3 + $0xd9] sm:$0xff]
      %v2972 = vld [vmem:[#allocation3 + $0xe1] sm:$0xff]
      %v2973 = vld [vmem:[#allocation3 + $0xf1] sm:$0xff]
      %v2974 = vld [vmem:[#allocation3 + $0xf9] sm:$0xff]
      %v2975 = vld [vmem:[#allocation3 + $0x109] sm:$0xff]
      %v2976 = vld [vmem:[#allocation3 + $0x111] sm:$0xff]
      %v2977 = vld [vmem:[#allocation3 + $0x121] sm:$0xff]
      %v2978 = vld [vmem:[#allocation3 + $0x129] sm:$0xff]
      %v2979 = vld [vmem:[#allocation3 + $0x139] sm:$0xff]
      %v2980 = vld [vmem:[#allocation3 + $0x141] sm:$0xff]
      %v2981 = vld [vmem:[#allocation3 + $0x151] sm:$0xff]
      %v2982 = vld [vmem:[#allocation3 + $0x159] sm:$0xff]
      %v2983 = vld [vmem:[#allocation3 + $0x169] sm:$0xff]
      %v2984 = vld [vmem:[#allocation3 + $0x171] sm:$0xff]
      %v2985 = vld [vmem:[#allocation3 + $0x181] sm:$0xff]
      %v2986 = vld [vmem:[#allocation3 + $0x189] sm:$0xff]
      %v2987 = vld [vmem:[#allocation3 + $0x199] sm:$0xff]
      %v2988 = vld [vmem:[#allocation3 + $0x1a1] sm:$0xff]
      %s2989 = scalar_lea.vmem %s2, 4
      %v2990 = vld [vmem:[%s2989] sm:$0xf]
      %v2992 = vsel %vm204, %v2953, 0
      %v2995 = vsel %vm204, %v2954, 0
      %v2998 = vsel %vm204, %v2955, 0
      %v3001 = vsel %vm204, %v2956, 0
      %v3004 = vsel %vm204, %v2957, 0
      %v3007 = vsel %vm204, %v2958, 0
      %v3010 = vsel %vm204, %v2959, 0
      %v3013 = vsel %vm204, %v2960, 0
      %v3016 = vsel %vm204, %v2961, 0
      %v3019 = vsel %vm204, %v2962, 0
      %v3022 = vsel %vm204, %v2963, 0
      %v3025 = vsel %vm204, %v2964, 0
      %v3028 = vsel %vm204, %v2965, 0
      %v3031 = vsel %vm204, %v2966, 0
      %v3034 = vsel %vm204, %v2967, 0
      %v3037 = vsel %vm204, %v2968, 0
      %v3040 = vsel %vm204, %v2969, 0
      %v3043 = vsel %vm204, %v2970, 0
      %v3046 = vsel %vm204, %v2971, 0
      %v3049 = vsel %vm204, %v2972, 0
      %v3052 = vsel %vm204, %v2973, 0
      %v3055 = vsel %vm204, %v2974, 0
      %v3058 = vsel %vm204, %v2975, 0
      %v3061 = vsel %vm204, %v2976, 0
      %v3064 = vsel %vm204, %v2977, 0
      %v3067 = vsel %vm204, %v2978, 0
      %v3070 = vsel %vm204, %v2979, 0
      %v3073 = vsel %vm204, %v2980, 0
      %v3076 = vsel %vm204, %v2981, 0
      %v3079 = vsel %vm204, %v2982, 0
      %v3082 = vsel %vm204, %v2983, 0
      %v3085 = vsel %vm204, %v2984, 0
      %v3088 = vsel %vm450, %v2990, 0
      %3090 = vmatpush.msra.mxu0 0.0
      %3091 = vmatpush.msra.mxu0 0.0
      %3092 = vmatpush.msra.mxu0 0.0
      %3093 = vmatpush.msra.mxu0 0.0
      %3094 = vmatpush.msra.mxu0 0.0
      %3095 = vmatpush.msra.mxu0 0.0
      %3096 = vmatpush.msra.mxu0 0.0
      %3097 = vmatpush.msra.mxu0 0.0
      %3098 = vmatpush.msra.mxu0 0.0
      %3099 = vmatpush.msra.mxu0 0.0
      %3100 = vmatpush.msra.mxu0 0.0
      %3101 = vmatpush.msra.mxu0 0.0
      %3102 = vmatpush.msra.mxu0 0.0
      %3103 = vmatpush.msra.mxu0 0.0
      %3104 = vmatpush.msra.mxu0 0.0
      %3105 = vmatpush.msra.mxu0 %v3088
      %3106 = vmatmul.f32.gmra.mxu0 %v2992
      %v3107 = vpop.f32.mrf.mxu0
      %v3108 = vadd.f32 0.0, %v3107
      %3109 = vmatmul.f32.gmra.mxu0 %v2995
      %v3110 = vpop.f32.mrf.mxu0
      %v3111 = vadd.f32 0.0, %v3110
      %3112 = vmatmul.f32.gmra.mxu0 %v2998
      %v3113 = vpop.f32.mrf.mxu0
      %v3114 = vadd.f32 0.0, %v3113
      %3115 = vmatmul.f32.gmra.mxu0 %v3001
      %v3116 = vpop.f32.mrf.mxu0
      %v3117 = vadd.f32 0.0, %v3116
      %3118 = vmatmul.f32.gmra.mxu0 %v3004
      %v3119 = vpop.f32.mrf.mxu0
      %v3120 = vadd.f32 0.0, %v3119
      %3121 = vmatmul.f32.gmra.mxu0 %v3007
      %v3122 = vpop.f32.mrf.mxu0
      %v3123 = vadd.f32 0.0, %v3122
      %3124 = vmatmul.f32.gmra.mxu0 %v3010
      %v3125 = vpop.f32.mrf.mxu0
      %v3126 = vadd.f32 0.0, %v3125
      %3127 = vmatmul.f32.gmra.mxu0 %v3013
      %v3128 = vpop.f32.mrf.mxu0
      %v3129 = vadd.f32 0.0, %v3128
      %3130 = vmatmul.f32.gmra.mxu0 %v3016
      %v3131 = vpop.f32.mrf.mxu0
      %v3132 = vadd.f32 0.0, %v3131
      %3133 = vmatmul.f32.gmra.mxu0 %v3019
      %v3134 = vpop.f32.mrf.mxu0
      %v3135 = vadd.f32 0.0, %v3134
      %3136 = vmatmul.f32.gmra.mxu0 %v3022
      %v3137 = vpop.f32.mrf.mxu0
      %v3138 = vadd.f32 0.0, %v3137
      %3139 = vmatmul.f32.gmra.mxu0 %v3025
      %v3140 = vpop.f32.mrf.mxu0
      %v3141 = vadd.f32 0.0, %v3140
      %3142 = vmatmul.f32.gmra.mxu0 %v3028
      %v3143 = vpop.f32.mrf.mxu0
      %v3144 = vadd.f32 0.0, %v3143
      %3145 = vmatmul.f32.gmra.mxu0 %v3031
      %v3146 = vpop.f32.mrf.mxu0
      %v3147 = vadd.f32 0.0, %v3146
      %3148 = vmatmul.f32.gmra.mxu0 %v3034
      %v3149 = vpop.f32.mrf.mxu0
      %v3150 = vadd.f32 0.0, %v3149
      %3151 = vmatmul.f32.gmra.mxu0 %v3037
      %v3152 = vpop.f32.mrf.mxu0
      %v3153 = vadd.f32 0.0, %v3152
      %3154 = vmatmul.f32.gmra.mxu0 %v3040
      %v3155 = vpop.f32.mrf.mxu0
      %v3156 = vadd.f32 0.0, %v3155
      %3157 = vmatmul.f32.gmra.mxu0 %v3043
      %v3158 = vpop.f32.mrf.mxu0
      %v3159 = vadd.f32 0.0, %v3158
      %3160 = vmatmul.f32.gmra.mxu0 %v3046
      %v3161 = vpop.f32.mrf.mxu0
      %v3162 = vadd.f32 0.0, %v3161
      %3163 = vmatmul.f32.gmra.mxu0 %v3049
      %v3164 = vpop.f32.mrf.mxu0
      %v3165 = vadd.f32 0.0, %v3164
      %3166 = vmatmul.f32.gmra.mxu0 %v3052
      %v3167 = vpop.f32.mrf.mxu0
      %v3168 = vadd.f32 0.0, %v3167
      %3169 = vmatmul.f32.gmra.mxu0 %v3055
      %v3170 = vpop.f32.mrf.mxu0
      %v3171 = vadd.f32 0.0, %v3170
      %3172 = vmatmul.f32.gmra.mxu0 %v3058
      %v3173 = vpop.f32.mrf.mxu0
      %v3174 = vadd.f32 0.0, %v3173
      %3175 = vmatmul.f32.gmra.mxu0 %v3061
      %v3176 = vpop.f32.mrf.mxu0
      %v3177 = vadd.f32 0.0, %v3176
      %3178 = vmatmul.f32.gmra.mxu0 %v3064
      %v3179 = vpop.f32.mrf.mxu0
      %v3180 = vadd.f32 0.0, %v3179
      %3181 = vmatmul.f32.gmra.mxu0 %v3067
      %v3182 = vpop.f32.mrf.mxu0
      %v3183 = vadd.f32 0.0, %v3182
      %3184 = vmatmul.f32.gmra.mxu0 %v3070
      %v3185 = vpop.f32.mrf.mxu0
      %v3186 = vadd.f32 0.0, %v3185
      %3187 = vmatmul.f32.gmra.mxu0 %v3073
      %v3188 = vpop.f32.mrf.mxu0
      %v3189 = vadd.f32 0.0, %v3188
      %3190 = vmatmul.f32.gmra.mxu0 %v3076
      %v3191 = vpop.f32.mrf.mxu0
      %v3192 = vadd.f32 0.0, %v3191
      %3193 = vmatmul.f32.gmra.mxu0 %v3079
      %v3194 = vpop.f32.mrf.mxu0
      %v3195 = vadd.f32 0.0, %v3194
      %3196 = vmatmul.f32.gmra.mxu0 %v3082
      %v3197 = vpop.f32.mrf.mxu0
      %v3198 = vadd.f32 0.0, %v3197
      %3199 = vmatmul.f32.gmra.mxu0 %v3085
      %v3200 = vpop.f32.mrf.mxu0
      %v3201 = vadd.f32 0.0, %v3200
      %3202 = vdwg.mxu0
      %v3203 = vadd.f32 %v2921, %v3108
      %v3204 = vadd.f32 %v2922, %v3111
      %v3205 = vadd.f32 %v2923, %v3114
      %v3206 = vadd.f32 %v2924, %v3117
      %v3207 = vadd.f32 %v2925, %v3120
      %v3208 = vadd.f32 %v2926, %v3123
      %v3209 = vadd.f32 %v2927, %v3126
      %v3210 = vadd.f32 %v2928, %v3129
      %v3211 = vadd.f32 %v2929, %v3132
      %v3212 = vadd.f32 %v2930, %v3135
      %v3213 = vadd.f32 %v2931, %v3138
      %v3214 = vadd.f32 %v2932, %v3141
      %v3215 = vadd.f32 %v2933, %v3144
      %v3216 = vadd.f32 %v2934, %v3147
      %v3217 = vadd.f32 %v2935, %v3150
      %v3218 = vadd.f32 %v2936, %v3153
      %v3219 = vadd.f32 %v2937, %v3156
      %v3220 = vadd.f32 %v2938, %v3159
      %v3221 = vadd.f32 %v2939, %v3162
      %v3222 = vadd.f32 %v2940, %v3165
      %v3223 = vadd.f32 %v2941, %v3168
      %v3224 = vadd.f32 %v2942, %v3171
      %v3225 = vadd.f32 %v2943, %v3174
      %v3226 = vadd.f32 %v2944, %v3177
      %v3227 = vadd.f32 %v2945, %v3180
      %v3228 = vadd.f32 %v2946, %v3183
      %v3229 = vadd.f32 %v2947, %v3186
      %v3230 = vadd.f32 %v2948, %v3189
      %v3231 = vadd.f32 %v2949, %v3192
      %v3232 = vadd.f32 %v2950, %v3195
      %v3233 = vadd.f32 %v2951, %v3198
      %v3234 = vadd.f32 %v2952, %v3201
      %s3235 = scalar_lea.vmem %s2, 16
      %v3236 = vld [vmem:[%s3235] sm:$0xf]
      %v3238 = vsel %vm204, %v2985, 0
      %v3241 = vsel %vm204, %v2986, 0
      %v3244 = vsel %vm450, %v3236, 0
      %3246 = vmatpush.msra.mxu0 0.0
      %3247 = vmatpush.msra.mxu0 0.0
      %3248 = vmatpush.msra.mxu0 0.0
      %3249 = vmatpush.msra.mxu0 0.0
      %3250 = vmatpush.msra.mxu0 0.0
      %3251 = vmatpush.msra.mxu0 0.0
      %3252 = vmatpush.msra.mxu0 0.0
      %3253 = vmatpush.msra.mxu0 0.0
      %3254 = vmatpush.msra.mxu0 0.0
      %3255 = vmatpush.msra.mxu0 0.0
      %3256 = vmatpush.msra.mxu0 0.0
      %3257 = vmatpush.msra.mxu0 0.0
      %3258 = vmatpush.msra.mxu0 0.0
      %3259 = vmatpush.msra.mxu0 0.0
      %3260 = vmatpush.msra.mxu0 0.0
      %3261 = vmatpush.msra.mxu0 %v3244
      %3262 = vmatmul.f32.gmra.mxu0 %v2998
      %v3263 = vpop.f32.mrf.mxu0
      %v3264 = vadd.f32 0.0, %v3263
      %3265 = vmatmul.f32.gmra.mxu0 %v3001
      %v3266 = vpop.f32.mrf.mxu0
      %v3267 = vadd.f32 0.0, %v3266
      %3268 = vmatmul.f32.gmra.mxu0 %v3004
      %v3269 = vpop.f32.mrf.mxu0
      %v3270 = vadd.f32 0.0, %v3269
      %3271 = vmatmul.f32.gmra.mxu0 %v3007
      %v3272 = vpop.f32.mrf.mxu0
      %v3273 = vadd.f32 0.0, %v3272
      %3274 = vmatmul.f32.gmra.mxu0 %v3010
      %v3275 = vpop.f32.mrf.mxu0
      %v3276 = vadd.f32 0.0, %v3275
      %3277 = vmatmul.f32.gmra.mxu0 %v3013
      %v3278 = vpop.f32.mrf.mxu0
      %v3279 = vadd.f32 0.0, %v3278
      %3280 = vmatmul.f32.gmra.mxu0 %v3016
      %v3281 = vpop.f32.mrf.mxu0
      %v3282 = vadd.f32 0.0, %v3281
      %3283 = vmatmul.f32.gmra.mxu0 %v3019
      %v3284 = vpop.f32.mrf.mxu0
      %v3285 = vadd.f32 0.0, %v3284
      %3286 = vmatmul.f32.gmra.mxu0 %v3022
      %v3287 = vpop.f32.mrf.mxu0
      %v3288 = vadd.f32 0.0, %v3287
      %3289 = vmatmul.f32.gmra.mxu0 %v3025
      %v3290 = vpop.f32.mrf.mxu0
      %v3291 = vadd.f32 0.0, %v3290
      %3292 = vmatmul.f32.gmra.mxu0 %v3028
      %v3293 = vpop.f32.mrf.mxu0
      %v3294 = vadd.f32 0.0, %v3293
      %3295 = vmatmul.f32.gmra.mxu0 %v3031
      %v3296 = vpop.f32.mrf.mxu0
      %v3297 = vadd.f32 0.0, %v3296
      %3298 = vmatmul.f32.gmra.mxu0 %v3034
      %v3299 = vpop.f32.mrf.mxu0
      %v3300 = vadd.f32 0.0, %v3299
      %3301 = vmatmul.f32.gmra.mxu0 %v3037
      %v3302 = vpop.f32.mrf.mxu0
      %v3303 = vadd.f32 0.0, %v3302
      %3304 = vmatmul.f32.gmra.mxu0 %v3040
      %v3305 = vpop.f32.mrf.mxu0
      %v3306 = vadd.f32 0.0, %v3305
      %3307 = vmatmul.f32.gmra.mxu0 %v3043
      %v3308 = vpop.f32.mrf.mxu0
      %v3309 = vadd.f32 0.0, %v3308
      %3310 = vmatmul.f32.gmra.mxu0 %v3046
      %v3311 = vpop.f32.mrf.mxu0
      %v3312 = vadd.f32 0.0, %v3311
      %3313 = vmatmul.f32.gmra.mxu0 %v3049
      %v3314 = vpop.f32.mrf.mxu0
      %v3315 = vadd.f32 0.0, %v3314
      %3316 = vmatmul.f32.gmra.mxu0 %v3052
      %v3317 = vpop.f32.mrf.mxu0
      %v3318 = vadd.f32 0.0, %v3317
      %3319 = vmatmul.f32.gmra.mxu0 %v3055
      %v3320 = vpop.f32.mrf.mxu0
      %v3321 = vadd.f32 0.0, %v3320
      %3322 = vmatmul.f32.gmra.mxu0 %v3058
      %v3323 = vpop.f32.mrf.mxu0
      %v3324 = vadd.f32 0.0, %v3323
      %3325 = vmatmul.f32.gmra.mxu0 %v3061
      %v3326 = vpop.f32.mrf.mxu0
      %v3327 = vadd.f32 0.0, %v3326
      %3328 = vmatmul.f32.gmra.mxu0 %v3064
      %v3329 = vpop.f32.mrf.mxu0
      %v3330 = vadd.f32 0.0, %v3329
      %3331 = vmatmul.f32.gmra.mxu0 %v3067
      %v3332 = vpop.f32.mrf.mxu0
      %v3333 = vadd.f32 0.0, %v3332
      %3334 = vmatmul.f32.gmra.mxu0 %v3070
      %v3335 = vpop.f32.mrf.mxu0
      %v3336 = vadd.f32 0.0, %v3335
      %3337 = vmatmul.f32.gmra.mxu0 %v3073
      %v3338 = vpop.f32.mrf.mxu0
      %v3339 = vadd.f32 0.0, %v3338
      %3340 = vmatmul.f32.gmra.mxu0 %v3076
      %v3341 = vpop.f32.mrf.mxu0
      %v3342 = vadd.f32 0.0, %v3341
      %3343 = vmatmul.f32.gmra.mxu0 %v3079
      %v3344 = vpop.f32.mrf.mxu0
      %v3345 = vadd.f32 0.0, %v3344
      %3346 = vmatmul.f32.gmra.mxu0 %v3082
      %v3347 = vpop.f32.mrf.mxu0
      %v3348 = vadd.f32 0.0, %v3347
      %3349 = vmatmul.f32.gmra.mxu0 %v3085
      %v3350 = vpop.f32.mrf.mxu0
      %v3351 = vadd.f32 0.0, %v3350
      %3352 = vmatmul.f32.gmra.mxu0 %v3238
      %v3353 = vpop.f32.mrf.mxu0
      %v3354 = vadd.f32 0.0, %v3353
      %3355 = vmatmul.f32.gmra.mxu0 %v3241
      %v3356 = vpop.f32.mrf.mxu0
      %v3357 = vadd.f32 0.0, %v3356
      %3358 = vdwg.mxu0
      %v3359 = vadd.f32 %v3203, %v3264
      %v3360 = vadd.f32 %v3204, %v3267
      %v3361 = vadd.f32 %v3205, %v3270
      %v3362 = vadd.f32 %v3206, %v3273
      %v3363 = vadd.f32 %v3207, %v3276
      %v3364 = vadd.f32 %v3208, %v3279
      %v3365 = vadd.f32 %v3209, %v3282
      %v3366 = vadd.f32 %v3210, %v3285
      %v3367 = vadd.f32 %v3211, %v3288
      %v3368 = vadd.f32 %v3212, %v3291
      %v3369 = vadd.f32 %v3213, %v3294
      %v3370 = vadd.f32 %v3214, %v3297
      %v3371 = vadd.f32 %v3215, %v3300
      %v3372 = vadd.f32 %v3216, %v3303
      %v3373 = vadd.f32 %v3217, %v3306
      %v3374 = vadd.f32 %v3218, %v3309
      %v3375 = vadd.f32 %v3219, %v3312
      %v3376 = vadd.f32 %v3220, %v3315
      %v3377 = vadd.f32 %v3221, %v3318
      %v3378 = vadd.f32 %v3222, %v3321
      %v3379 = vadd.f32 %v3223, %v3324
      %v3380 = vadd.f32 %v3224, %v3327
      %v3381 = vadd.f32 %v3225, %v3330
      %v3382 = vadd.f32 %v3226, %v3333
      %v3383 = vadd.f32 %v3227, %v3336
      %v3384 = vadd.f32 %v3228, %v3339
      %v3385 = vadd.f32 %v3229, %v3342
      %v3386 = vadd.f32 %v3230, %v3345
      %v3387 = vadd.f32 %v3231, %v3348
      %v3388 = vadd.f32 %v3232, %v3351
      %v3389 = vadd.f32 %v3233, %v3354
      %v3390 = vadd.f32 %v3234, %v3357
      %s3391 = scalar_lea.vmem %s2, 28
      %v3392 = vld [vmem:[%s3391] sm:$0xf]
      %v3394 = vsel %vm204, %v2987, 0
      %v3397 = vsel %vm204, %v2988, 0
      %v3400 = vsel %vm450, %v3392, 0
      %3402 = vmatpush.msra.mxu0 0.0
      %3403 = vmatpush.msra.mxu0 0.0
      %3404 = vmatpush.msra.mxu0 0.0
      %3405 = vmatpush.msra.mxu0 0.0
      %3406 = vmatpush.msra.mxu0 0.0
      %3407 = vmatpush.msra.mxu0 0.0
      %3408 = vmatpush.msra.mxu0 0.0
      %3409 = vmatpush.msra.mxu0 0.0
      %3410 = vmatpush.msra.mxu0 0.0
      %3411 = vmatpush.msra.mxu0 0.0
      %3412 = vmatpush.msra.mxu0 0.0
      %3413 = vmatpush.msra.mxu0 0.0
      %3414 = vmatpush.msra.mxu0 0.0
      %3415 = vmatpush.msra.mxu0 0.0
      %3416 = vmatpush.msra.mxu0 0.0
      %3417 = vmatpush.msra.mxu0 %v3400
      %3418 = vmatmul.f32.gmra.mxu0 %v3004
      %v3419 = vpop.f32.mrf.mxu0
      %v3420 = vadd.f32 0.0, %v3419
      %3421 = vmatmul.f32.gmra.mxu0 %v3007
      %v3422 = vpop.f32.mrf.mxu0
      %v3423 = vadd.f32 0.0, %v3422
      %3424 = vmatmul.f32.gmra.mxu0 %v3010
      %v3425 = vpop.f32.mrf.mxu0
      %v3426 = vadd.f32 0.0, %v3425
      %3427 = vmatmul.f32.gmra.mxu0 %v3013
      %v3428 = vpop.f32.mrf.mxu0
      %v3429 = vadd.f32 0.0, %v3428
      %3430 = vmatmul.f32.gmra.mxu0 %v3016
      %v3431 = vpop.f32.mrf.mxu0
      %v3432 = vadd.f32 0.0, %v3431
      %3433 = vmatmul.f32.gmra.mxu0 %v3019
      %v3434 = vpop.f32.mrf.mxu0
      %v3435 = vadd.f32 0.0, %v3434
      %3436 = vmatmul.f32.gmra.mxu0 %v3022
      %v3437 = vpop.f32.mrf.mxu0
      %v3438 = vadd.f32 0.0, %v3437
      %3439 = vmatmul.f32.gmra.mxu0 %v3025
      %v3440 = vpop.f32.mrf.mxu0
      %v3441 = vadd.f32 0.0, %v3440
      %3442 = vmatmul.f32.gmra.mxu0 %v3028
      %v3443 = vpop.f32.mrf.mxu0
      %v3444 = vadd.f32 0.0, %v3443
      %3445 = vmatmul.f32.gmra.mxu0 %v3031
      %v3446 = vpop.f32.mrf.mxu0
      %v3447 = vadd.f32 0.0, %v3446
      %3448 = vmatmul.f32.gmra.mxu0 %v3034
      %v3449 = vpop.f32.mrf.mxu0
      %v3450 = vadd.f32 0.0, %v3449
      %3451 = vmatmul.f32.gmra.mxu0 %v3037
      %v3452 = vpop.f32.mrf.mxu0
      %v3453 = vadd.f32 0.0, %v3452
      %3454 = vmatmul.f32.gmra.mxu0 %v3040
      %v3455 = vpop.f32.mrf.mxu0
      %v3456 = vadd.f32 0.0, %v3455
      %3457 = vmatmul.f32.gmra.mxu0 %v3043
      %v3458 = vpop.f32.mrf.mxu0
      %v3459 = vadd.f32 0.0, %v3458
      %3460 = vmatmul.f32.gmra.mxu0 %v3046
      %v3461 = vpop.f32.mrf.mxu0
      %v3462 = vadd.f32 0.0, %v3461
      %3463 = vmatmul.f32.gmra.mxu0 %v3049
      %v3464 = vpop.f32.mrf.mxu0
      %v3465 = vadd.f32 0.0, %v3464
      %3466 = vmatmul.f32.gmra.mxu0 %v3052
      %v3467 = vpop.f32.mrf.mxu0
      %v3468 = vadd.f32 0.0, %v3467
      %3469 = vmatmul.f32.gmra.mxu0 %v3055
      %v3470 = vpop.f32.mrf.mxu0
      %v3471 = vadd.f32 0.0, %v3470
      %3472 = vmatmul.f32.gmra.mxu0 %v3058
      %v3473 = vpop.f32.mrf.mxu0
      %v3474 = vadd.f32 0.0, %v3473
      %3475 = vmatmul.f32.gmra.mxu0 %v3061
      %v3476 = vpop.f32.mrf.mxu0
      %v3477 = vadd.f32 0.0, %v3476
      %3478 = vmatmul.f32.gmra.mxu0 %v3064
      %v3479 = vpop.f32.mrf.mxu0
      %v3480 = vadd.f32 0.0, %v3479
      %3481 = vmatmul.f32.gmra.mxu0 %v3067
      %v3482 = vpop.f32.mrf.mxu0
      %v3483 = vadd.f32 0.0, %v3482
      %3484 = vmatmul.f32.gmra.mxu0 %v3070
      %v3485 = vpop.f32.mrf.mxu0
      %v3486 = vadd.f32 0.0, %v3485
      %3487 = vmatmul.f32.gmra.mxu0 %v3073
      %v3488 = vpop.f32.mrf.mxu0
      %v3489 = vadd.f32 0.0, %v3488
      %3490 = vmatmul.f32.gmra.mxu0 %v3076
      %v3491 = vpop.f32.mrf.mxu0
      %v3492 = vadd.f32 0.0, %v3491
      %3493 = vmatmul.f32.gmra.mxu0 %v3079
      %v3494 = vpop.f32.mrf.mxu0
      %v3495 = vadd.f32 0.0, %v3494
      %3496 = vmatmul.f32.gmra.mxu0 %v3082
      %v3497 = vpop.f32.mrf.mxu0
      %v3498 = vadd.f32 0.0, %v3497
      %3499 = vmatmul.f32.gmra.mxu0 %v3085
      %v3500 = vpop.f32.mrf.mxu0
      %v3501 = vadd.f32 0.0, %v3500
      %3502 = vmatmul.f32.gmra.mxu0 %v3238
      %v3503 = vpop.f32.mrf.mxu0
      %v3504 = vadd.f32 0.0, %v3503
      %3505 = vmatmul.f32.gmra.mxu0 %v3241
      %v3506 = vpop.f32.mrf.mxu0
      %v3507 = vadd.f32 0.0, %v3506
      %3508 = vmatmul.f32.gmra.mxu0 %v3394
      %v3509 = vpop.f32.mrf.mxu0
      %v3510 = vadd.f32 0.0, %v3509
      %3511 = vmatmul.f32.gmra.mxu0 %v3397
      %v3512 = vpop.f32.mrf.mxu0
      %v3513 = vadd.f32 0.0, %v3512
      %3514 = vdwg.mxu0
      %v3515 = vadd.f32 %v3359, %v3420
      %v3516 = vadd.f32 %v3360, %v3423
      %v3517 = vadd.f32 %v3361, %v3426
      %v3518 = vadd.f32 %v3362, %v3429
      %v3519 = vadd.f32 %v3363, %v3432
      %v3520 = vadd.f32 %v3364, %v3435
      %v3521 = vadd.f32 %v3365, %v3438
      %v3522 = vadd.f32 %v3366, %v3441
      %v3523 = vadd.f32 %v3367, %v3444
      %v3524 = vadd.f32 %v3368, %v3447
      %v3525 = vadd.f32 %v3369, %v3450
      %v3526 = vadd.f32 %v3370, %v3453
      %v3527 = vadd.f32 %v3371, %v3456
      %v3528 = vadd.f32 %v3372, %v3459
      %v3529 = vadd.f32 %v3373, %v3462
      %v3530 = vadd.f32 %v3374, %v3465
      %v3531 = vadd.f32 %v3375, %v3468
      %v3532 = vadd.f32 %v3376, %v3471
      %v3533 = vadd.f32 %v3377, %v3474
      %v3534 = vadd.f32 %v3378, %v3477
      %v3535 = vadd.f32 %v3379, %v3480
      %v3536 = vadd.f32 %v3380, %v3483
      %v3537 = vadd.f32 %v3381, %v3486
      %v3538 = vadd.f32 %v3382, %v3489
      %v3539 = vadd.f32 %v3383, %v3492
      %v3540 = vadd.f32 %v3384, %v3495
      %v3541 = vadd.f32 %v3385, %v3498
      %v3542 = vadd.f32 %v3386, %v3501
      %v3543 = vadd.f32 %v3387, %v3504
      %v3544 = vadd.f32 %v3388, %v3507
      %v3545 = vadd.f32 %v3389, %v3510
      %v3546 = vadd.f32 %v3390, %v3513
      %v3547 = vld [vmem:[#allocation3 + $0x2] sm:$0xff]
      %v3548 = vld [vmem:[#allocation3 + $0xa] sm:$0xff]
      %v3549 = vld [vmem:[#allocation3 + $0x1a] sm:$0xff]
      %v3550 = vld [vmem:[#allocation3 + $0x22] sm:$0xff]
      %v3551 = vld [vmem:[#allocation3 + $0x32] sm:$0xff]
      %v3552 = vld [vmem:[#allocation3 + $0x3a] sm:$0xff]
      %v3553 = vld [vmem:[#allocation3 + $0x4a] sm:$0xff]
      %v3554 = vld [vmem:[#allocation3 + $0x52] sm:$0xff]
      %v3555 = vld [vmem:[#allocation3 + $0x62] sm:$0xff]
      %v3556 = vld [vmem:[#allocation3 + $0x6a] sm:$0xff]
      %v3557 = vld [vmem:[#allocation3 + $0x7a] sm:$0xff]
      %v3558 = vld [vmem:[#allocation3 + $0x82] sm:$0xff]
      %v3559 = vld [vmem:[#allocation3 + $0x92] sm:$0xff]
      %v3560 = vld [vmem:[#allocation3 + $0x9a] sm:$0xff]
      %v3561 = vld [vmem:[#allocation3 + $0xaa] sm:$0xff]
      %v3562 = vld [vmem:[#allocation3 + $0xb2] sm:$0xff]
      %v3563 = vld [vmem:[#allocation3 + $0xc2] sm:$0xff]
      %v3564 = vld [vmem:[#allocation3 + $0xca] sm:$0xff]
      %v3565 = vld [vmem:[#allocation3 + $0xda] sm:$0xff]
      %v3566 = vld [vmem:[#allocation3 + $0xe2] sm:$0xff]
      %v3567 = vld [vmem:[#allocation3 + $0xf2] sm:$0xff]
      %v3568 = vld [vmem:[#allocation3 + $0xfa] sm:$0xff]
      %v3569 = vld [vmem:[#allocation3 + $0x10a] sm:$0xff]
      %v3570 = vld [vmem:[#allocation3 + $0x112] sm:$0xff]
      %v3571 = vld [vmem:[#allocation3 + $0x122] sm:$0xff]
      %v3572 = vld [vmem:[#allocation3 + $0x12a] sm:$0xff]
      %v3573 = vld [vmem:[#allocation3 + $0x13a] sm:$0xff]
      %v3574 = vld [vmem:[#allocation3 + $0x142] sm:$0xff]
      %v3575 = vld [vmem:[#allocation3 + $0x152] sm:$0xff]
      %v3576 = vld [vmem:[#allocation3 + $0x15a] sm:$0xff]
      %v3577 = vld [vmem:[#allocation3 + $0x16a] sm:$0xff]
      %v3578 = vld [vmem:[#allocation3 + $0x172] sm:$0xff]
      %v3579 = vld [vmem:[#allocation3 + $0x182] sm:$0xff]
      %v3580 = vld [vmem:[#allocation3 + $0x18a] sm:$0xff]
      %v3581 = vld [vmem:[#allocation3 + $0x19a] sm:$0xff]
      %v3582 = vld [vmem:[#allocation3 + $0x1a2] sm:$0xff]
      %s3583 = scalar_lea.vmem %s2, 8
      %v3584 = vld [vmem:[%s3583] sm:$0xf]
      %v3586 = vsel %vm204, %v3547, 0
      %v3589 = vsel %vm204, %v3548, 0
      %v3592 = vsel %vm204, %v3549, 0
      %v3595 = vsel %vm204, %v3550, 0
      %v3598 = vsel %vm204, %v3551, 0
      %v3601 = vsel %vm204, %v3552, 0
      %v3604 = vsel %vm204, %v3553, 0
      %v3607 = vsel %vm204, %v3554, 0
      %v3610 = vsel %vm204, %v3555, 0
      %v3613 = vsel %vm204, %v3556, 0
      %v3616 = vsel %vm204, %v3557, 0
      %v3619 = vsel %vm204, %v3558, 0
      %v3622 = vsel %vm204, %v3559, 0
      %v3625 = vsel %vm204, %v3560, 0
      %v3628 = vsel %vm204, %v3561, 0
      %v3631 = vsel %vm204, %v3562, 0
      %v3634 = vsel %vm204, %v3563, 0
      %v3637 = vsel %vm204, %v3564, 0
      %v3640 = vsel %vm204, %v3565, 0
      %v3643 = vsel %vm204, %v3566, 0
      %v3646 = vsel %vm204, %v3567, 0
      %v3649 = vsel %vm204, %v3568, 0
      %v3652 = vsel %vm204, %v3569, 0
      %v3655 = vsel %vm204, %v3570, 0
      %v3658 = vsel %vm204, %v3571, 0
      %v3661 = vsel %vm204, %v3572, 0
      %v3664 = vsel %vm204, %v3573, 0
      %v3667 = vsel %vm204, %v3574, 0
      %v3670 = vsel %vm204, %v3575, 0
      %v3673 = vsel %vm204, %v3576, 0
      %v3676 = vsel %vm204, %v3577, 0
      %v3679 = vsel %vm204, %v3578, 0
      %v3682 = vsel %vm450, %v3584, 0
      %3684 = vmatpush.msra.mxu0 0.0
      %3685 = vmatpush.msra.mxu0 0.0
      %3686 = vmatpush.msra.mxu0 0.0
      %3687 = vmatpush.msra.mxu0 0.0
      %3688 = vmatpush.msra.mxu0 0.0
      %3689 = vmatpush.msra.mxu0 0.0
      %3690 = vmatpush.msra.mxu0 0.0
      %3691 = vmatpush.msra.mxu0 0.0
      %3692 = vmatpush.msra.mxu0 0.0
      %3693 = vmatpush.msra.mxu0 0.0
      %3694 = vmatpush.msra.mxu0 0.0
      %3695 = vmatpush.msra.mxu0 0.0
      %3696 = vmatpush.msra.mxu0 0.0
      %3697 = vmatpush.msra.mxu0 0.0
      %3698 = vmatpush.msra.mxu0 0.0
      %3699 = vmatpush.msra.mxu0 %v3682
      %3700 = vmatmul.f32.gmra.mxu0 %v3586
      %v3701 = vpop.f32.mrf.mxu0
      %v3702 = vadd.f32 0.0, %v3701
      %3703 = vmatmul.f32.gmra.mxu0 %v3589
      %v3704 = vpop.f32.mrf.mxu0
      %v3705 = vadd.f32 0.0, %v3704
      %3706 = vmatmul.f32.gmra.mxu0 %v3592
      %v3707 = vpop.f32.mrf.mxu0
      %v3708 = vadd.f32 0.0, %v3707
      %3709 = vmatmul.f32.gmra.mxu0 %v3595
      %v3710 = vpop.f32.mrf.mxu0
      %v3711 = vadd.f32 0.0, %v3710
      %3712 = vmatmul.f32.gmra.mxu0 %v3598
      %v3713 = vpop.f32.mrf.mxu0
      %v3714 = vadd.f32 0.0, %v3713
      %3715 = vmatmul.f32.gmra.mxu0 %v3601
      %v3716 = vpop.f32.mrf.mxu0
      %v3717 = vadd.f32 0.0, %v3716
      %3718 = vmatmul.f32.gmra.mxu0 %v3604
      %v3719 = vpop.f32.mrf.mxu0
      %v3720 = vadd.f32 0.0, %v3719
      %3721 = vmatmul.f32.gmra.mxu0 %v3607
      %v3722 = vpop.f32.mrf.mxu0
      %v3723 = vadd.f32 0.0, %v3722
      %3724 = vmatmul.f32.gmra.mxu0 %v3610
      %v3725 = vpop.f32.mrf.mxu0
      %v3726 = vadd.f32 0.0, %v3725
      %3727 = vmatmul.f32.gmra.mxu0 %v3613
      %v3728 = vpop.f32.mrf.mxu0
      %v3729 = vadd.f32 0.0, %v3728
      %3730 = vmatmul.f32.gmra.mxu0 %v3616
      %v3731 = vpop.f32.mrf.mxu0
      %v3732 = vadd.f32 0.0, %v3731
      %3733 = vmatmul.f32.gmra.mxu0 %v3619
      %v3734 = vpop.f32.mrf.mxu0
      %v3735 = vadd.f32 0.0, %v3734
      %3736 = vmatmul.f32.gmra.mxu0 %v3622
      %v3737 = vpop.f32.mrf.mxu0
      %v3738 = vadd.f32 0.0, %v3737
      %3739 = vmatmul.f32.gmra.mxu0 %v3625
      %v3740 = vpop.f32.mrf.mxu0
      %v3741 = vadd.f32 0.0, %v3740
      %3742 = vmatmul.f32.gmra.mxu0 %v3628
      %v3743 = vpop.f32.mrf.mxu0
      %v3744 = vadd.f32 0.0, %v3743
      %3745 = vmatmul.f32.gmra.mxu0 %v3631
      %v3746 = vpop.f32.mrf.mxu0
      %v3747 = vadd.f32 0.0, %v3746
      %3748 = vmatmul.f32.gmra.mxu0 %v3634
      %v3749 = vpop.f32.mrf.mxu0
      %v3750 = vadd.f32 0.0, %v3749
      %3751 = vmatmul.f32.gmra.mxu0 %v3637
      %v3752 = vpop.f32.mrf.mxu0
      %v3753 = vadd.f32 0.0, %v3752
      %3754 = vmatmul.f32.gmra.mxu0 %v3640
      %v3755 = vpop.f32.mrf.mxu0
      %v3756 = vadd.f32 0.0, %v3755
      %3757 = vmatmul.f32.gmra.mxu0 %v3643
      %v3758 = vpop.f32.mrf.mxu0
      %v3759 = vadd.f32 0.0, %v3758
      %3760 = vmatmul.f32.gmra.mxu0 %v3646
      %v3761 = vpop.f32.mrf.mxu0
      %v3762 = vadd.f32 0.0, %v3761
      %3763 = vmatmul.f32.gmra.mxu0 %v3649
      %v3764 = vpop.f32.mrf.mxu0
      %v3765 = vadd.f32 0.0, %v3764
      %3766 = vmatmul.f32.gmra.mxu0 %v3652
      %v3767 = vpop.f32.mrf.mxu0
      %v3768 = vadd.f32 0.0, %v3767
      %3769 = vmatmul.f32.gmra.mxu0 %v3655
      %v3770 = vpop.f32.mrf.mxu0
      %v3771 = vadd.f32 0.0, %v3770
      %3772 = vmatmul.f32.gmra.mxu0 %v3658
      %v3773 = vpop.f32.mrf.mxu0
      %v3774 = vadd.f32 0.0, %v3773
      %3775 = vmatmul.f32.gmra.mxu0 %v3661
      %v3776 = vpop.f32.mrf.mxu0
      %v3777 = vadd.f32 0.0, %v3776
      %3778 = vmatmul.f32.gmra.mxu0 %v3664
      %v3779 = vpop.f32.mrf.mxu0
      %v3780 = vadd.f32 0.0, %v3779
      %3781 = vmatmul.f32.gmra.mxu0 %v3667
      %v3782 = vpop.f32.mrf.mxu0
      %v3783 = vadd.f32 0.0, %v3782
      %3784 = vmatmul.f32.gmra.mxu0 %v3670
      %v3785 = vpop.f32.mrf.mxu0
      %v3786 = vadd.f32 0.0, %v3785
      %3787 = vmatmul.f32.gmra.mxu0 %v3673
      %v3788 = vpop.f32.mrf.mxu0
      %v3789 = vadd.f32 0.0, %v3788
      %3790 = vmatmul.f32.gmra.mxu0 %v3676
      %v3791 = vpop.f32.mrf.mxu0
      %v3792 = vadd.f32 0.0, %v3791
      %3793 = vmatmul.f32.gmra.mxu0 %v3679
      %v3794 = vpop.f32.mrf.mxu0
      %v3795 = vadd.f32 0.0, %v3794
      %3796 = vdwg.mxu0
      %v3797 = vadd.f32 %v3515, %v3702
      %v3798 = vadd.f32 %v3516, %v3705
      %v3799 = vadd.f32 %v3517, %v3708
      %v3800 = vadd.f32 %v3518, %v3711
      %v3801 = vadd.f32 %v3519, %v3714
      %v3802 = vadd.f32 %v3520, %v3717
      %v3803 = vadd.f32 %v3521, %v3720
      %v3804 = vadd.f32 %v3522, %v3723
      %v3805 = vadd.f32 %v3523, %v3726
      %v3806 = vadd.f32 %v3524, %v3729
      %v3807 = vadd.f32 %v3525, %v3732
      %v3808 = vadd.f32 %v3526, %v3735
      %v3809 = vadd.f32 %v3527, %v3738
      %v3810 = vadd.f32 %v3528, %v3741
      %v3811 = vadd.f32 %v3529, %v3744
      %v3812 = vadd.f32 %v3530, %v3747
      %v3813 = vadd.f32 %v3531, %v3750
      %v3814 = vadd.f32 %v3532, %v3753
      %v3815 = vadd.f32 %v3533, %v3756
      %v3816 = vadd.f32 %v3534, %v3759
      %v3817 = vadd.f32 %v3535, %v3762
      %v3818 = vadd.f32 %v3536, %v3765
      %v3819 = vadd.f32 %v3537, %v3768
      %v3820 = vadd.f32 %v3538, %v3771
      %v3821 = vadd.f32 %v3539, %v3774
      %v3822 = vadd.f32 %v3540, %v3777
      %v3823 = vadd.f32 %v3541, %v3780
      %v3824 = vadd.f32 %v3542, %v3783
      %v3825 = vadd.f32 %v3543, %v3786
      %v3826 = vadd.f32 %v3544, %v3789
      %v3827 = vadd.f32 %v3545, %v3792
      %v3828 = vadd.f32 %v3546, %v3795
      %s3829 = scalar_lea.vmem %s2, 20
      %v3830 = vld [vmem:[%s3829] sm:$0xf]
      %v3832 = vsel %vm204, %v3579, 0
      %v3835 = vsel %vm204, %v3580, 0
      %v3838 = vsel %vm450, %v3830, 0
      %3840 = vmatpush.msra.mxu0 0.0
      %3841 = vmatpush.msra.mxu0 0.0
      %3842 = vmatpush.msra.mxu0 0.0
      %3843 = vmatpush.msra.mxu0 0.0
      %3844 = vmatpush.msra.mxu0 0.0
      %3845 = vmatpush.msra.mxu0 0.0
      %3846 = vmatpush.msra.mxu0 0.0
      %3847 = vmatpush.msra.mxu0 0.0
      %3848 = vmatpush.msra.mxu0 0.0
      %3849 = vmatpush.msra.mxu0 0.0
      %3850 = vmatpush.msra.mxu0 0.0
      %3851 = vmatpush.msra.mxu0 0.0
      %3852 = vmatpush.msra.mxu0 0.0
      %3853 = vmatpush.msra.mxu0 0.0
      %3854 = vmatpush.msra.mxu0 0.0
      %3855 = vmatpush.msra.mxu0 %v3838
      %3856 = vmatmul.f32.gmra.mxu0 %v3592
      %v3857 = vpop.f32.mrf.mxu0
      %v3858 = vadd.f32 0.0, %v3857
      %3859 = vmatmul.f32.gmra.mxu0 %v3595
      %v3860 = vpop.f32.mrf.mxu0
      %v3861 = vadd.f32 0.0, %v3860
      %3862 = vmatmul.f32.gmra.mxu0 %v3598
      %v3863 = vpop.f32.mrf.mxu0
      %v3864 = vadd.f32 0.0, %v3863
      %3865 = vmatmul.f32.gmra.mxu0 %v3601
      %v3866 = vpop.f32.mrf.mxu0
      %v3867 = vadd.f32 0.0, %v3866
      %3868 = vmatmul.f32.gmra.mxu0 %v3604
      %v3869 = vpop.f32.mrf.mxu0
      %v3870 = vadd.f32 0.0, %v3869
      %3871 = vmatmul.f32.gmra.mxu0 %v3607
      %v3872 = vpop.f32.mrf.mxu0
      %v3873 = vadd.f32 0.0, %v3872
      %3874 = vmatmul.f32.gmra.mxu0 %v3610
      %v3875 = vpop.f32.mrf.mxu0
      %v3876 = vadd.f32 0.0, %v3875
      %3877 = vmatmul.f32.gmra.mxu0 %v3613
      %v3878 = vpop.f32.mrf.mxu0
      %v3879 = vadd.f32 0.0, %v3878
      %3880 = vmatmul.f32.gmra.mxu0 %v3616
      %v3881 = vpop.f32.mrf.mxu0
      %v3882 = vadd.f32 0.0, %v3881
      %3883 = vmatmul.f32.gmra.mxu0 %v3619
      %v3884 = vpop.f32.mrf.mxu0
      %v3885 = vadd.f32 0.0, %v3884
      %3886 = vmatmul.f32.gmra.mxu0 %v3622
      %v3887 = vpop.f32.mrf.mxu0
      %v3888 = vadd.f32 0.0, %v3887
      %3889 = vmatmul.f32.gmra.mxu0 %v3625
      %v3890 = vpop.f32.mrf.mxu0
      %v3891 = vadd.f32 0.0, %v3890
      %3892 = vmatmul.f32.gmra.mxu0 %v3628
      %v3893 = vpop.f32.mrf.mxu0
      %v3894 = vadd.f32 0.0, %v3893
      %3895 = vmatmul.f32.gmra.mxu0 %v3631
      %v3896 = vpop.f32.mrf.mxu0
      %v3897 = vadd.f32 0.0, %v3896
      %3898 = vmatmul.f32.gmra.mxu0 %v3634
      %v3899 = vpop.f32.mrf.mxu0
      %v3900 = vadd.f32 0.0, %v3899
      %3901 = vmatmul.f32.gmra.mxu0 %v3637
      %v3902 = vpop.f32.mrf.mxu0
      %v3903 = vadd.f32 0.0, %v3902
      %3904 = vmatmul.f32.gmra.mxu0 %v3640
      %v3905 = vpop.f32.mrf.mxu0
      %v3906 = vadd.f32 0.0, %v3905
      %3907 = vmatmul.f32.gmra.mxu0 %v3643
      %v3908 = vpop.f32.mrf.mxu0
      %v3909 = vadd.f32 0.0, %v3908
      %3910 = vmatmul.f32.gmra.mxu0 %v3646
      %v3911 = vpop.f32.mrf.mxu0
      %v3912 = vadd.f32 0.0, %v3911
      %3913 = vmatmul.f32.gmra.mxu0 %v3649
      %v3914 = vpop.f32.mrf.mxu0
      %v3915 = vadd.f32 0.0, %v3914
      %3916 = vmatmul.f32.gmra.mxu0 %v3652
      %v3917 = vpop.f32.mrf.mxu0
      %v3918 = vadd.f32 0.0, %v3917
      %3919 = vmatmul.f32.gmra.mxu0 %v3655
      %v3920 = vpop.f32.mrf.mxu0
      %v3921 = vadd.f32 0.0, %v3920
      %3922 = vmatmul.f32.gmra.mxu0 %v3658
      %v3923 = vpop.f32.mrf.mxu0
      %v3924 = vadd.f32 0.0, %v3923
      %3925 = vmatmul.f32.gmra.mxu0 %v3661
      %v3926 = vpop.f32.mrf.mxu0
      %v3927 = vadd.f32 0.0, %v3926
      %3928 = vmatmul.f32.gmra.mxu0 %v3664
      %v3929 = vpop.f32.mrf.mxu0
      %v3930 = vadd.f32 0.0, %v3929
      %3931 = vmatmul.f32.gmra.mxu0 %v3667
      %v3932 = vpop.f32.mrf.mxu0
      %v3933 = vadd.f32 0.0, %v3932
      %3934 = vmatmul.f32.gmra.mxu0 %v3670
      %v3935 = vpop.f32.mrf.mxu0
      %v3936 = vadd.f32 0.0, %v3935
      %3937 = vmatmul.f32.gmra.mxu0 %v3673
      %v3938 = vpop.f32.mrf.mxu0
      %v3939 = vadd.f32 0.0, %v3938
      %3940 = vmatmul.f32.gmra.mxu0 %v3676
      %v3941 = vpop.f32.mrf.mxu0
      %v3942 = vadd.f32 0.0, %v3941
      %3943 = vmatmul.f32.gmra.mxu0 %v3679
      %v3944 = vpop.f32.mrf.mxu0
      %v3945 = vadd.f32 0.0, %v3944
      %3946 = vmatmul.f32.gmra.mxu0 %v3832
      %v3947 = vpop.f32.mrf.mxu0
      %v3948 = vadd.f32 0.0, %v3947
      %3949 = vmatmul.f32.gmra.mxu0 %v3835
      %v3950 = vpop.f32.mrf.mxu0
      %v3951 = vadd.f32 0.0, %v3950
      %3952 = vdwg.mxu0
      %v3953 = vadd.f32 %v3797, %v3858
      %v3954 = vadd.f32 %v3798, %v3861
      %v3955 = vadd.f32 %v3799, %v3864
      %v3956 = vadd.f32 %v3800, %v3867
      %v3957 = vadd.f32 %v3801, %v3870
      %v3958 = vadd.f32 %v3802, %v3873
      %v3959 = vadd.f32 %v3803, %v3876
      %v3960 = vadd.f32 %v3804, %v3879
      %v3961 = vadd.f32 %v3805, %v3882
      %v3962 = vadd.f32 %v3806, %v3885
      %v3963 = vadd.f32 %v3807, %v3888
      %v3964 = vadd.f32 %v3808, %v3891
      %v3965 = vadd.f32 %v3809, %v3894
      %v3966 = vadd.f32 %v3810, %v3897
      %v3967 = vadd.f32 %v3811, %v3900
      %v3968 = vadd.f32 %v3812, %v3903
      %v3969 = vadd.f32 %v3813, %v3906
      %v3970 = vadd.f32 %v3814, %v3909
      %v3971 = vadd.f32 %v3815, %v3912
      %v3972 = vadd.f32 %v3816, %v3915
      %v3973 = vadd.f32 %v3817, %v3918
      %v3974 = vadd.f32 %v3818, %v3921
      %v3975 = vadd.f32 %v3819, %v3924
      %v3976 = vadd.f32 %v3820, %v3927
      %v3977 = vadd.f32 %v3821, %v3930
      %v3978 = vadd.f32 %v3822, %v3933
      %v3979 = vadd.f32 %v3823, %v3936
      %v3980 = vadd.f32 %v3824, %v3939
      %v3981 = vadd.f32 %v3825, %v3942
      %v3982 = vadd.f32 %v3826, %v3945
      %v3983 = vadd.f32 %v3827, %v3948
      %v3984 = vadd.f32 %v3828, %v3951
      %s3985 = scalar_lea.vmem %s2, 32
      %v3986 = vld [vmem:[%s3985] sm:$0xf]
      %v3988 = vsel %vm204, %v3581, 0
      %v3991 = vsel %vm204, %v3582, 0
      %v3994 = vsel %vm450, %v3986, 0
      %3996 = vmatpush.msra.mxu0 0.0
      %3997 = vmatpush.msra.mxu0 0.0
      %3998 = vmatpush.msra.mxu0 0.0
      %3999 = vmatpush.msra.mxu0 0.0
      %4000 = vmatpush.msra.mxu0 0.0
      %4001 = vmatpush.msra.mxu0 0.0
      %4002 = vmatpush.msra.mxu0 0.0
      %4003 = vmatpush.msra.mxu0 0.0
      %4004 = vmatpush.msra.mxu0 0.0
      %4005 = vmatpush.msra.mxu0 0.0
      %4006 = vmatpush.msra.mxu0 0.0
      %4007 = vmatpush.msra.mxu0 0.0
      %4008 = vmatpush.msra.mxu0 0.0
      %4009 = vmatpush.msra.mxu0 0.0
      %4010 = vmatpush.msra.mxu0 0.0
      %4011 = vmatpush.msra.mxu0 %v3994
      %4012 = vmatmul.f32.gmra.mxu0 %v3598
      %v4013 = vpop.f32.mrf.mxu0
      %v4014 = vadd.f32 0.0, %v4013
      %4015 = vmatmul.f32.gmra.mxu0 %v3601
      %v4016 = vpop.f32.mrf.mxu0
      %v4017 = vadd.f32 0.0, %v4016
      %4018 = vmatmul.f32.gmra.mxu0 %v3604
      %v4019 = vpop.f32.mrf.mxu0
      %v4020 = vadd.f32 0.0, %v4019
      %4021 = vmatmul.f32.gmra.mxu0 %v3607
      %v4022 = vpop.f32.mrf.mxu0
      %v4023 = vadd.f32 0.0, %v4022
      %4024 = vmatmul.f32.gmra.mxu0 %v3610
      %v4025 = vpop.f32.mrf.mxu0
      %v4026 = vadd.f32 0.0, %v4025
      %4027 = vmatmul.f32.gmra.mxu0 %v3613
      %v4028 = vpop.f32.mrf.mxu0
      %v4029 = vadd.f32 0.0, %v4028
      %4030 = vmatmul.f32.gmra.mxu0 %v3616
      %v4031 = vpop.f32.mrf.mxu0
      %v4032 = vadd.f32 0.0, %v4031
      %4033 = vmatmul.f32.gmra.mxu0 %v3619
      %v4034 = vpop.f32.mrf.mxu0
      %v4035 = vadd.f32 0.0, %v4034
      %4036 = vmatmul.f32.gmra.mxu0 %v3622
      %v4037 = vpop.f32.mrf.mxu0
      %v4038 = vadd.f32 0.0, %v4037
      %4039 = vmatmul.f32.gmra.mxu0 %v3625
      %v4040 = vpop.f32.mrf.mxu0
      %v4041 = vadd.f32 0.0, %v4040
      %4042 = vmatmul.f32.gmra.mxu0 %v3628
      %v4043 = vpop.f32.mrf.mxu0
      %v4044 = vadd.f32 0.0, %v4043
      %4045 = vmatmul.f32.gmra.mxu0 %v3631
      %v4046 = vpop.f32.mrf.mxu0
      %v4047 = vadd.f32 0.0, %v4046
      %4048 = vmatmul.f32.gmra.mxu0 %v3634
      %v4049 = vpop.f32.mrf.mxu0
      %v4050 = vadd.f32 0.0, %v4049
      %4051 = vmatmul.f32.gmra.mxu0 %v3637
      %v4052 = vpop.f32.mrf.mxu0
      %v4053 = vadd.f32 0.0, %v4052
      %4054 = vmatmul.f32.gmra.mxu0 %v3640
      %v4055 = vpop.f32.mrf.mxu0
      %v4056 = vadd.f32 0.0, %v4055
      %4057 = vmatmul.f32.gmra.mxu0 %v3643
      %v4058 = vpop.f32.mrf.mxu0
      %v4059 = vadd.f32 0.0, %v4058
      %4060 = vmatmul.f32.gmra.mxu0 %v3646
      %v4061 = vpop.f32.mrf.mxu0
      %v4062 = vadd.f32 0.0, %v4061
      %4063 = vmatmul.f32.gmra.mxu0 %v3649
      %v4064 = vpop.f32.mrf.mxu0
      %v4065 = vadd.f32 0.0, %v4064
      %4066 = vmatmul.f32.gmra.mxu0 %v3652
      %v4067 = vpop.f32.mrf.mxu0
      %v4068 = vadd.f32 0.0, %v4067
      %4069 = vmatmul.f32.gmra.mxu0 %v3655
      %v4070 = vpop.f32.mrf.mxu0
      %v4071 = vadd.f32 0.0, %v4070
      %4072 = vmatmul.f32.gmra.mxu0 %v3658
      %v4073 = vpop.f32.mrf.mxu0
      %v4074 = vadd.f32 0.0, %v4073
      %4075 = vmatmul.f32.gmra.mxu0 %v3661
      %v4076 = vpop.f32.mrf.mxu0
      %v4077 = vadd.f32 0.0, %v4076
      %4078 = vmatmul.f32.gmra.mxu0 %v3664
      %v4079 = vpop.f32.mrf.mxu0
      %v4080 = vadd.f32 0.0, %v4079
      %4081 = vmatmul.f32.gmra.mxu0 %v3667
      %v4082 = vpop.f32.mrf.mxu0
      %v4083 = vadd.f32 0.0, %v4082
      %4084 = vmatmul.f32.gmra.mxu0 %v3670
      %v4085 = vpop.f32.mrf.mxu0
      %v4086 = vadd.f32 0.0, %v4085
      %4087 = vmatmul.f32.gmra.mxu0 %v3673
      %v4088 = vpop.f32.mrf.mxu0
      %v4089 = vadd.f32 0.0, %v4088
      %4090 = vmatmul.f32.gmra.mxu0 %v3676
      %v4091 = vpop.f32.mrf.mxu0
      %v4092 = vadd.f32 0.0, %v4091
      %4093 = vmatmul.f32.gmra.mxu0 %v3679
      %v4094 = vpop.f32.mrf.mxu0
      %v4095 = vadd.f32 0.0, %v4094
      %4096 = vmatmul.f32.gmra.mxu0 %v3832
      %v4097 = vpop.f32.mrf.mxu0
      %v4098 = vadd.f32 0.0, %v4097
      %4099 = vmatmul.f32.gmra.mxu0 %v3835
      %v4100 = vpop.f32.mrf.mxu0
      %v4101 = vadd.f32 0.0, %v4100
      %4102 = vmatmul.f32.gmra.mxu0 %v3988
      %v4103 = vpop.f32.mrf.mxu0
      %v4104 = vadd.f32 0.0, %v4103
      %4105 = vmatmul.f32.gmra.mxu0 %v3991
      %v4106 = vpop.f32.mrf.mxu0
      %v4107 = vadd.f32 0.0, %v4106
      %4108 = vdwg.mxu0
      %v4109 = vadd.f32 %v3953, %v4014
      %v4110 = vadd.f32 %v3954, %v4017
      %v4111 = vadd.f32 %v3955, %v4020
      %v4112 = vadd.f32 %v3956, %v4023
      %v4113 = vadd.f32 %v3957, %v4026
      %v4114 = vadd.f32 %v3958, %v4029
      %v4115 = vadd.f32 %v3959, %v4032
      %v4116 = vadd.f32 %v3960, %v4035
      %v4117 = vadd.f32 %v3961, %v4038
      %v4118 = vadd.f32 %v3962, %v4041
      %v4119 = vadd.f32 %v3963, %v4044
      %v4120 = vadd.f32 %v3964, %v4047
      %v4121 = vadd.f32 %v3965, %v4050
      %v4122 = vadd.f32 %v3966, %v4053
      %v4123 = vadd.f32 %v3967, %v4056
      %v4124 = vadd.f32 %v3968, %v4059
      %v4125 = vadd.f32 %v3969, %v4062
      %v4126 = vadd.f32 %v3970, %v4065
      %v4127 = vadd.f32 %v3971, %v4068
      %v4128 = vadd.f32 %v3972, %v4071
      %v4129 = vadd.f32 %v3973, %v4074
      %v4130 = vadd.f32 %v3974, %v4077
      %v4131 = vadd.f32 %v3975, %v4080
      %v4132 = vadd.f32 %v3976, %v4083
      %v4133 = vadd.f32 %v3977, %v4086
      %v4134 = vadd.f32 %v3978, %v4089
      %v4135 = vadd.f32 %v3979, %v4092
      %v4136 = vadd.f32 %v3980, %v4095
      %v4137 = vadd.f32 %v3981, %v4098
      %v4138 = vadd.f32 %v3982, %v4101
      %v4139 = vadd.f32 %v3983, %v4104
      %v4140 = vadd.f32 %v3984, %v4107
      %v4141 = vsel %vm204, %v4109, 0.0
      %v4142 = vsel %vm204, %v4110, 0.0
      %v4143 = vadd.f32 %v4141, %v4142
      %v4144 = vsel %vm204, %v4111, 0.0
      %v4145 = vadd.f32 %v4143, %v4144
      %v4146 = vsel %vm204, %v4112, 0.0
      %v4147 = vadd.f32 %v4145, %v4146
      %v4148 = vsel %vm204, %v4113, 0.0
      %v4149 = vadd.f32 %v4147, %v4148
      %v4150 = vsel %vm204, %v4114, 0.0
      %v4151 = vadd.f32 %v4149, %v4150
      %v4152 = vsel %vm204, %v4115, 0.0
      %v4153 = vadd.f32 %v4151, %v4152
      %v4154 = vsel %vm204, %v4116, 0.0
      %v4155 = vadd.f32 %v4153, %v4154
      %v4156 = vsel %vm204, %v4117, 0.0
      %v4157 = vadd.f32 %v4155, %v4156
      %v4158 = vsel %vm204, %v4118, 0.0
      %v4159 = vadd.f32 %v4157, %v4158
      %v4160 = vsel %vm204, %v4119, 0.0
      %v4161 = vadd.f32 %v4159, %v4160
      %v4162 = vsel %vm204, %v4120, 0.0
      %v4163 = vadd.f32 %v4161, %v4162
      %v4164 = vsel %vm204, %v4121, 0.0
      %v4165 = vadd.f32 %v4163, %v4164
      %v4166 = vsel %vm204, %v4122, 0.0
      %v4167 = vadd.f32 %v4165, %v4166
      %v4168 = vsel %vm204, %v4123, 0.0
      %v4169 = vadd.f32 %v4167, %v4168
      %v4170 = vsel %vm204, %v4124, 0.0
      %v4171 = vadd.f32 %v4169, %v4170
      %v4172 = vsel %vm204, %v4125, 0.0
      %v4173 = vadd.f32 %v4171, %v4172
      %v4174 = vsel %vm204, %v4126, 0.0
      %v4175 = vadd.f32 %v4173, %v4174
      %v4176 = vsel %vm204, %v4127, 0.0
      %v4177 = vadd.f32 %v4175, %v4176
      %v4178 = vsel %vm204, %v4128, 0.0
      %v4179 = vadd.f32 %v4177, %v4178
      %v4180 = vsel %vm204, %v4129, 0.0
      %v4181 = vadd.f32 %v4179, %v4180
      %v4182 = vsel %vm204, %v4130, 0.0
      %v4183 = vadd.f32 %v4181, %v4182
      %v4184 = vsel %vm204, %v4131, 0.0
      %v4185 = vadd.f32 %v4183, %v4184
      %v4186 = vsel %vm204, %v4132, 0.0
      %v4187 = vadd.f32 %v4185, %v4186
      %v4188 = vsel %vm204, %v4133, 0.0
      %v4189 = vadd.f32 %v4187, %v4188
      %v4190 = vsel %vm204, %v4134, 0.0
      %v4191 = vadd.f32 %v4189, %v4190
      %v4192 = vsel %vm204, %v4135, 0.0
      %v4193 = vadd.f32 %v4191, %v4192
      %v4194 = vsel %vm204, %v4136, 0.0
      %v4195 = vadd.f32 %v4193, %v4194
      %v4196 = vsel %vm204, %v4137, 0.0
      %v4197 = vadd.f32 %v4195, %v4196
      %v4198 = vsel %vm204, %v4138, 0.0
      %v4199 = vadd.f32 %v4197, %v4198
      %v4200 = vsel %vm204, %v4139, 0.0
      %v4201 = vadd.f32 %v4199, %v4200
      %v4202 = vsel %vm204, %v4140, 0.0
      %v4203 = vadd.f32 %v4201, %v4202
      %v4204 = vrot.slane %v4203, 4
      %v4205 = vadd.f32 %v4203, %v4204
      %v4206 = vrot.slane %v4205, 2
      %v4207 = vadd.f32 %v4205, %v4206
      %v4208 = vrot.slane %v4207, 1
      %v4209 = vadd.f32 %v4207, %v4208
      %v4210 = vmul.f32 %v4209, 0.00390625
      %v4211 = vmul.f32 %v4109, %v4109
      %v4212 = vmul.f32 %v4110, %v4110
      %v4213 = vmul.f32 %v4111, %v4111
      %v4214 = vmul.f32 %v4112, %v4112
      %v4215 = vmul.f32 %v4113, %v4113
      %v4216 = vmul.f32 %v4114, %v4114
      %v4217 = vmul.f32 %v4115, %v4115
      %v4218 = vmul.f32 %v4116, %v4116
      %v4219 = vmul.f32 %v4117, %v4117
      %v4220 = vmul.f32 %v4118, %v4118
      %v4221 = vmul.f32 %v4119, %v4119
      %v4222 = vmul.f32 %v4120, %v4120
      %v4223 = vmul.f32 %v4121, %v4121
      %v4224 = vmul.f32 %v4122, %v4122
      %v4225 = vmul.f32 %v4123, %v4123
      %v4226 = vmul.f32 %v4124, %v4124
      %v4227 = vmul.f32 %v4125, %v4125
      %v4228 = vmul.f32 %v4126, %v4126
      %v4229 = vmul.f32 %v4127, %v4127
      %v4230 = vmul.f32 %v4128, %v4128
      %v4231 = vmul.f32 %v4129, %v4129
      %v4232 = vmul.f32 %v4130, %v4130
      %v4233 = vmul.f32 %v4131, %v4131
      %v4234 = vmul.f32 %v4132, %v4132
      %v4235 = vmul.f32 %v4133, %v4133
      %v4236 = vmul.f32 %v4134, %v4134
      %v4237 = vmul.f32 %v4135, %v4135
      %v4238 = vmul.f32 %v4136, %v4136
      %v4239 = vmul.f32 %v4137, %v4137
      %v4240 = vmul.f32 %v4138, %v4138
      %v4241 = vmul.f32 %v4139, %v4139
      %v4242 = vmul.f32 %v4140, %v4140
      %v4243 = vsel %vm204, %v4211, 0.0
      %v4244 = vsel %vm204, %v4212, 0.0
      %v4245 = vadd.f32 %v4243, %v4244
      %v4246 = vsel %vm204, %v4213, 0.0
      %v4247 = vadd.f32 %v4245, %v4246
      %v4248 = vsel %vm204, %v4214, 0.0
      %v4249 = vadd.f32 %v4247, %v4248
      %v4250 = vsel %vm204, %v4215, 0.0
      %v4251 = vadd.f32 %v4249, %v4250
      %v4252 = vsel %vm204, %v4216, 0.0
      %v4253 = vadd.f32 %v4251, %v4252
      %v4254 = vsel %vm204, %v4217, 0.0
      %v4255 = vadd.f32 %v4253, %v4254
      %v4256 = vsel %vm204, %v4218, 0.0
      %v4257 = vadd.f32 %v4255, %v4256
      %v4258 = vsel %vm204, %v4219, 0.0
      %v4259 = vadd.f32 %v4257, %v4258
      %v4260 = vsel %vm204, %v4220, 0.0
      %v4261 = vadd.f32 %v4259, %v4260
      %v4262 = vsel %vm204, %v4221, 0.0
      %v4263 = vadd.f32 %v4261, %v4262
      %v4264 = vsel %vm204, %v4222, 0.0
      %v4265 = vadd.f32 %v4263, %v4264
      %v4266 = vsel %vm204, %v4223, 0.0
      %v4267 = vadd.f32 %v4265, %v4266
      %v4268 = vsel %vm204, %v4224, 0.0
      %v4269 = vadd.f32 %v4267, %v4268
      %v4270 = vsel %vm204, %v4225, 0.0
      %v4271 = vadd.f32 %v4269, %v4270
      %v4272 = vsel %vm204, %v4226, 0.0
      %v4273 = vadd.f32 %v4271, %v4272
      %v4274 = vsel %vm204, %v4227, 0.0
      %v4275 = vadd.f32 %v4273, %v4274
      %v4276 = vsel %vm204, %v4228, 0.0
      %v4277 = vadd.f32 %v4275, %v4276
      %v4278 = vsel %vm204, %v4229, 0.0
      %v4279 = vadd.f32 %v4277, %v4278
      %v4280 = vsel %vm204, %v4230, 0.0
      %v4281 = vadd.f32 %v4279, %v4280
      %v4282 = vsel %vm204, %v4231, 0.0
      %v4283 = vadd.f32 %v4281, %v4282
      %v4284 = vsel %vm204, %v4232, 0.0
      %v4285 = vadd.f32 %v4283, %v4284
      %v4286 = vsel %vm204, %v4233, 0.0
      %v4287 = vadd.f32 %v4285, %v4286
      %v4288 = vsel %vm204, %v4234, 0.0
      %v4289 = vadd.f32 %v4287, %v4288
      %v4290 = vsel %vm204, %v4235, 0.0
      %v4291 = vadd.f32 %v4289, %v4290
      %v4292 = vsel %vm204, %v4236, 0.0
      %v4293 = vadd.f32 %v4291, %v4292
      %v4294 = vsel %vm204, %v4237, 0.0
      %v4295 = vadd.f32 %v4293, %v4294
      %v4296 = vsel %vm204, %v4238, 0.0
      %v4297 = vadd.f32 %v4295, %v4296
      %v4298 = vsel %vm204, %v4239, 0.0
      %v4299 = vadd.f32 %v4297, %v4298
      %v4300 = vsel %vm204, %v4240, 0.0
      %v4301 = vadd.f32 %v4299, %v4300
      %v4302 = vsel %vm204, %v4241, 0.0
      %v4303 = vadd.f32 %v4301, %v4302
      %v4304 = vsel %vm204, %v4242, 0.0
      %v4305 = vadd.f32 %v4303, %v4304
      %v4306 = vrot.slane %v4305, 4
      %v4307 = vadd.f32 %v4305, %v4306
      %v4308 = vrot.slane %v4307, 2
      %v4309 = vadd.f32 %v4307, %v4308
      %v4310 = vrot.slane %v4309, 1
      %v4311 = vadd.f32 %v4309, %v4310
      %v4312 = vmul.f32 %v4311, 0.00390625
      %v4313 = vmul.f32 %v4210, %v4210
      %v4314 = vsub.f32 %v4312, %v4313
      %v4315 = vsub.f32 %v4109, %v4210
      %v4316 = vsub.f32 %v4110, %v4210
      %v4317 = vsub.f32 %v4111, %v4210
      %v4318 = vsub.f32 %v4112, %v4210
      %v4319 = vsub.f32 %v4113, %v4210
      %v4320 = vsub.f32 %v4114, %v4210
      %v4321 = vsub.f32 %v4115, %v4210
      %v4322 = vsub.f32 %v4116, %v4210
      %v4323 = vsub.f32 %v4117, %v4210
      %v4324 = vsub.f32 %v4118, %v4210
      %v4325 = vsub.f32 %v4119, %v4210
      %v4326 = vsub.f32 %v4120, %v4210
      %v4327 = vsub.f32 %v4121, %v4210
      %v4328 = vsub.f32 %v4122, %v4210
      %v4329 = vsub.f32 %v4123, %v4210
      %v4330 = vsub.f32 %v4124, %v4210
      %v4331 = vsub.f32 %v4125, %v4210
      %v4332 = vsub.f32 %v4126, %v4210
      %v4333 = vsub.f32 %v4127, %v4210
      %v4334 = vsub.f32 %v4128, %v4210
      %v4335 = vsub.f32 %v4129, %v4210
      %v4336 = vsub.f32 %v4130, %v4210
      %v4337 = vsub.f32 %v4131, %v4210
      %v4338 = vsub.f32 %v4132, %v4210
      %v4339 = vsub.f32 %v4133, %v4210
      %v4340 = vsub.f32 %v4134, %v4210
      %v4341 = vsub.f32 %v4135, %v4210
      %v4342 = vsub.f32 %v4136, %v4210
      %v4343 = vsub.f32 %v4137, %v4210
      %v4344 = vsub.f32 %v4138, %v4210
      %v4345 = vsub.f32 %v4139, %v4210
      %v4346 = vsub.f32 %v4140, %v4210
      %v4347 = vadd.f32 %v4314, 1e-05
      %v4348 = vrsqrt.pop %v4347
      %v4349 = vmul.f32 %v4348, %v4347
      %v4350 = vmul.f32 %v4349, %v4348
      %v4351 = vmul.f32 0.5, %v4350
      %v4352 = vsub.f32 1.5, %v4351
      %v4353 = vmul.f32 %v4348, %v4352
      %vm4354 = vweird.f32 %v4347
      %vm4355 = vweird.f32 %v4348
      %vm4356 = vmor %vm4354, %vm4355
      %v4357 = vsel %vm4356, %v4348, %v4353
      %v4358 = vmul.f32 %v4315, %v4357
      %v4359 = vmul.f32 %v4316, %v4357
      %v4360 = vmul.f32 %v4317, %v4357
      %v4361 = vmul.f32 %v4318, %v4357
      %v4362 = vmul.f32 %v4319, %v4357
      %v4363 = vmul.f32 %v4320, %v4357
      %v4364 = vmul.f32 %v4321, %v4357
      %v4365 = vmul.f32 %v4322, %v4357
      %v4366 = vmul.f32 %v4323, %v4357
      %v4367 = vmul.f32 %v4324, %v4357
      %v4368 = vmul.f32 %v4325, %v4357
      %v4369 = vmul.f32 %v4326, %v4357
      %v4370 = vmul.f32 %v4327, %v4357
      %v4371 = vmul.f32 %v4328, %v4357
      %v4372 = vmul.f32 %v4329, %v4357
      %v4373 = vmul.f32 %v4330, %v4357
      %v4374 = vmul.f32 %v4331, %v4357
      %v4375 = vmul.f32 %v4332, %v4357
      %v4376 = vmul.f32 %v4333, %v4357
      %v4377 = vmul.f32 %v4334, %v4357
      %v4378 = vmul.f32 %v4335, %v4357
      %v4379 = vmul.f32 %v4336, %v4357
      %v4380 = vmul.f32 %v4337, %v4357
      %v4381 = vmul.f32 %v4338, %v4357
      %v4382 = vmul.f32 %v4339, %v4357
      %v4383 = vmul.f32 %v4340, %v4357
      %v4384 = vmul.f32 %v4341, %v4357
      %v4385 = vmul.f32 %v4342, %v4357
      %v4386 = vmul.f32 %v4343, %v4357
      %v4387 = vmul.f32 %v4344, %v4357
      %v4388 = vmul.f32 %v4345, %v4357
      %v4389 = vmul.f32 %v4346, %v4357
      %v4390 = vadd.f32 %v171, %v4358
      %v4391 = vadd.f32 %v172, %v4359
      %v4392 = vadd.f32 %v173, %v4360
      %v4393 = vadd.f32 %v174, %v4361
      %v4394 = vadd.f32 %v175, %v4362
      %v4395 = vadd.f32 %v176, %v4363
      %v4396 = vadd.f32 %v177, %v4364
      %v4397 = vadd.f32 %v178, %v4365
      %v4398 = vadd.f32 %v179, %v4366
      %v4399 = vadd.f32 %v180, %v4367
      %v4400 = vadd.f32 %v181, %v4368
      %v4401 = vadd.f32 %v182, %v4369
      %v4402 = vadd.f32 %v183, %v4370
      %v4403 = vadd.f32 %v184, %v4371
      %v4404 = vadd.f32 %v185, %v4372
      %v4405 = vadd.f32 %v186, %v4373
      %v4406 = vadd.f32 %v187, %v4374
      %v4407 = vadd.f32 %v188, %v4375
      %v4408 = vadd.f32 %v189, %v4376
      %v4409 = vadd.f32 %v190, %v4377
      %v4410 = vadd.f32 %v191, %v4378
      %v4411 = vadd.f32 %v192, %v4379
      %v4412 = vadd.f32 %v193, %v4380
      %v4413 = vadd.f32 %v194, %v4381
      %v4414 = vadd.f32 %v195, %v4382
      %v4415 = vadd.f32 %v196, %v4383
      %v4416 = vadd.f32 %v197, %v4384
      %v4417 = vadd.f32 %v198, %v4385
      %v4418 = vadd.f32 %v199, %v4386
      %v4419 = vadd.f32 %v200, %v4387
      %v4420 = vadd.f32 %v201, %v4388
      %v4421 = vadd.f32 %v202, %v4389
      %4422 = vst.msk [vmem:[%s170] sm:$0xff] %vm204, %v4390
      %4423 = vst.msk [vmem:[%s170 + $0x8] sm:$0xff] %vm204, %v4391
      %4424 = vst.msk [vmem:[%s170 + $0x10] sm:$0xff] %vm204, %v4392
      %4425 = vst.msk [vmem:[%s170 + $0x18] sm:$0xff] %vm204, %v4393
      %4426 = vst.msk [vmem:[%s170 + $0x20] sm:$0xff] %vm204, %v4394
      %4427 = vst.msk [vmem:[%s170 + $0x28] sm:$0xff] %vm204, %v4395
      %4428 = vst.msk [vmem:[%s170 + $0x30] sm:$0xff] %vm204, %v4396
      %4429 = vst.msk [vmem:[%s170 + $0x38] sm:$0xff] %vm204, %v4397
      %4430 = vst.msk [vmem:[%s170 + $0x40] sm:$0xff] %vm204, %v4398
      %4431 = vst.msk [vmem:[%s170 + $0x48] sm:$0xff] %vm204, %v4399
      %4432 = vst.msk [vmem:[%s170 + $0x50] sm:$0xff] %vm204, %v4400
      %4433 = vst.msk [vmem:[%s170 + $0x58] sm:$0xff] %vm204, %v4401
      %4434 = vst.msk [vmem:[%s170 + $0x60] sm:$0xff] %vm204, %v4402
      %4435 = vst.msk [vmem:[%s170 + $0x68] sm:$0xff] %vm204, %v4403
      %4436 = vst.msk [vmem:[%s170 + $0x70] sm:$0xff] %vm204, %v4404
      %4437 = vst.msk [vmem:[%s170 + $0x78] sm:$0xff] %vm204, %v4405
      %4438 = vst.msk [vmem:[%s170 + $0x80] sm:$0xff] %vm204, %v4406
      %4439 = vst.msk [vmem:[%s170 + $0x88] sm:$0xff] %vm204, %v4407
      %4440 = vst.msk [vmem:[%s170 + $0x90] sm:$0xff] %vm204, %v4408
      %4441 = vst.msk [vmem:[%s170 + $0x98] sm:$0xff] %vm204, %v4409
      %4442 = vst.msk [vmem:[%s170 + $0xa0] sm:$0xff] %vm204, %v4410
      %4443 = vst.msk [vmem:[%s170 + $0xa8] sm:$0xff] %vm204, %v4411
      %4444 = vst.msk [vmem:[%s170 + $0xb0] sm:$0xff] %vm204, %v4412
      %4445 = vst.msk [vmem:[%s170 + $0xb8] sm:$0xff] %vm204, %v4413
      %4446 = vst.msk [vmem:[%s170 + $0xc0] sm:$0xff] %vm204, %v4414
      %4447 = vst.msk [vmem:[%s170 + $0xc8] sm:$0xff] %vm204, %v4415
      %4448 = vst.msk [vmem:[%s170 + $0xd0] sm:$0xff] %vm204, %v4416
      %4449 = vst.msk [vmem:[%s170 + $0xd8] sm:$0xff] %vm204, %v4417
      %4450 = vst.msk [vmem:[%s170 + $0xe0] sm:$0xff] %vm204, %v4418
      %4451 = vst.msk [vmem:[%s170 + $0xe8] sm:$0xff] %vm204, %v4419
      %4452 = vst.msk [vmem:[%s170 + $0xf0] sm:$0xff] %vm204, %v4420
      %4453 = vst.msk [vmem:[%s170 + $0xf8] sm:$0xff] %vm204, %v4421
      %p4454 = scmp.lt.s32.totalorder %s14, 1
      %s4455 = scalar_select %p4454, %s14, 1
      %s4456 = smul.addr %s4455, 32
      %s4457 = smul.addr %s4456, 8
      %s4458 = scalar_lea.vmem %s3, %s4457
      // Predicated region
      $region33: #{residual_block.1} parent=31 // pred_check
        %p4459 = pneg %p100
      $region34: #{residual_block.1} parent=31 // pred_check_branch
        %4461 = sbr.rel (%p4459) target = $region36
      $region35: #{residual_block.1} parent=31 // pred_region
        _
      $region36: #{residual_block.1} parent=31 // pred_fallthru
        _
    $region32: #{residual_block.1} parent=5 // pred_fallthru
      _
    %p4462 = scmp.le.s32.totalorder 2, %s9
    // Predicated region
    $region37: #{residual_block.1} parent=5 // pred_check
      %p4463 = pneg %p4462
    $region38: #{residual_block.1} parent=5 // pred_check_branch
      %4465 = sbr.rel (%p4463) target = $region40
    $region39: #{residual_block.1} parent=5 // pred_region
      %s4466 = ssub.s32 %s9, 2
      // Predicated region
      $region41: #{residual_block.1} parent=39 // pred_check
        %p4467 = pneg %p106
      $region42: #{residual_block.1} parent=39 // pred_check_branch
        %4469 = sbr.rel (%p4467) target = $region44
      $region43: #{residual_block.1} parent=39 // pred_region
        %p4470 = scmp.lt.s32.totalorder %s15, 1
        %s4471 = scalar_select %p4470, %s15, 1
        %s4472 = smul.addr %s4471, 32
        %s4473 = smul.addr %s4472, 8
        %s4474 = scalar_lea.vmem %s3, %s4473
      $region44: #{residual_block.1} parent=39 // pred_fallthru
        _
    $region40: #{residual_block.1} parent=5 // pred_fallthru
      _
  $region6: #{residual_block.1} parent=0 // loop_footer
    %s13 = sadd.s32 1, %s9
  $region7: #{residual_block.1} parent=0 // loop_footer_branch
    %8 = sbr.rel target = $region3
  $region8: #{residual_block.1} parent=0 // loop_exit
    _

</llo_original>
